<compile_context>
chip_gen: v6e
topology: v6e:2x2x1
jax: 0.10.0
libtpu: 0.0.40
codegen_flags: <defaults>
</compile_context>

<pallas_src>
import math

import jax
import jax.numpy as jnp
from jax.experimental import pallas as pl
from jax.experimental.pallas import tpu as pltpu


def cab_pallas(x_nchw, params):
    """CAB forward. x_nchw: (B, C, H, W) float32. Returns (B, C, H, W)."""
    B, C, H, W = x_nchw.shape
    Cm = params["w1"].shape[0]          # num_feat // compress_ratio
    Cs = params["wa1"].shape[0]         # num_feat // squeeze_factor
    HW = H * W
    SL = 128                            # lane slack per side (>= W+1, 128-aligned)
    SLW = SL + HW + SL
    inv_sqrt2 = 1.0 / math.sqrt(2.0)

    # (B, C, HW) directly — no layout transpose needed in this kernel layout.
    x_flat = x_nchw.reshape(B, C, HW)

    # Horizontal-wrap masks (vertical padding is handled by the zero lane slack).
    col = jnp.arange(HW, dtype=jnp.int32) % W
    mask_l = (col != 0).astype(jnp.float32)          # for kx == 0 taps
    mask_r = (col != W - 1).astype(jnp.float32)      # for kx == 2 taps
    masks_lr = jnp.stack([mask_l, mask_r], axis=0)   # (2, HW)

    # Conv weights as per-tap (Cout, Cin) matrices: w_t[ky, kx] = w[:, :, ky, kx].
    w1t = jnp.transpose(params["w1"], (2, 3, 0, 1))  # (3, 3, Cm, C)
    w2t = jnp.transpose(params["w2"], (2, 3, 0, 1))  # (3, 3, C, Cm)
    b1c = params["b1"].reshape(Cm, 1)
    b2c = params["b2"].reshape(C, 1)
    wa1 = params["wa1"]                               # (Cs, C)
    ba1c = params["ba1"].reshape(Cs, 1)
    wa2 = params["wa2"]                               # (C, Cs)
    ba2c = params["ba2"].reshape(C, 1)

    def cab_kernel(x_ref, m_ref,
                   w1_ref, b1_ref, w2_ref, b2_ref,
                   wa1_ref, ba1_ref, wa2_ref, ba2_ref,
                   o_ref, xs_ref, hs_ref):
        # x_ref: (1, C, HW)   o_ref: (1, C, HW)   m_ref: (2, HW)
        # w1_ref: (3,3,Cm,C)  b1_ref: (Cm,1)  w2_ref: (3,3,C,Cm)  b2_ref: (C,1)
        # wa1_ref:(Cs,C) ba1_ref:(Cs,1)       wa2_ref:(C,Cs)      ba2_ref:(C,1)
        # xs_ref: VMEM (C,  SL+HW+SL) lane-slack-padded input
        # hs_ref: VMEM (Cm, SL+HW+SL) lane-slack-padded GELU intermediate

        # Zero only the slack lanes (interior is fully rewritten every step).
        zx = jnp.zeros((C, SL), jnp.float32)
        zh = jnp.zeros((Cm, SL), jnp.float32)
        xs_ref[:, 0:SL] = zx
        xs_ref[:, SL + HW:SL + HW + SL] = zx
        hs_ref[:, 0:SL] = zh
        hs_ref[:, SL + HW:SL + HW + SL] = zh
        xs_ref[:, SL:SL + HW] = x_ref[0]             # lane-aligned store

        mask_l_v = m_ref[0:1, :]                     # (1, HW)
        mask_r_v = m_ref[1:2, :]

        def conv3x3(src_ref, w_ref, cin, cout):
            # 9 per-tap MXU matmuls (Cout, Cin) @ (Cin, HW); the horizontal-wrap
            # mask is applied to whichever side has fewer channel rows.
            mask_on_input = cin < cout
            acc = None
            for ky in range(3):
                for kx in range(3):
                    off = (ky - 1) * W + (kx - 1)
                    start = SL + off
                    slab = src_ref[:, start:start + HW]          # (cin, HW)
                    m = mask_l_v if kx == 0 else (mask_r_v if kx == 2 else None)
                    if m is not None and mask_on_input:
                        slab = slab * m
                    t = jnp.dot(w_ref[ky, kx], slab,
                                preferred_element_type=jnp.float32)
                    if m is not None and not mask_on_input:
                        t = t * m
                    acc = t if acc is None else acc + t
            return acc

        # ---- conv1 (3x3, pad=1) + exact GELU (PyTorch default) ----
        a1 = conv3x3(xs_ref, w1_ref, C, Cm) + b1_ref[...]        # (Cm, HW)
        g = 0.5 * a1 * (1.0 + jax.lax.erf(a1 * inv_sqrt2))
        hs_ref[:, SL:SL + HW] = g                                # lane-aligned store

        # ---- conv2 (3x3, pad=1) ----
        y = conv3x3(hs_ref, w2_ref, Cm, C) + b2_ref[...]         # (C, HW)

        # ---- channel attention (RCAN style), fused before the single store ----
        pooled = jnp.sum(y, axis=1, keepdims=True) * (1.0 / float(HW))   # (C, 1)
        pb = jnp.broadcast_to(pooled, (C, 128))                  # lane splat
        z = jnp.dot(wa1_ref[...], pb,
                    preferred_element_type=jnp.float32) + ba1_ref[...]   # (Cs, 128)
        z = jnp.maximum(z, 0.0)
        a2 = jnp.dot(wa2_ref[...], z,
                     preferred_element_type=jnp.float32) + ba2_ref[...]  # (C, 128)
        attn = jax.nn.sigmoid(a2[:, 0:1])                        # (C, 1)

        # Single whole-slab, lane-dense output store.
        o_ref[0] = (y * attn).astype(o_ref.dtype)

    out_flat = pl.pallas_call(
        cab_kernel,
        out_shape=jax.ShapeDtypeStruct((B, C, HW), x_flat.dtype),
        grid_spec=pltpu.PrefetchScalarGridSpec(
            num_scalar_prefetch=0,
            grid=(B,),
            in_specs=[
                pl.BlockSpec((1, C, HW), lambda b: (b, 0, 0)),
                pl.BlockSpec((2, HW), lambda b: (0, 0)),
                pl.BlockSpec((3, 3, Cm, C), lambda b: (0, 0, 0, 0)),
                pl.BlockSpec((Cm, 1), lambda b: (0, 0)),
                pl.BlockSpec((3, 3, C, Cm), lambda b: (0, 0, 0, 0)),
                pl.BlockSpec((C, 1), lambda b: (0, 0)),
                pl.BlockSpec((Cs, C), lambda b: (0, 0)),
                pl.BlockSpec((Cs, 1), lambda b: (0, 0)),
                pl.BlockSpec((C, Cs), lambda b: (0, 0)),
                pl.BlockSpec((C, 1), lambda b: (0, 0)),
            ],
            out_specs=pl.BlockSpec((1, C, HW), lambda b: (b, 0, 0)),
            scratch_shapes=[
                pltpu.VMEM((C, SLW), jnp.float32),
                pltpu.VMEM((Cm, SLW), jnp.float32),
            ],
        ),
        compiler_params=pltpu.CompilerParams(dimension_semantics=("parallel",)),
    )(x_flat, masks_lr,
      w1t, b1c, w2t, b2c, wa1, ba1c, wa2, ba2c)

    return out_flat.reshape(B, C, H, W)


def cab_reference(x_nchw, params):
    """Pure-JAX reference (same math, XLA convs) for correctness checking."""
    dn = ("NCHW", "OIHW", "NCHW")
    h = jax.lax.conv_general_dilated(x_nchw, params["w1"], (1, 1), "SAME",
                                     dimension_numbers=dn)
    h = h + params["b1"].reshape(1, -1, 1, 1)
    h = 0.5 * h * (1.0 + jax.lax.erf(h / jnp.sqrt(2.0)))
    y = jax.lax.conv_general_dilated(h, params["w2"], (1, 1), "SAME",
                                     dimension_numbers=dn)
    y = y + params["b2"].reshape(1, -1, 1, 1)
    pooled = jnp.mean(y, axis=(2, 3))                             # (B, C)
    z = jnp.maximum(pooled @ params["wa1"].T + params["ba1"], 0.0)
    attn = jax.nn.sigmoid(z @ params["wa2"].T + params["ba2"])    # (B, C)
    return y * attn[:, :, None, None]


def init_params(key, num_feat, compress_ratio=3, squeeze_factor=30):
    """Parameters in PyTorch layouts: conv (O, I, kh, kw), 1x1 attn convs (O, I)."""
    Cm = num_feat // compress_ratio
    Cs = num_feat // squeeze_factor
    ks = jax.random.split(key, 8)
    s1 = 1.0 / math.sqrt(9 * num_feat)
    s2 = 1.0 / math.sqrt(9 * Cm)
    s3 = 1.0 / math.sqrt(num_feat)
    s4 = 1.0 / math.sqrt(max(Cs, 1))
    return {
        "w1": jax.random.normal(ks[0], (Cm, num_feat, 3, 3), jnp.float32) * s1,
        "b1": jax.random.normal(ks[1], (Cm,), jnp.float32) * 0.05,
        "w2": jax.random.normal(ks[2], (num_feat, Cm, 3, 3), jnp.float32) * s2,
        "b2": jax.random.normal(ks[3], (num_feat,), jnp.float32) * 0.05,
        "wa1": jax.random.normal(ks[4], (Cs, num_feat), jnp.float32) * s3,
        "ba1": jax.random.normal(ks[5], (Cs,), jnp.float32) * 0.05,
        "wa2": jax.random.normal(ks[6], (num_feat, Cs), jnp.float32) * s4,
        "ba2": jax.random.normal(ks[7], (num_feat,), jnp.float32) * 0.05,
    }


if __name__ == "__main__":
    # CAB defaults: num_feat divisible by compress_ratio=3 and >= squeeze_factor=30.
    B, C, H, W = 2, 60, 16, 16
    key = jax.random.PRNGKey(0)
    kx, kp = jax.random.split(key)
    x = jax.random.normal(kx, (B, C, H, W), jnp.float32)
    params = init_params(kp, C, compress_ratio=3, squeeze_factor=30)

    out = jax.block_until_ready(cab_pallas(x, params))
    ref = jax.block_until_ready(cab_reference(x, params))

    assert out.shape == (B, C, H, W)
    assert jnp.allclose(out, ref, rtol=1e-3, atol=1e-4), (
        f"max abs diff {float(jnp.max(jnp.abs(out - ref)))}")
    print("KERNEL_OK")
</pallas_src>

<mosaic_0001>
module attributes {stable_mosaic.version = 11 : i64} {
  func.func @cab_kernel(%arg0: i32, %arg1: memref<1x60x256xf32, #tpu.memory_space<vmem>>, %arg2: memref<2x256xf32, #tpu.memory_space<vmem>>, %arg3: memref<3x3x20x60xf32, #tpu.memory_space<vmem>>, %arg4: memref<20x1xf32, #tpu.memory_space<vmem>>, %arg5: memref<3x3x60x20xf32, #tpu.memory_space<vmem>>, %arg6: memref<60x1xf32, #tpu.memory_space<vmem>>, %arg7: memref<2x60xf32, #tpu.memory_space<vmem>>, %arg8: memref<2x1xf32, #tpu.memory_space<vmem>>, %arg9: memref<60x2xf32, #tpu.memory_space<vmem>>, %arg10: memref<60x1xf32, #tpu.memory_space<vmem>>, %arg11: memref<1x60x256xf32, #tpu.memory_space<vmem>>, %arg12: memref<60x512xf32, #tpu.memory_space<vmem>>, %arg13: memref<20x512xf32, #tpu.memory_space<vmem>>) attributes {dimension_semantics = [#tpu.dimension_semantics<parallel>], iteration_bounds = array<i64: 2>, scalar_prefetch = 0 : i64, scratch_operands = 2 : i64, tpu.core_type = #tpu.core_type<tc>, window_params = [{transform_indices = @transform_0, window_bounds = array<i64: 1, 60, 256>}, {pipeline_mode = #tpu.pipeline_mode<synchronous>, transform_indices = @transform_1, window_bounds = array<i64: 2, 256>}, {pipeline_mode = #tpu.pipeline_mode<synchronous>, transform_indices = @transform_2, window_bounds = array<i64: 3, 3, 20, 60>}, {pipeline_mode = #tpu.pipeline_mode<synchronous>, transform_indices = @transform_3, window_bounds = array<i64: 20, 1>}, {pipeline_mode = #tpu.pipeline_mode<synchronous>, transform_indices = @transform_4, window_bounds = array<i64: 3, 3, 60, 20>}, {pipeline_mode = #tpu.pipeline_mode<synchronous>, transform_indices = @transform_5, window_bounds = array<i64: 60, 1>}, {pipeline_mode = #tpu.pipeline_mode<synchronous>, transform_indices = @transform_6, window_bounds = array<i64: 2, 60>}, {pipeline_mode = #tpu.pipeline_mode<synchronous>, transform_indices = @transform_7, window_bounds = array<i64: 2, 1>}, {pipeline_mode = #tpu.pipeline_mode<synchronous>, transform_indices = @transform_8, window_bounds = array<i64: 60, 2>}, {pipeline_mode = #tpu.pipeline_mode<synchronous>, transform_indices = @transform_9, window_bounds = array<i64: 60, 1>}, {transform_indices = @transform_10, window_bounds = array<i64: 1, 60, 256>}]} {
    %cst = arith.constant 0.000000e+00 : f32
    %0 = vector.broadcast %cst : f32 to vector<60x128xf32>
    %cst_0 = arith.constant 0.000000e+00 : f32
    %1 = vector.broadcast %cst_0 : f32 to vector<20x128xf32>
    %c0 = arith.constant 0 : index
    %c0_1 = arith.constant 0 : index
    %2 = vector.load %arg12[%c0, %c0_1] : memref<60x512xf32, #tpu.memory_space<vmem>>, vector<60x128xf32>
    tpu.vector_store %arg12[%c0, %c0_1], %0 {strides = array<i32>} : memref<60x512xf32, #tpu.memory_space<vmem>>, vector<60x128xf32>,
    %c0_2 = arith.constant 0 : index
    %c384 = arith.constant 384 : index
    %3 = vector.load %arg12[%c0_2, %c384] : memref<60x512xf32, #tpu.memory_space<vmem>>, vector<60x128xf32>
    tpu.vector_store %arg12[%c0_2, %c384], %0 {strides = array<i32>} : memref<60x512xf32, #tpu.memory_space<vmem>>, vector<60x128xf32>,
    %c0_3 = arith.constant 0 : index
    %c0_4 = arith.constant 0 : index
    %4 = vector.load %arg13[%c0_3, %c0_4] : memref<20x512xf32, #tpu.memory_space<vmem>>, vector<20x128xf32>
    tpu.vector_store %arg13[%c0_3, %c0_4], %1 {strides = array<i32>} : memref<20x512xf32, #tpu.memory_space<vmem>>, vector<20x128xf32>,
    %c0_5 = arith.constant 0 : index
    %c384_6 = arith.constant 384 : index
    %5 = vector.load %arg13[%c0_5, %c384_6] : memref<20x512xf32, #tpu.memory_space<vmem>>, vector<20x128xf32>
    tpu.vector_store %arg13[%c0_5, %c384_6], %1 {strides = array<i32>} : memref<20x512xf32, #tpu.memory_space<vmem>>, vector<20x128xf32>,
    %c0_7 = arith.constant 0 : index
    %c0_8 = arith.constant 0 : index
    %c0_9 = arith.constant 0 : index
    %6 = vector.load %arg1[%c0_7, %c0_8, %c0_9] : memref<1x60x256xf32, #tpu.memory_space<vmem>>, vector<1x60x256xf32>
    %7 = vector.shape_cast %6 : vector<1x60x256xf32> to vector<60x256xf32>
    %c0_10 = arith.constant 0 : index
    %c128 = arith.constant 128 : index
    %8 = vector.load %arg12[%c0_10, %c128] : memref<60x512xf32, #tpu.memory_space<vmem>>, vector<60x256xf32>
    tpu.vector_store %arg12[%c0_10, %c128], %7 {strides = array<i32>} : memref<60x512xf32, #tpu.memory_space<vmem>>, vector<60x256xf32>,
    %c0_11 = arith.constant 0 : index
    %c0_12 = arith.constant 0 : index
    %9 = vector.load %arg2[%c0_11, %c0_12] : memref<2x256xf32, #tpu.memory_space<vmem>>, vector<1x256xf32>
    %c1 = arith.constant 1 : index
    %c0_13 = arith.constant 0 : index
    %10 = vector.load %arg2[%c1, %c0_13] : memref<2x256xf32, #tpu.memory_space<vmem>>, vector<1x256xf32>
    %c0_14 = arith.constant 0 : index
    %c111 = arith.constant 111 : index
    %11 = vector.load %arg12[%c0_14, %c111] : memref<60x512xf32, #tpu.memory_space<vmem>>, vector<60x256xf32>
    %c0_15 = arith.constant 0 : index
    %c0_16 = arith.constant 0 : index
    %c0_17 = arith.constant 0 : index
    %c0_18 = arith.constant 0 : index
    %12 = vector.load %arg3[%c0_15, %c0_16, %c0_17, %c0_18] : memref<3x3x20x60xf32, #tpu.memory_space<vmem>>, vector<1x1x20x60xf32>
    %13 = vector.shape_cast %12 : vector<1x1x20x60xf32> to vector<20x60xf32>
    %cst_19 = arith.constant dense<0.000000e+00> : vector<20x256xf32>
    %14 = tpu.matmul %13, %11, %cst_19 {dimension_numbers = #tpu.dot_dimension_numbers<[1], [0], [0], [1], [0, 0, 1, 1], [], []>} : vector<20x60xf32>, vector<60x256xf32>, vector<20x256xf32> -> vector<20x256xf32>
    %15 = vector.broadcast %9 : vector<1x256xf32> to vector<20x256xf32>
    %16 = arith.mulf %14, %15 : vector<20x256xf32>
    %c0_20 = arith.constant 0 : index
    %c112 = arith.constant 112 : index
    %17 = vector.load %arg12[%c0_20, %c112] : memref<60x512xf32, #tpu.memory_space<vmem>>, vector<60x256xf32>
    %c0_21 = arith.constant 0 : index
    %c1_22 = arith.constant 1 : index
    %c0_23 = arith.constant 0 : index
    %c0_24 = arith.constant 0 : index
    %18 = vector.load %arg3[%c0_21, %c1_22, %c0_23, %c0_24] : memref<3x3x20x60xf32, #tpu.memory_space<vmem>>, vector<1x1x20x60xf32>
    %19 = vector.shape_cast %18 : vector<1x1x20x60xf32> to vector<20x60xf32>
    %cst_25 = arith.constant dense<0.000000e+00> : vector<20x256xf32>
    %20 = tpu.matmul %19, %17, %cst_25 {dimension_numbers = #tpu.dot_dimension_numbers<[1], [0], [0], [1], [0, 0, 1, 1], [], []>} : vector<20x60xf32>, vector<60x256xf32>, vector<20x256xf32> -> vector<20x256xf32>
    %21 = arith.addf %16, %20 : vector<20x256xf32>
    %c0_26 = arith.constant 0 : index
    %c113 = arith.constant 113 : index
    %22 = vector.load %arg12[%c0_26, %c113] : memref<60x512xf32, #tpu.memory_space<vmem>>, vector<60x256xf32>
    %c0_27 = arith.constant 0 : index
    %c2 = arith.constant 2 : index
    %c0_28 = arith.constant 0 : index
    %c0_29 = arith.constant 0 : index
    %23 = vector.load %arg3[%c0_27, %c2, %c0_28, %c0_29] : memref<3x3x20x60xf32, #tpu.memory_space<vmem>>, vector<1x1x20x60xf32>
    %24 = vector.shape_cast %23 : vector<1x1x20x60xf32> to vector<20x60xf32>
    %cst_30 = arith.constant dense<0.000000e+00> : vector<20x256xf32>
    %25 = tpu.matmul %24, %22, %cst_30 {dimension_numbers = #tpu.dot_dimension_numbers<[1], [0], [0], [1], [0, 0, 1, 1], [], []>} : vector<20x60xf32>, vector<60x256xf32>, vector<20x256xf32> -> vector<20x256xf32>
    %26 = vector.broadcast %10 : vector<1x256xf32> to vector<20x256xf32>
    %27 = arith.mulf %25, %26 : vector<20x256xf32>
    %28 = arith.addf %21, %27 : vector<20x256xf32>
    %c0_31 = arith.constant 0 : index
    %c127 = arith.constant 127 : index
    %29 = vector.load %arg12[%c0_31, %c127] : memref<60x512xf32, #tpu.memory_space<vmem>>, vector<60x256xf32>
    %c1_32 = arith.constant 1 : index
    %c0_33 = arith.constant 0 : index
    %c0_34 = arith.constant 0 : index
    %c0_35 = arith.constant 0 : index
    %30 = vector.load %arg3[%c1_32, %c0_33, %c0_34, %c0_35] : memref<3x3x20x60xf32, #tpu.memory_space<vmem>>, vector<1x1x20x60xf32>
    %31 = vector.shape_cast %30 : vector<1x1x20x60xf32> to vector<20x60xf32>
    %cst_36 = arith.constant dense<0.000000e+00> : vector<20x256xf32>
    %32 = tpu.matmul %31, %29, %cst_36 {dimension_numbers = #tpu.dot_dimension_numbers<[1], [0], [0], [1], [0, 0, 1, 1], [], []>} : vector<20x60xf32>, vector<60x256xf32>, vector<20x256xf32> -> vector<20x256xf32>
    %33 = vector.broadcast %9 : vector<1x256xf32> to vector<20x256xf32>
    %34 = arith.mulf %32, %33 : vector<20x256xf32>
    %35 = arith.addf %28, %34 : vector<20x256xf32>
    %c0_37 = arith.constant 0 : index
    %c128_38 = arith.constant 128 : index
    %36 = vector.load %arg12[%c0_37, %c128_38] : memref<60x512xf32, #tpu.memory_space<vmem>>, vector<60x256xf32>
    %c1_39 = arith.constant 1 : index
    %c1_40 = arith.constant 1 : index
    %c0_41 = arith.constant 0 : index
    %c0_42 = arith.constant 0 : index
    %37 = vector.load %arg3[%c1_39, %c1_40, %c0_41, %c0_42] : memref<3x3x20x60xf32, #tpu.memory_space<vmem>>, vector<1x1x20x60xf32>
    %38 = vector.shape_cast %37 : vector<1x1x20x60xf32> to vector<20x60xf32>
    %cst_43 = arith.constant dense<0.000000e+00> : vector<20x256xf32>
    %39 = tpu.matmul %38, %36, %cst_43 {dimension_numbers = #tpu.dot_dimension_numbers<[1], [0], [0], [1], [0, 0, 1, 1], [], []>} : vector<20x60xf32>, vector<60x256xf32>, vector<20x256xf32> -> vector<20x256xf32>
    %40 = arith.addf %35, %39 : vector<20x256xf32>
    %c0_44 = arith.constant 0 : index
    %c129 = arith.constant 129 : index
    %41 = vector.load %arg12[%c0_44, %c129] : memref<60x512xf32, #tpu.memory_space<vmem>>, vector<60x256xf32>
    %c1_45 = arith.constant 1 : index
    %c2_46 = arith.constant 2 : index
    %c0_47 = arith.constant 0 : index
    %c0_48 = arith.constant 0 : index
    %42 = vector.load %arg3[%c1_45, %c2_46, %c0_47, %c0_48] : memref<3x3x20x60xf32, #tpu.memory_space<vmem>>, vector<1x1x20x60xf32>
    %43 = vector.shape_cast %42 : vector<1x1x20x60xf32> to vector<20x60xf32>
    %cst_49 = arith.constant dense<0.000000e+00> : vector<20x256xf32>
    %44 = tpu.matmul %43, %41, %cst_49 {dimension_numbers = #tpu.dot_dimension_numbers<[1], [0], [0], [1], [0, 0, 1, 1], [], []>} : vector<20x60xf32>, vector<60x256xf32>, vector<20x256xf32> -> vector<20x256xf32>
    %45 = vector.broadcast %10 : vector<1x256xf32> to vector<20x256xf32>
    %46 = arith.mulf %44, %45 : vector<20x256xf32>
    %47 = arith.addf %40, %46 : vector<20x256xf32>
    %c0_50 = arith.constant 0 : index
    %c143 = arith.constant 143 : index
    %48 = vector.load %arg12[%c0_50, %c143] : memref<60x512xf32, #tpu.memory_space<vmem>>, vector<60x256xf32>
    %c2_51 = arith.constant 2 : index
    %c0_52 = arith.constant 0 : index
    %c0_53 = arith.constant 0 : index
    %c0_54 = arith.constant 0 : index
    %49 = vector.load %arg3[%c2_51, %c0_52, %c0_53, %c0_54] : memref<3x3x20x60xf32, #tpu.memory_space<vmem>>, vector<1x1x20x60xf32>
    %50 = vector.shape_cast %49 : vector<1x1x20x60xf32> to vector<20x60xf32>
    %cst_55 = arith.constant dense<0.000000e+00> : vector<20x256xf32>
    %51 = tpu.matmul %50, %48, %cst_55 {dimension_numbers = #tpu.dot_dimension_numbers<[1], [0], [0], [1], [0, 0, 1, 1], [], []>} : vector<20x60xf32>, vector<60x256xf32>, vector<20x256xf32> -> vector<20x256xf32>
    %52 = vector.broadcast %9 : vector<1x256xf32> to vector<20x256xf32>
    %53 = arith.mulf %51, %52 : vector<20x256xf32>
    %54 = arith.addf %47, %53 : vector<20x256xf32>
    %c0_56 = arith.constant 0 : index
    %c144 = arith.constant 144 : index
    %55 = vector.load %arg12[%c0_56, %c144] : memref<60x512xf32, #tpu.memory_space<vmem>>, vector<60x256xf32>
    %c2_57 = arith.constant 2 : index
    %c1_58 = arith.constant 1 : index
    %c0_59 = arith.constant 0 : index
    %c0_60 = arith.constant 0 : index
    %56 = vector.load %arg3[%c2_57, %c1_58, %c0_59, %c0_60] : memref<3x3x20x60xf32, #tpu.memory_space<vmem>>, vector<1x1x20x60xf32>
    %57 = vector.shape_cast %56 : vector<1x1x20x60xf32> to vector<20x60xf32>
    %cst_61 = arith.constant dense<0.000000e+00> : vector<20x256xf32>
    %58 = tpu.matmul %57, %55, %cst_61 {dimension_numbers = #tpu.dot_dimension_numbers<[1], [0], [0], [1], [0, 0, 1, 1], [], []>} : vector<20x60xf32>, vector<60x256xf32>, vector<20x256xf32> -> vector<20x256xf32>
    %59 = arith.addf %54, %58 : vector<20x256xf32>
    %c0_62 = arith.constant 0 : index
    %c145 = arith.constant 145 : index
    %60 = vector.load %arg12[%c0_62, %c145] : memref<60x512xf32, #tpu.memory_space<vmem>>, vector<60x256xf32>
    %c2_63 = arith.constant 2 : index
    %c2_64 = arith.constant 2 : index
    %c0_65 = arith.constant 0 : index
    %c0_66 = arith.constant 0 : index
    %61 = vector.load %arg3[%c2_63, %c2_64, %c0_65, %c0_66] : memref<3x3x20x60xf32, #tpu.memory_space<vmem>>, vector<1x1x20x60xf32>
    %62 = vector.shape_cast %61 : vector<1x1x20x60xf32> to vector<20x60xf32>
    %cst_67 = arith.constant dense<0.000000e+00> : vector<20x256xf32>
    %63 = tpu.matmul %62, %60, %cst_67 {dimension_numbers = #tpu.dot_dimension_numbers<[1], [0], [0], [1], [0, 0, 1, 1], [], []>} : vector<20x60xf32>, vector<60x256xf32>, vector<20x256xf32> -> vector<20x256xf32>
    %64 = vector.broadcast %10 : vector<1x256xf32> to vector<20x256xf32>
    %65 = arith.mulf %63, %64 : vector<20x256xf32>
    %66 = arith.addf %59, %65 : vector<20x256xf32>
    %c0_68 = arith.constant 0 : index
    %c0_69 = arith.constant 0 : index
    %67 = vector.load %arg4[%c0_68, %c0_69] : memref<20x1xf32, #tpu.memory_space<vmem>>, vector<20x1xf32>
    %68 = vector.broadcast %67 : vector<20x1xf32> to vector<20x256xf32>
    %69 = arith.addf %66, %68 : vector<20x256xf32>
    %cst_70 = arith.constant 5.000000e-01 : f32
    %70 = vector.broadcast %cst_70 : f32 to vector<20x256xf32>
    %71 = arith.mulf %70, %69 : vector<20x256xf32>
    %cst_71 = arith.constant 0.707106769 : f32
    %72 = vector.broadcast %cst_71 : f32 to vector<20x256xf32>
    %73 = arith.mulf %69, %72 : vector<20x256xf32>
    %74 = math.erf %73 : vector<20x256xf32>
    %cst_72 = arith.constant 1.000000e+00 : f32
    %75 = vector.broadcast %cst_72 : f32 to vector<20x256xf32>
    %76 = arith.addf %75, %74 : vector<20x256xf32>
    %77 = arith.mulf %71, %76 : vector<20x256xf32>
    %c0_73 = arith.constant 0 : index
    %c128_74 = arith.constant 128 : index
    %78 = vector.load %arg13[%c0_73, %c128_74] : memref<20x512xf32, #tpu.memory_space<vmem>>, vector<20x256xf32>
    tpu.vector_store %arg13[%c0_73, %c128_74], %77 {strides = array<i32>} : memref<20x512xf32, #tpu.memory_space<vmem>>, vector<20x256xf32>,
    %c0_75 = arith.constant 0 : index
    %c111_76 = arith.constant 111 : index
    %79 = vector.load %arg13[%c0_75, %c111_76] : memref<20x512xf32, #tpu.memory_space<vmem>>, vector<20x256xf32>
    %80 = vector.broadcast %9 : vector<1x256xf32> to vector<20x256xf32>
    %81 = arith.mulf %79, %80 : vector<20x256xf32>
    %c0_77 = arith.constant 0 : index
    %c0_78 = arith.constant 0 : index
    %c0_79 = arith.constant 0 : index
    %c0_80 = arith.constant 0 : index
    %82 = vector.load %arg5[%c0_77, %c0_78, %c0_79, %c0_80] : memref<3x3x60x20xf32, #tpu.memory_space<vmem>>, vector<1x1x60x20xf32>
    %83 = vector.shape_cast %82 : vector<1x1x60x20xf32> to vector<60x20xf32>
    %cst_81 = arith.constant dense<0.000000e+00> : vector<60x256xf32>
    %84 = tpu.matmul %83, %81, %cst_81 {dimension_numbers = #tpu.dot_dimension_numbers<[1], [0], [0], [1], [0, 0, 1, 1], [], []>} : vector<60x20xf32>, vector<20x256xf32>, vector<60x256xf32> -> vector<60x256xf32>
    %c0_82 = arith.constant 0 : index
    %c112_83 = arith.constant 112 : index
    %85 = vector.load %arg13[%c0_82, %c112_83] : memref<20x512xf32, #tpu.memory_space<vmem>>, vector<20x256xf32>
    %c0_84 = arith.constant 0 : index
    %c1_85 = arith.constant 1 : index
    %c0_86 = arith.constant 0 : index
    %c0_87 = arith.constant 0 : index
    %86 = vector.load %arg5[%c0_84, %c1_85, %c0_86, %c0_87] : memref<3x3x60x20xf32, #tpu.memory_space<vmem>>, vector<1x1x60x20xf32>
    %87 = vector.shape_cast %86 : vector<1x1x60x20xf32> to vector<60x20xf32>
    %cst_88 = arith.constant dense<0.000000e+00> : vector<60x256xf32>
    %88 = tpu.matmul %87, %85, %cst_88 {dimension_numbers = #tpu.dot_dimension_numbers<[1], [0], [0], [1], [0, 0, 1, 1], [], []>} : vector<60x20xf32>, vector<20x256xf32>, vector<60x256xf32> -> vector<60x256xf32>
    %89 = arith.addf %84, %88 : vector<60x256xf32>
    %c0_89 = arith.constant 0 : index
    %c113_90 = arith.constant 113 : index
    %90 = vector.load %arg13[%c0_89, %c113_90] : memref<20x512xf32, #tpu.memory_space<vmem>>, vector<20x256xf32>
    %91 = vector.broadcast %10 : vector<1x256xf32> to vector<20x256xf32>
    %92 = arith.mulf %90, %91 : vector<20x256xf32>
    %c0_91 = arith.constant 0 : index
    %c2_92 = arith.constant 2 : index
    %c0_93 = arith.constant 0 : index
    %c0_94 = arith.constant 0 : index
    %93 = vector.load %arg5[%c0_91, %c2_92, %c0_93, %c0_94] : memref<3x3x60x20xf32, #tpu.memory_space<vmem>>, vector<1x1x60x20xf32>
    %94 = vector.shape_cast %93 : vector<1x1x60x20xf32> to vector<60x20xf32>
    %cst_95 = arith.constant dense<0.000000e+00> : vector<60x256xf32>
    %95 = tpu.matmul %94, %92, %cst_95 {dimension_numbers = #tpu.dot_dimension_numbers<[1], [0], [0], [1], [0, 0, 1, 1], [], []>} : vector<60x20xf32>, vector<20x256xf32>, vector<60x256xf32> -> vector<60x256xf32>
    %96 = arith.addf %89, %95 : vector<60x256xf32>
    %c0_96 = arith.constant 0 : index
    %c127_97 = arith.constant 127 : index
    %97 = vector.load %arg13[%c0_96, %c127_97] : memref<20x512xf32, #tpu.memory_space<vmem>>, vector<20x256xf32>
    %98 = vector.broadcast %9 : vector<1x256xf32> to vector<20x256xf32>
    %99 = arith.mulf %97, %98 : vector<20x256xf32>
    %c1_98 = arith.constant 1 : index
    %c0_99 = arith.constant 0 : index
    %c0_100 = arith.constant 0 : index
    %c0_101 = arith.constant 0 : index
    %100 = vector.load %arg5[%c1_98, %c0_99, %c0_100, %c0_101] : memref<3x3x60x20xf32, #tpu.memory_space<vmem>>, vector<1x1x60x20xf32>
    %101 = vector.shape_cast %100 : vector<1x1x60x20xf32> to vector<60x20xf32>
    %cst_102 = arith.constant dense<0.000000e+00> : vector<60x256xf32>
    %102 = tpu.matmul %101, %99, %cst_102 {dimension_numbers = #tpu.dot_dimension_numbers<[1], [0], [0], [1], [0, 0, 1, 1], [], []>} : vector<60x20xf32>, vector<20x256xf32>, vector<60x256xf32> -> vector<60x256xf32>
    %103 = arith.addf %96, %102 : vector<60x256xf32>
    %c0_103 = arith.constant 0 : index
    %c128_104 = arith.constant 128 : index
    %104 = vector.load %arg13[%c0_103, %c128_104] : memref<20x512xf32, #tpu.memory_space<vmem>>, vector<20x256xf32>
    %c1_105 = arith.constant 1 : index
    %c1_106 = arith.constant 1 : index
    %c0_107 = arith.constant 0 : index
    %c0_108 = arith.constant 0 : index
    %105 = vector.load %arg5[%c1_105, %c1_106, %c0_107, %c0_108] : memref<3x3x60x20xf32, #tpu.memory_space<vmem>>, vector<1x1x60x20xf32>
    %106 = vector.shape_cast %105 : vector<1x1x60x20xf32> to vector<60x20xf32>
    %cst_109 = arith.constant dense<0.000000e+00> : vector<60x256xf32>
    %107 = tpu.matmul %106, %104, %cst_109 {dimension_numbers = #tpu.dot_dimension_numbers<[1], [0], [0], [1], [0, 0, 1, 1], [], []>} : vector<60x20xf32>, vector<20x256xf32>, vector<60x256xf32> -> vector<60x256xf32>
    %108 = arith.addf %103, %107 : vector<60x256xf32>
    %c0_110 = arith.constant 0 : index
    %c129_111 = arith.constant 129 : index
    %109 = vector.load %arg13[%c0_110, %c129_111] : memref<20x512xf32, #tpu.memory_space<vmem>>, vector<20x256xf32>
    %110 = vector.broadcast %10 : vector<1x256xf32> to vector<20x256xf32>
    %111 = arith.mulf %109, %110 : vector<20x256xf32>
    %c1_112 = arith.constant 1 : index
    %c2_113 = arith.constant 2 : index
    %c0_114 = arith.constant 0 : index
    %c0_115 = arith.constant 0 : index
    %112 = vector.load %arg5[%c1_112, %c2_113, %c0_114, %c0_115] : memref<3x3x60x20xf32, #tpu.memory_space<vmem>>, vector<1x1x60x20xf32>
    %113 = vector.shape_cast %112 : vector<1x1x60x20xf32> to vector<60x20xf32>
    %cst_116 = arith.constant dense<0.000000e+00> : vector<60x256xf32>
    %114 = tpu.matmul %113, %111, %cst_116 {dimension_numbers = #tpu.dot_dimension_numbers<[1], [0], [0], [1], [0, 0, 1, 1], [], []>} : vector<60x20xf32>, vector<20x256xf32>, vector<60x256xf32> -> vector<60x256xf32>
    %115 = arith.addf %108, %114 : vector<60x256xf32>
    %c0_117 = arith.constant 0 : index
    %c143_118 = arith.constant 143 : index
    %116 = vector.load %arg13[%c0_117, %c143_118] : memref<20x512xf32, #tpu.memory_space<vmem>>, vector<20x256xf32>
    %117 = vector.broadcast %9 : vector<1x256xf32> to vector<20x256xf32>
    %118 = arith.mulf %116, %117 : vector<20x256xf32>
    %c2_119 = arith.constant 2 : index
    %c0_120 = arith.constant 0 : index
    %c0_121 = arith.constant 0 : index
    %c0_122 = arith.constant 0 : index
    %119 = vector.load %arg5[%c2_119, %c0_120, %c0_121, %c0_122] : memref<3x3x60x20xf32, #tpu.memory_space<vmem>>, vector<1x1x60x20xf32>
    %120 = vector.shape_cast %119 : vector<1x1x60x20xf32> to vector<60x20xf32>
    %cst_123 = arith.constant dense<0.000000e+00> : vector<60x256xf32>
    %121 = tpu.matmul %120, %118, %cst_123 {dimension_numbers = #tpu.dot_dimension_numbers<[1], [0], [0], [1], [0, 0, 1, 1], [], []>} : vector<60x20xf32>, vector<20x256xf32>, vector<60x256xf32> -> vector<60x256xf32>
    %122 = arith.addf %115, %121 : vector<60x256xf32>
    %c0_124 = arith.constant 0 : index
    %c144_125 = arith.constant 144 : index
    %123 = vector.load %arg13[%c0_124, %c144_125] : memref<20x512xf32, #tpu.memory_space<vmem>>, vector<20x256xf32>
    %c2_126 = arith.constant 2 : index
    %c1_127 = arith.constant 1 : index
    %c0_128 = arith.constant 0 : index
    %c0_129 = arith.constant 0 : index
    %124 = vector.load %arg5[%c2_126, %c1_127, %c0_128, %c0_129] : memref<3x3x60x20xf32, #tpu.memory_space<vmem>>, vector<1x1x60x20xf32>
    %125 = vector.shape_cast %124 : vector<1x1x60x20xf32> to vector<60x20xf32>
    %cst_130 = arith.constant dense<0.000000e+00> : vector<60x256xf32>
    %126 = tpu.matmul %125, %123, %cst_130 {dimension_numbers = #tpu.dot_dimension_numbers<[1], [0], [0], [1], [0, 0, 1, 1], [], []>} : vector<60x20xf32>, vector<20x256xf32>, vector<60x256xf32> -> vector<60x256xf32>
    %127 = arith.addf %122, %126 : vector<60x256xf32>
    %c0_131 = arith.constant 0 : index
    %c145_132 = arith.constant 145 : index
    %128 = vector.load %arg13[%c0_131, %c145_132] : memref<20x512xf32, #tpu.memory_space<vmem>>, vector<20x256xf32>
    %129 = vector.broadcast %10 : vector<1x256xf32> to vector<20x256xf32>
    %130 = arith.mulf %128, %129 : vector<20x256xf32>
    %c2_133 = arith.constant 2 : index
    %c2_134 = arith.constant 2 : index
    %c0_135 = arith.constant 0 : index
    %c0_136 = arith.constant 0 : index
    %131 = vector.load %arg5[%c2_133, %c2_134, %c0_135, %c0_136] : memref<3x3x60x20xf32, #tpu.memory_space<vmem>>, vector<1x1x60x20xf32>
    %132 = vector.shape_cast %131 : vector<1x1x60x20xf32> to vector<60x20xf32>
    %cst_137 = arith.constant dense<0.000000e+00> : vector<60x256xf32>
    %133 = tpu.matmul %132, %130, %cst_137 {dimension_numbers = #tpu.dot_dimension_numbers<[1], [0], [0], [1], [0, 0, 1, 1], [], []>} : vector<60x20xf32>, vector<20x256xf32>, vector<60x256xf32> -> vector<60x256xf32>
    %134 = arith.addf %127, %133 : vector<60x256xf32>
    %c0_138 = arith.constant 0 : index
    %c0_139 = arith.constant 0 : index
    %135 = vector.load %arg6[%c0_138, %c0_139] : memref<60x1xf32, #tpu.memory_space<vmem>>, vector<60x1xf32>
    %136 = vector.broadcast %135 : vector<60x1xf32> to vector<60x256xf32>
    %137 = arith.addf %134, %136 : vector<60x256xf32>
    %cst_140 = arith.constant dense<0.000000e+00> : vector<60xf32>
    %138 = vector.multi_reduction <add>, %137, %cst_140 [1] : vector<60x256xf32> to vector<60xf32>
    %139 = vector.shape_cast %138 : vector<60xf32> to vector<60x1xf32>
    %cst_141 = arith.constant 3.906250e-03 : f32
    %140 = vector.broadcast %cst_141 : f32 to vector<60x1xf32>
    %141 = arith.mulf %139, %140 : vector<60x1xf32>
    %142 = vector.shape_cast %141 : vector<60x1xf32> to vector<60x1xf32>
    %143 = vector.broadcast %142 : vector<60x1xf32> to vector<60x128xf32>
    %c0_142 = arith.constant 0 : index
    %c0_143 = arith.constant 0 : index
    %144 = vector.load %arg7[%c0_142, %c0_143] : memref<2x60xf32, #tpu.memory_space<vmem>>, vector<2x60xf32>
    %cst_144 = arith.constant dense<0.000000e+00> : vector<2x128xf32>
    %145 = tpu.matmul %144, %143, %cst_144 {dimension_numbers = #tpu.dot_dimension_numbers<[1], [0], [0], [1], [0, 0, 1, 1], [], []>} : vector<2x60xf32>, vector<60x128xf32>, vector<2x128xf32> -> vector<2x128xf32>
    %c0_145 = arith.constant 0 : index
    %c0_146 = arith.constant 0 : index
    %146 = vector.load %arg8[%c0_145, %c0_146] : memref<2x1xf32, #tpu.memory_space<vmem>>, vector<2x1xf32>
    %147 = vector.broadcast %146 : vector<2x1xf32> to vector<2x128xf32>
    %148 = arith.addf %145, %147 : vector<2x128xf32>
    %cst_147 = arith.constant 0.000000e+00 : f32
    %149 = vector.broadcast %cst_147 : f32 to vector<2x128xf32>
    %150 = arith.maximumf %148, %149 : vector<2x128xf32>
    %c0_148 = arith.constant 0 : index
    %c0_149 = arith.constant 0 : index
    %151 = vector.load %arg9[%c0_148, %c0_149] : memref<60x2xf32, #tpu.memory_space<vmem>>, vector<60x2xf32>
    %cst_150 = arith.constant dense<0.000000e+00> : vector<60x128xf32>
    %152 = tpu.matmul %151, %150, %cst_150 {dimension_numbers = #tpu.dot_dimension_numbers<[1], [0], [0], [1], [0, 0, 1, 1], [], []>} : vector<60x2xf32>, vector<2x128xf32>, vector<60x128xf32> -> vector<60x128xf32>
    %c0_151 = arith.constant 0 : index
    %c0_152 = arith.constant 0 : index
    %153 = vector.load %arg10[%c0_151, %c0_152] : memref<60x1xf32, #tpu.memory_space<vmem>>, vector<60x1xf32>
    %154 = vector.broadcast %153 : vector<60x1xf32> to vector<60x128xf32>
    %155 = arith.addf %152, %154 : vector<60x128xf32>
    %156 = vector.extract_strided_slice %155 {offsets = [0, 0], sizes = [60, 1], strides = [1, 1]} : vector<60x128xf32> to vector<60x1xf32>
    %157 = arith.negf %156 : vector<60x1xf32>
    %158 = math.exp %157 : vector<60x1xf32>
    %cst_153 = arith.constant 1.000000e+00 : f32
    %159 = vector.broadcast %cst_153 : f32 to vector<60x1xf32>
    %160 = arith.addf %159, %158 : vector<60x1xf32>
    %161 = arith.divf %159, %160 : vector<60x1xf32>
    %162 = vector.broadcast %161 : vector<60x1xf32> to vector<60x256xf32>
    %163 = arith.mulf %137, %162 : vector<60x256xf32>
    %c0_154 = arith.constant 0 : index
    %c0_155 = arith.constant 0 : index
    %c0_156 = arith.constant 0 : index
    %164 = vector.load %arg11[%c0_154, %c0_155, %c0_156] : memref<1x60x256xf32, #tpu.memory_space<vmem>>, vector<1x60x256xf32>
    %165 = vector.shape_cast %164 : vector<1x60x256xf32> to vector<60x256xf32>
    %166 = vector.shape_cast %163 : vector<60x256xf32> to vector<1x60x256xf32>
    tpu.vector_store %arg11[%c0_154, %c0_155, %c0_156], %166 {strides = array<i32>} : memref<1x60x256xf32, #tpu.memory_space<vmem>>, vector<1x60x256xf32>,
    return
  }
  func.func @transform_0(%arg0: i32) -> (i32, i32, i32) {
    %c0_i32 = arith.constant 0 : i32
    %c0_i32_0 = arith.constant 0 : i32
    %c0_i32_1 = arith.constant 0 : i32
    return %arg0, %c0_i32, %c0_i32_0 : i32, i32, i32
  }
  func.func @transform_1(%arg0: i32) -> (i32, i32) {
    %c0_i32 = arith.constant 0 : i32
    %c0_i32_0 = arith.constant 0 : i32
    %c0_i32_1 = arith.constant 0 : i32
    return %c0_i32, %c0_i32_0 : i32, i32
  }
  func.func @transform_2(%arg0: i32) -> (i32, i32, i32, i32) {
    %c0_i32 = arith.constant 0 : i32
    %c0_i32_0 = arith.constant 0 : i32
    %c0_i32_1 = arith.constant 0 : i32
    %c0_i32_2 = arith.constant 0 : i32
    %c0_i32_3 = arith.constant 0 : i32
    return %c0_i32, %c0_i32_0, %c0_i32_1, %c0_i32_2 : i32, i32, i32, i32
  }
  func.func @transform_3(%arg0: i32) -> (i32, i32) {
    %c0_i32 = arith.constant 0 : i32
    %c0_i32_0 = arith.constant 0 : i32
    %c0_i32_1 = arith.constant 0 : i32
    return %c0_i32, %c0_i32_0 : i32, i32
  }
  func.func @transform_4(%arg0: i32) -> (i32, i32, i32, i32) {
    %c0_i32 = arith.constant 0 : i32
    %c0_i32_0 = arith.constant 0 : i32
    %c0_i32_1 = arith.constant 0 : i32
    %c0_i32_2 = arith.constant 0 : i32
    %c0_i32_3 = arith.constant 0 : i32
    return %c0_i32, %c0_i32_0, %c0_i32_1, %c0_i32_2 : i32, i32, i32, i32
  }
  func.func @transform_5(%arg0: i32) -> (i32, i32) {
    %c0_i32 = arith.constant 0 : i32
    %c0_i32_0 = arith.constant 0 : i32
    %c0_i32_1 = arith.constant 0 : i32
    return %c0_i32, %c0_i32_0 : i32, i32
  }
  func.func @transform_6(%arg0: i32) -> (i32, i32) {
    %c0_i32 = arith.constant 0 : i32
    %c0_i32_0 = arith.constant 0 : i32
    %c0_i32_1 = arith.constant 0 : i32
    return %c0_i32, %c0_i32_0 : i32, i32
  }
  func.func @transform_7(%arg0: i32) -> (i32, i32) {
    %c0_i32 = arith.constant 0 : i32
    %c0_i32_0 = arith.constant 0 : i32
    %c0_i32_1 = arith.constant 0 : i32
    return %c0_i32, %c0_i32_0 : i32, i32
  }
  func.func @transform_8(%arg0: i32) -> (i32, i32) {
    %c0_i32 = arith.constant 0 : i32
    %c0_i32_0 = arith.constant 0 : i32
    %c0_i32_1 = arith.constant 0 : i32
    return %c0_i32, %c0_i32_0 : i32, i32
  }
  func.func @transform_9(%arg0: i32) -> (i32, i32) {
    %c0_i32 = arith.constant 0 : i32
    %c0_i32_0 = arith.constant 0 : i32
    %c0_i32_1 = arith.constant 0 : i32
    return %c0_i32, %c0_i32_0 : i32, i32
  }
  func.func @transform_10(%arg0: i32) -> (i32, i32, i32) {
    %c0_i32 = arith.constant 0 : i32
    %c0_i32_0 = arith.constant 0 : i32
    %c0_i32_1 = arith.constant 0 : i32
    return %arg0, %c0_i32, %c0_i32_0 : i32, i32, i32
  }
}

</mosaic_0001>

<llo_original>
// kernel: tpu_custom_call.1
$region0: #{tpu_custom_call.1}
  #allocation0 [shape = 'u32[]', space=smem, size = 0x4, offset = 0x4, fixed_abs, tag = 'smem constant byte address 0x4 - core index']
  #allocation1 [shape = 'u32[144,128]{1,0:T(1,128)}', space=vmem, size = 0x12000, scoped, tag = 'internal scratch']
  #allocation2 [shape = 'f32[60,512]{1,0:T(8,128)}', space=vmem, size = 0x20000, scoped, tag = 'scratch operand']
  #allocation3 [shape = 'f32[20,512]{1,0:T(8,128)}', space=vmem, size = 0xc000, scoped, tag = 'scratch operand']
  %s0 = inlined_call_operand.vmem [shape: f32[2,60,256], index: 0, kind: input, shape index: {}]
  %s1 = inlined_call_operand.vmem [shape: f32[2,256], index: 1, kind: input, shape index: {}]
  %s2 = inlined_call_operand.vmem [shape: f32[3,3,20,60], index: 2, kind: input, shape index: {}]
  %s3 = inlined_call_operand.vmem [shape: f32[20,1], index: 3, kind: input, shape index: {}]
  %s4 = inlined_call_operand.vmem [shape: f32[3,3,60,20], index: 4, kind: input, shape index: {}]
  %s5 = inlined_call_operand.vmem [shape: f32[60,1], index: 5, kind: input, shape index: {}]
  %s6 = inlined_call_operand.vmem [shape: f32[2,60], index: 6, kind: input, shape index: {}]
  %s7 = inlined_call_operand.vmem [shape: f32[2,1], index: 7, kind: input, shape index: {}]
  %s8 = inlined_call_operand.vmem [shape: f32[60,2], index: 8, kind: input, shape index: {}]
  %s9 = inlined_call_operand.vmem [shape: f32[60,1], index: 9, kind: input, shape index: {}]
  %s10 = inlined_call_operand.vmem [shape: f32[2,60,256], index: 10, kind: output, shape index: {}]
  %s11 = sld [smem:[#allocation0]]
  $region73: #{tpu_custom_call.1} parent=0
    _
  %s13 = ssub.s32 1, %s11
  %s14 = scalar_select 0, %s13, %s11
  loop: start=0, step=1, limit=4
  $region2: #{tpu_custom_call.1} parent=0 // loop_pre_header
    _
  $region3: #{tpu_custom_call.1} parent=0 // loop_header
    %s16 = sphi 0, %s20
    %p17 = scmp.ge.s32.totalorder %s16, 4
    %s26 = sphi 0, %s28
    %s29 = sphi 0, %s26
    %s30 = sphi 0, %s29
    %s46 = sphi 0, %s30
    %s50 = sphi 0, %s50
    %s52 = sphi 0, %s50
    %s53 = sphi 0, %s52
    %s67 = sphi 0, %s53
    %s71 = sphi 0, %s71
    %s73 = sphi 0, %s71
    %s74 = sphi 0, %s73
    %s88 = sphi 0, %s74
    %s92 = sphi 0, %s92
    %s94 = sphi 0, %s92
    %s95 = sphi 0, %s94
    %s109 = sphi 0, %s95
    %s113 = sphi 0, %s113
    %s115 = sphi 0, %s113
    %s116 = sphi 0, %s115
    %s130 = sphi 0, %s116
    %s134 = sphi 0, %s134
    %s136 = sphi 0, %s134
    %s137 = sphi 0, %s136
    %s151 = sphi 0, %s137
    %s155 = sphi 0, %s155
    %s157 = sphi 0, %s155
    %s158 = sphi 0, %s157
    %s172 = sphi 0, %s158
    %s176 = sphi 0, %s176
    %s178 = sphi 0, %s176
    %s179 = sphi 0, %s178
    %s193 = sphi 0, %s179
    %s197 = sphi 0, %s197
    %s199 = sphi 0, %s197
    %s200 = sphi 0, %s199
    %s214 = sphi 0, %s200
    %s218 = sphi 0, %s218
    %s220 = sphi 0, %s218
    %s221 = sphi 0, %s220
    %s235 = sphi 0, %s221
    %s241 = sphi 0, %s243
    %s244 = sphi 0, %s241
    %s245 = sphi 0, %s244
    %s261 = sphi 0, %s245
  $region4: #{tpu_custom_call.1} parent=0 // loop_header_branch
    %19 = sbr.rel (%p17) target = $region8
  $region5: #{tpu_custom_call.1} parent=0 // loop_body
    %s21 = ssub.s32 %s16, 1
    %s22 = ssub.s32 %s16, 2
    %s23 = sadd.s32 %s16, 1
    %s24 = ssub.s32 %s16, %s23
    %p25 = scmp.eq.s32.totalorder %s24, 0
    %s27 = sadd.s32 %s26, 1
    %s28 = scalar_select %p25, %s26, %s27
    %p31 = pneg %p25
    %p32 = scmp.eq.s32.totalorder %s16, 1
    %p33 = por %p31, %p32
    %p34 = scmp.ne.s32.totalorder %s26, %s29
    %p35 = scmp.eq.s32.totalorder %s16, 0
    %p36 = por %p34, %p35
    %p37 = scmp.ne.s32.totalorder %s26, %s29
    %p38 = scmp.eq.s32.totalorder %s21, 1
    %p39 = por %p37, %p38
    %p40 = scmp.ne.s32.totalorder %s29, %s30
    %p41 = scmp.eq.s32.totalorder %s21, 0
    %p42 = por %p40, %p41
    %p43 = scmp.ne.s32.totalorder %s29, %s30
    %p44 = scmp.eq.s32.totalorder %s22, 1
    %p45 = por %p43, %p44
    %p47 = scmp.ne.s32.totalorder %s30, %s46
    %p48 = scmp.eq.s32.totalorder %s22, 0
    %p49 = por %p47, %p48
    %s51 = sadd.s32 %s50, 1
    %p54 = scmp.eq.s32.totalorder %s16, 1
    %p55 = scmp.ne.s32.totalorder %s50, %s52
    %p56 = scmp.eq.s32.totalorder %s16, 0
    %p57 = por %p55, %p56
    %p58 = scmp.ne.s32.totalorder %s50, %s52
    %p59 = scmp.eq.s32.totalorder %s21, 1
    %p60 = por %p58, %p59
    %p61 = scmp.ne.s32.totalorder %s52, %s53
    %p62 = scmp.eq.s32.totalorder %s21, 0
    %p63 = por %p61, %p62
    %p64 = scmp.ne.s32.totalorder %s52, %s53
    %p65 = scmp.eq.s32.totalorder %s22, 1
    %p66 = por %p64, %p65
    %p68 = scmp.ne.s32.totalorder %s53, %s67
    %p69 = scmp.eq.s32.totalorder %s22, 0
    %p70 = por %p68, %p69
    %s72 = sadd.s32 %s71, 1
    %p75 = scmp.eq.s32.totalorder %s16, 1
    %p76 = scmp.ne.s32.totalorder %s71, %s73
    %p77 = scmp.eq.s32.totalorder %s16, 0
    %p78 = por %p76, %p77
    %p79 = scmp.ne.s32.totalorder %s71, %s73
    %p80 = scmp.eq.s32.totalorder %s21, 1
    %p81 = por %p79, %p80
    %p82 = scmp.ne.s32.totalorder %s73, %s74
    %p83 = scmp.eq.s32.totalorder %s21, 0
    %p84 = por %p82, %p83
    %p85 = scmp.ne.s32.totalorder %s73, %s74
    %p86 = scmp.eq.s32.totalorder %s22, 1
    %p87 = por %p85, %p86
    %p89 = scmp.ne.s32.totalorder %s74, %s88
    %p90 = scmp.eq.s32.totalorder %s22, 0
    %p91 = por %p89, %p90
    %s93 = sadd.s32 %s92, 1
    %p96 = scmp.eq.s32.totalorder %s16, 1
    %p97 = scmp.ne.s32.totalorder %s92, %s94
    %p98 = scmp.eq.s32.totalorder %s16, 0
    %p99 = por %p97, %p98
    %p100 = scmp.ne.s32.totalorder %s92, %s94
    %p101 = scmp.eq.s32.totalorder %s21, 1
    %p102 = por %p100, %p101
    %p103 = scmp.ne.s32.totalorder %s94, %s95
    %p104 = scmp.eq.s32.totalorder %s21, 0
    %p105 = por %p103, %p104
    %p106 = scmp.ne.s32.totalorder %s94, %s95
    %p107 = scmp.eq.s32.totalorder %s22, 1
    %p108 = por %p106, %p107
    %p110 = scmp.ne.s32.totalorder %s95, %s109
    %p111 = scmp.eq.s32.totalorder %s22, 0
    %p112 = por %p110, %p111
    %s114 = sadd.s32 %s113, 1
    %p117 = scmp.eq.s32.totalorder %s16, 1
    %p118 = scmp.ne.s32.totalorder %s113, %s115
    %p119 = scmp.eq.s32.totalorder %s16, 0
    %p120 = por %p118, %p119
    %p121 = scmp.ne.s32.totalorder %s113, %s115
    %p122 = scmp.eq.s32.totalorder %s21, 1
    %p123 = por %p121, %p122
    %p124 = scmp.ne.s32.totalorder %s115, %s116
    %p125 = scmp.eq.s32.totalorder %s21, 0
    %p126 = por %p124, %p125
    %p127 = scmp.ne.s32.totalorder %s115, %s116
    %p128 = scmp.eq.s32.totalorder %s22, 1
    %p129 = por %p127, %p128
    %p131 = scmp.ne.s32.totalorder %s116, %s130
    %p132 = scmp.eq.s32.totalorder %s22, 0
    %p133 = por %p131, %p132
    %s135 = sadd.s32 %s134, 1
    %p138 = scmp.eq.s32.totalorder %s16, 1
    %p139 = scmp.ne.s32.totalorder %s134, %s136
    %p140 = scmp.eq.s32.totalorder %s16, 0
    %p141 = por %p139, %p140
    %p142 = scmp.ne.s32.totalorder %s134, %s136
    %p143 = scmp.eq.s32.totalorder %s21, 1
    %p144 = por %p142, %p143
    %p145 = scmp.ne.s32.totalorder %s136, %s137
    %p146 = scmp.eq.s32.totalorder %s21, 0
    %p147 = por %p145, %p146
    %p148 = scmp.ne.s32.totalorder %s136, %s137
    %p149 = scmp.eq.s32.totalorder %s22, 1
    %p150 = por %p148, %p149
    %p152 = scmp.ne.s32.totalorder %s137, %s151
    %p153 = scmp.eq.s32.totalorder %s22, 0
    %p154 = por %p152, %p153
    %s156 = sadd.s32 %s155, 1
    %p159 = scmp.eq.s32.totalorder %s16, 1
    %p160 = scmp.ne.s32.totalorder %s155, %s157
    %p161 = scmp.eq.s32.totalorder %s16, 0
    %p162 = por %p160, %p161
    %p163 = scmp.ne.s32.totalorder %s155, %s157
    %p164 = scmp.eq.s32.totalorder %s21, 1
    %p165 = por %p163, %p164
    %p166 = scmp.ne.s32.totalorder %s157, %s158
    %p167 = scmp.eq.s32.totalorder %s21, 0
    %p168 = por %p166, %p167
    %p169 = scmp.ne.s32.totalorder %s157, %s158
    %p170 = scmp.eq.s32.totalorder %s22, 1
    %p171 = por %p169, %p170
    %p173 = scmp.ne.s32.totalorder %s158, %s172
    %p174 = scmp.eq.s32.totalorder %s22, 0
    %p175 = por %p173, %p174
    %s177 = sadd.s32 %s176, 1
    %p180 = scmp.eq.s32.totalorder %s16, 1
    %p181 = scmp.ne.s32.totalorder %s176, %s178
    %p182 = scmp.eq.s32.totalorder %s16, 0
    %p183 = por %p181, %p182
    %p184 = scmp.ne.s32.totalorder %s176, %s178
    %p185 = scmp.eq.s32.totalorder %s21, 1
    %p186 = por %p184, %p185
    %p187 = scmp.ne.s32.totalorder %s178, %s179
    %p188 = scmp.eq.s32.totalorder %s21, 0
    %p189 = por %p187, %p188
    %p190 = scmp.ne.s32.totalorder %s178, %s179
    %p191 = scmp.eq.s32.totalorder %s22, 1
    %p192 = por %p190, %p191
    %p194 = scmp.ne.s32.totalorder %s179, %s193
    %p195 = scmp.eq.s32.totalorder %s22, 0
    %p196 = por %p194, %p195
    %s198 = sadd.s32 %s197, 1
    %p201 = scmp.eq.s32.totalorder %s16, 1
    %p202 = scmp.ne.s32.totalorder %s197, %s199
    %p203 = scmp.eq.s32.totalorder %s16, 0
    %p204 = por %p202, %p203
    %p205 = scmp.ne.s32.totalorder %s197, %s199
    %p206 = scmp.eq.s32.totalorder %s21, 1
    %p207 = por %p205, %p206
    %p208 = scmp.ne.s32.totalorder %s199, %s200
    %p209 = scmp.eq.s32.totalorder %s21, 0
    %p210 = por %p208, %p209
    %p211 = scmp.ne.s32.totalorder %s199, %s200
    %p212 = scmp.eq.s32.totalorder %s22, 1
    %p213 = por %p211, %p212
    %p215 = scmp.ne.s32.totalorder %s200, %s214
    %p216 = scmp.eq.s32.totalorder %s22, 0
    %p217 = por %p215, %p216
    %s219 = sadd.s32 %s218, 1
    %p222 = scmp.eq.s32.totalorder %s16, 1
    %p223 = scmp.ne.s32.totalorder %s218, %s220
    %p224 = scmp.eq.s32.totalorder %s16, 0
    %p225 = por %p223, %p224
    %p226 = scmp.ne.s32.totalorder %s218, %s220
    %p227 = scmp.eq.s32.totalorder %s21, 1
    %p228 = por %p226, %p227
    %p229 = scmp.ne.s32.totalorder %s220, %s221
    %p230 = scmp.eq.s32.totalorder %s21, 0
    %p231 = por %p229, %p230
    %p232 = scmp.ne.s32.totalorder %s220, %s221
    %p233 = scmp.eq.s32.totalorder %s22, 1
    %p234 = por %p232, %p233
    %p236 = scmp.ne.s32.totalorder %s221, %s235
    %p237 = scmp.eq.s32.totalorder %s22, 0
    %p238 = por %p236, %p237
    %s239 = ssub.s32 %s16, %s23
    %p240 = scmp.eq.s32.totalorder %s239, 0
    %s242 = sadd.s32 %s241, 1
    %s243 = scalar_select %p240, %s241, %s242
    %p246 = pneg %p240
    %p247 = scmp.eq.s32.totalorder %s16, 1
    %p248 = por %p246, %p247
    %p249 = scmp.ne.s32.totalorder %s241, %s244
    %p250 = scmp.eq.s32.totalorder %s16, 0
    %p251 = por %p249, %p250
    %p252 = scmp.ne.s32.totalorder %s241, %s244
    %p253 = scmp.eq.s32.totalorder %s21, 1
    %p254 = por %p252, %p253
    %p255 = scmp.ne.s32.totalorder %s244, %s245
    %p256 = scmp.eq.s32.totalorder %s21, 0
    %p257 = por %p255, %p256
    %p258 = scmp.ne.s32.totalorder %s244, %s245
    %p259 = scmp.eq.s32.totalorder %s22, 1
    %p260 = por %p258, %p259
    %p262 = scmp.ne.s32.totalorder %s245, %s261
    %p263 = scmp.eq.s32.totalorder %s22, 0
    %p264 = por %p262, %p263
    %p265 = scmp.le.s32.totalorder 1, %s16
    %p266 = scmp.lt.s32.totalorder %s16, 3
    %p267 = pnand %p265, %p266
    %p268 = pneg %p267
    // Predicated region
    $region9: #{tpu_custom_call.1} parent=5 // pred_check
      _
    $region10: #{tpu_custom_call.1} parent=5 // pred_check_branch
      %270 = sbr.rel (%p267) target = $region12
    $region11: #{tpu_custom_call.1} parent=5 // pred_region
      %s271 = ssub.s32 %s16, 1
      // Predicated region
      $region13: #{tpu_custom_call.1} parent=11 // pred_check
        %p272 = pneg %p63
      $region14: #{tpu_custom_call.1} parent=11 // pred_check_branch
        %274 = sbr.rel (%p272) target = $region16
      $region15: #{tpu_custom_call.1} parent=11 // pred_region
        _
      $region16: #{tpu_custom_call.1} parent=11 // pred_fallthru
        _
      // Predicated region
      $region17: #{tpu_custom_call.1} parent=11 // pred_check
        %p275 = pneg %p84
      $region18: #{tpu_custom_call.1} parent=11 // pred_check_branch
        %277 = sbr.rel (%p275) target = $region20
      $region19: #{tpu_custom_call.1} parent=11 // pred_region
        _
      $region20: #{tpu_custom_call.1} parent=11 // pred_fallthru
        _
      // Predicated region
      $region21: #{tpu_custom_call.1} parent=11 // pred_check
        %p278 = pneg %p105
      $region22: #{tpu_custom_call.1} parent=11 // pred_check_branch
        %280 = sbr.rel (%p278) target = $region24
      $region23: #{tpu_custom_call.1} parent=11 // pred_region
        _
      $region24: #{tpu_custom_call.1} parent=11 // pred_fallthru
        _
      // Predicated region
      $region25: #{tpu_custom_call.1} parent=11 // pred_check
        %p281 = pneg %p126
      $region26: #{tpu_custom_call.1} parent=11 // pred_check_branch
        %283 = sbr.rel (%p281) target = $region28
      $region27: #{tpu_custom_call.1} parent=11 // pred_region
        _
      $region28: #{tpu_custom_call.1} parent=11 // pred_fallthru
        _
      // Predicated region
      $region29: #{tpu_custom_call.1} parent=11 // pred_check
        %p284 = pneg %p147
      $region30: #{tpu_custom_call.1} parent=11 // pred_check_branch
        %286 = sbr.rel (%p284) target = $region32
      $region31: #{tpu_custom_call.1} parent=11 // pred_region
        _
      $region32: #{tpu_custom_call.1} parent=11 // pred_fallthru
        _
      // Predicated region
      $region33: #{tpu_custom_call.1} parent=11 // pred_check
        %p287 = pneg %p168
      $region34: #{tpu_custom_call.1} parent=11 // pred_check_branch
        %289 = sbr.rel (%p287) target = $region36
      $region35: #{tpu_custom_call.1} parent=11 // pred_region
        _
      $region36: #{tpu_custom_call.1} parent=11 // pred_fallthru
        _
      // Predicated region
      $region37: #{tpu_custom_call.1} parent=11 // pred_check
        %p290 = pneg %p189
      $region38: #{tpu_custom_call.1} parent=11 // pred_check_branch
        %292 = sbr.rel (%p290) target = $region40
      $region39: #{tpu_custom_call.1} parent=11 // pred_region
        _
      $region40: #{tpu_custom_call.1} parent=11 // pred_fallthru
        _
      // Predicated region
      $region41: #{tpu_custom_call.1} parent=11 // pred_check
        %p293 = pneg %p210
      $region42: #{tpu_custom_call.1} parent=11 // pred_check_branch
        %295 = sbr.rel (%p293) target = $region44
      $region43: #{tpu_custom_call.1} parent=11 // pred_region
        _
      $region44: #{tpu_custom_call.1} parent=11 // pred_fallthru
        _
      // Predicated region
      $region45: #{tpu_custom_call.1} parent=11 // pred_check
        %p296 = pneg %p231
      $region46: #{tpu_custom_call.1} parent=11 // pred_check_branch
        %298 = sbr.rel (%p296) target = $region48
      $region47: #{tpu_custom_call.1} parent=11 // pred_region
        _
      $region48: #{tpu_custom_call.1} parent=11 // pred_fallthru
        _
    $region12: #{tpu_custom_call.1} parent=5 // pred_fallthru
      _
    %p299 = scmp.lt.s32.totalorder %s16, 2
    // Predicated region
    $region49: #{tpu_custom_call.1} parent=5 // pred_check
      %p300 = pneg %p299
    $region50: #{tpu_custom_call.1} parent=5 // pred_check_branch
      %302 = sbr.rel (%p300) target = $region52
    $region51: #{tpu_custom_call.1} parent=5 // pred_region
      // Predicated region
      $region53: #{tpu_custom_call.1} parent=51 // pred_check
        %p303 = pneg %p36
      $region54: #{tpu_custom_call.1} parent=51 // pred_check_branch
        %305 = sbr.rel (%p303) target = $region56
      $region55: #{tpu_custom_call.1} parent=51 // pred_region
        %p306 = scmp.lt.s32.totalorder %s16, 1
        %s307 = scalar_select %p306, %s16, 1
        %s308 = smul.addr %s307, 16
        %s309 = smul.addr %s308, 8
        %s310 = scalar_lea.vmem %s0, %s309
      $region56: #{tpu_custom_call.1} parent=51 // pred_fallthru
        _
    $region52: #{tpu_custom_call.1} parent=5 // pred_fallthru
      _
    %p311 = scmp.le.s32.totalorder 1, %s16
    %p312 = scmp.lt.s32.totalorder %s16, 3
    %p313 = pnand %p311, %p312
    %p314 = pneg %p313
    // Predicated region
    $region57: #{tpu_custom_call.1} parent=5 // pred_check
      _
    $region58: #{tpu_custom_call.1} parent=5 // pred_check_branch
      %316 = sbr.rel (%p313) target = $region60
    $region59: #{tpu_custom_call.1} parent=5 // pred_region
      %s317 = ssub.s32 %s16, 1
      %p318 = scmp.lt.s32.totalorder %s21, 1
      %s319 = scalar_select %p318, %s21, 1
      %s320 = smul.addr %s319, 16
      %s321 = smul.addr %s320, 8
      %s322 = scalar_lea.vmem %s0, %s321
      %p323 = pneg %p42
      %p324 = pneg %p39
      %p325 = pneg %p63
      %p326 = pneg %p60
      %p327 = pneg %p84
      %p328 = pneg %p81
      %p329 = pneg %p105
      %p330 = pneg %p102
      %p331 = pneg %p126
      %p332 = pneg %p123
      %p333 = pneg %p147
      %p334 = pneg %p144
      %p335 = pneg %p168
      %p336 = pneg %p165
      %p337 = pneg %p189
      %p338 = pneg %p186
      %p339 = pneg %p210
      %p340 = pneg %p207
      %p341 = pneg %p231
      %p342 = pneg %p228
      %p343 = pneg %p257
      %p344 = pneg %p254
      %p345 = scmp.lt.s32.totalorder %s21, 1
      %s346 = scalar_select %p345, %s21, 1
      %s347 = smul.addr %s346, 16
      %s348 = smul.addr %s347, 8
      %s349 = scalar_lea.vmem %s10, %s348
      %p350 = scmp.lt.s32.totalorder %s21, 1
      %s351 = scalar_select %p350, %s21, 1
      %s352 = smul.addr %s351, 16
      %s353 = smul.addr %s352, 8
      %s354 = scalar_lea.vmem %s0, %s353
      %p355 = scmp.lt.s32.totalorder %s21, 1
      %s356 = scalar_select %p355, %s21, 1
      %s357 = smul.addr %s356, 16
      %s358 = smul.addr %s357, 8
      %s359 = scalar_lea.vmem %s10, %s358
      %360 = vst [vmem:[#allocation2] sm:$0xff] 0.0
      %361 = vst [vmem:[#allocation2 + $0x20] sm:$0xff] 0.0
      %362 = vst [vmem:[#allocation2 + $0x40] sm:$0xff] 0.0
      %363 = vst [vmem:[#allocation2 + $0x60] sm:$0xff] 0.0
      %364 = vst [vmem:[#allocation2 + $0x80] sm:$0xff] 0.0
      %365 = vst [vmem:[#allocation2 + $0xa0] sm:$0xff] 0.0
      %366 = vst [vmem:[#allocation2 + $0xc0] sm:$0xff] 0.0
      %367 = vst [vmem:[#allocation2 + $0xe0] sm:$0xf] 0.0
      %368 = vst [vmem:[#allocation2 + $0x18] sm:$0xff] 0.0
      %369 = vst [vmem:[#allocation2 + $0x38] sm:$0xff] 0.0
      %370 = vst [vmem:[#allocation2 + $0x58] sm:$0xff] 0.0
      %371 = vst [vmem:[#allocation2 + $0x78] sm:$0xff] 0.0
      %372 = vst [vmem:[#allocation2 + $0x98] sm:$0xff] 0.0
      %373 = vst [vmem:[#allocation2 + $0xb8] sm:$0xff] 0.0
      %374 = vst [vmem:[#allocation2 + $0xd8] sm:$0xff] 0.0
      %375 = vst [vmem:[#allocation2 + $0xf8] sm:$0xf] 0.0
      %376 = vst [vmem:[#allocation3] sm:$0xff] 0.0
      %377 = vst [vmem:[#allocation3 + $0x20] sm:$0xff] 0.0
      %378 = vst [vmem:[#allocation3 + $0x40] sm:$0xf] 0.0
      %379 = vst [vmem:[#allocation3 + $0x18] sm:$0xff] 0.0
      %380 = vst [vmem:[#allocation3 + $0x38] sm:$0xff] 0.0
      %381 = vst [vmem:[#allocation3 + $0x58] sm:$0xf] 0.0
      %v382 = vld [vmem:[%s354] sm:$0xff]
      %v383 = vld [vmem:[%s354 + $0x8] sm:$0xff]
      %v384 = vld [vmem:[%s354 + $0x10] sm:$0xff]
      %v385 = vld [vmem:[%s354 + $0x18] sm:$0xff]
      %v386 = vld [vmem:[%s354 + $0x20] sm:$0xff]
      %v387 = vld [vmem:[%s354 + $0x28] sm:$0xff]
      %v388 = vld [vmem:[%s354 + $0x30] sm:$0xff]
      %v389 = vld [vmem:[%s354 + $0x38] sm:$0xff]
      %v390 = vld [vmem:[%s354 + $0x40] sm:$0xff]
      %v391 = vld [vmem:[%s354 + $0x48] sm:$0xff]
      %v392 = vld [vmem:[%s354 + $0x50] sm:$0xff]
      %v393 = vld [vmem:[%s354 + $0x58] sm:$0xff]
      %v394 = vld [vmem:[%s354 + $0x60] sm:$0xff]
      %v395 = vld [vmem:[%s354 + $0x68] sm:$0xff]
      %v396 = vld [vmem:[%s354 + $0x70] sm:$0xf]
      %v397 = vld [vmem:[%s354 + $0x78] sm:$0xf]
      %398 = vst [vmem:[#allocation2 + $0x8] sm:$0xff] %v382
      %399 = vst [vmem:[#allocation2 + $0x10] sm:$0xff] %v383
      %400 = vst [vmem:[#allocation2 + $0x28] sm:$0xff] %v384
      %401 = vst [vmem:[#allocation2 + $0x30] sm:$0xff] %v385
      %402 = vst [vmem:[#allocation2 + $0x48] sm:$0xff] %v386
      %403 = vst [vmem:[#allocation2 + $0x50] sm:$0xff] %v387
      %404 = vst [vmem:[#allocation2 + $0x68] sm:$0xff] %v388
      %405 = vst [vmem:[#allocation2 + $0x70] sm:$0xff] %v389
      %406 = vst [vmem:[#allocation2 + $0x88] sm:$0xff] %v390
      %407 = vst [vmem:[#allocation2 + $0x90] sm:$0xff] %v391
      %408 = vst [vmem:[#allocation2 + $0xa8] sm:$0xff] %v392
      %409 = vst [vmem:[#allocation2 + $0xb0] sm:$0xff] %v393
      %410 = vst [vmem:[#allocation2 + $0xc8] sm:$0xff] %v394
      %411 = vst [vmem:[#allocation2 + $0xd0] sm:$0xff] %v395
      %412 = vst [vmem:[#allocation2 + $0xe8] sm:$0xf] %v396
      %413 = vst [vmem:[#allocation2 + $0xf0] sm:$0xf] %v397
      %v414 = vld [vmem:[%s1] ss:$2 sm:$0x3]
      %s415 = scalar_lea.vmem %s1, 1
      %v416 = vld [vmem:[%s415] ss:$2 sm:$0x3]
      %v417 = vld [vmem:[#allocation2] sm:$0xff]
      %v418 = vld [vmem:[#allocation2 + $0x8] sm:$0xff]
      %v419 = vld [vmem:[#allocation2 + $0x10] sm:$0xff]
      %v420 = vld [vmem:[#allocation2 + $0x20] sm:$0xff]
      %v421 = vld [vmem:[#allocation2 + $0x28] sm:$0xff]
      %v422 = vld [vmem:[#allocation2 + $0x30] sm:$0xff]
      %v423 = vld [vmem:[#allocation2 + $0x40] sm:$0xff]
      %v424 = vld [vmem:[#allocation2 + $0x48] sm:$0xff]
      %v425 = vld [vmem:[#allocation2 + $0x50] sm:$0xff]
      %v426 = vld [vmem:[#allocation2 + $0x60] sm:$0xff]
      %v427 = vld [vmem:[#allocation2 + $0x68] sm:$0xff]
      %v428 = vld [vmem:[#allocation2 + $0x70] sm:$0xff]
      %v429 = vld [vmem:[#allocation2 + $0x80] sm:$0xff]
      %v430 = vld [vmem:[#allocation2 + $0x88] sm:$0xff]
      %v431 = vld [vmem:[#allocation2 + $0x90] sm:$0xff]
      %v432 = vld [vmem:[#allocation2 + $0xa0] sm:$0xff]
      %v433 = vld [vmem:[#allocation2 + $0xa8] sm:$0xff]
      %v434 = vld [vmem:[#allocation2 + $0xb0] sm:$0xff]
      %v435 = vld [vmem:[#allocation2 + $0xc0] sm:$0xff]
      %v436 = vld [vmem:[#allocation2 + $0xc8] sm:$0xff]
      %v437 = vld [vmem:[#allocation2 + $0xd0] sm:$0xff]
      %v438 = vld [vmem:[#allocation2 + $0xe0] sm:$0xf]
      %v439 = vld [vmem:[#allocation2 + $0xe8] sm:$0xf]
      %v440 = vld [vmem:[#allocation2 + $0xf0] sm:$0xf]
      %v441 = vld [vmem:[%s2] sm:$0xff]
      %v442 = vld [vmem:[%s2 + $0x8] sm:$0xff]
      %v443 = vld [vmem:[%s2 + $0x10] sm:$0xf]
      %468 = vrot.lane.b32.xlu0 %v417, 17
      %v469 = vpop.permute.xlu0 %468
      %470 = vrot.lane.b32.xlu0 %v418, 17
      %v471 = vpop.permute.xlu0 %470
      %472 = vrot.lane.b32.xlu0 %v419, 17
      %v473 = vpop.permute.xlu0 %472
      %474 = vrot.lane.b32.xlu0 %v420, 17
      %v475 = vpop.permute.xlu0 %474
      %476 = vrot.lane.b32.xlu0 %v421, 17
      %v477 = vpop.permute.xlu0 %476
      %478 = vrot.lane.b32.xlu0 %v422, 17
      %v479 = vpop.permute.xlu0 %478
      %480 = vrot.lane.b32.xlu0 %v423, 17
      %v481 = vpop.permute.xlu0 %480
      %482 = vrot.lane.b32.xlu0 %v424, 17
      %v483 = vpop.permute.xlu0 %482
      %484 = vrot.lane.b32.xlu0 %v425, 17
      %v485 = vpop.permute.xlu0 %484
      %486 = vrot.lane.b32.xlu0 %v426, 17
      %v487 = vpop.permute.xlu0 %486
      %488 = vrot.lane.b32.xlu0 %v427, 17
      %v489 = vpop.permute.xlu0 %488
      %490 = vrot.lane.b32.xlu0 %v428, 17
      %v491 = vpop.permute.xlu0 %490
      %492 = vrot.lane.b32.xlu0 %v429, 17
      %v493 = vpop.permute.xlu0 %492
      %494 = vrot.lane.b32.xlu0 %v430, 17
      %v495 = vpop.permute.xlu0 %494
      %496 = vrot.lane.b32.xlu0 %v431, 17
      %v497 = vpop.permute.xlu0 %496
      %498 = vrot.lane.b32.xlu0 %v432, 17
      %v499 = vpop.permute.xlu0 %498
      %500 = vrot.lane.b32.xlu0 %v433, 17
      %v501 = vpop.permute.xlu0 %500
      %502 = vrot.lane.b32.xlu0 %v434, 17
      %v503 = vpop.permute.xlu0 %502
      %504 = vrot.lane.b32.xlu0 %v435, 17
      %v505 = vpop.permute.xlu0 %504
      %506 = vrot.lane.b32.xlu0 %v436, 17
      %v507 = vpop.permute.xlu0 %506
      %508 = vrot.lane.b32.xlu0 %v437, 17
      %v509 = vpop.permute.xlu0 %508
      %510 = vrot.lane.b32.xlu0 %v438, 17
      %v511 = vpop.permute.xlu0 %510
      %512 = vrot.lane.b32.xlu0 %v439, 17
      %v513 = vpop.permute.xlu0 %512
      %514 = vrot.lane.b32.xlu0 %v440, 17
      %v515 = vpop.permute.xlu0 %514
      %vm516 = vcmask 138240
      %v517 = vsel %vm516, %v469, %v471
      %v518 = vsel %vm516, %v471, %v473
      %v519 = vsel %vm516, %v475, %v477
      %v520 = vsel %vm516, %v477, %v479
      %v521 = vsel %vm516, %v481, %v483
      %v522 = vsel %vm516, %v483, %v485
      %v523 = vsel %vm516, %v487, %v489
      %v524 = vsel %vm516, %v489, %v491
      %v525 = vsel %vm516, %v493, %v495
      %v526 = vsel %vm516, %v495, %v497
      %v527 = vsel %vm516, %v499, %v501
      %v528 = vsel %vm516, %v501, %v503
      %v529 = vsel %vm516, %v505, %v507
      %v530 = vsel %vm516, %v507, %v509
      %v531 = vsel %vm516, %v511, %v513
      %v532 = vsel %vm516, %v513, %v515
      %vm547 = vcmask 490496
      %v549 = vsel %vm547, %v441, 0
      %v552 = vsel %vm547, %v442, 0
      %v555 = vsel %vm547, %v443, 0
      %vm557 = vcmask 1043456
      %v558 = vsel %vm557, %v531, 0
      %v560 = vsel %vm557, %v532, 0
      %562 = vmatprep.subr.mxu0 0.0
      %563 = vmatpush1.msra.mxu0 0.0
      %564 = vmatprep.subr.mxu0 0.0
      %565 = vmatpush1.msra.mxu0 0.0
      %566 = vmatprep.subr.mxu0 0.0
      %567 = vmatpush1.msra.mxu0 0.0
      %568 = vmatprep.subr.mxu0 0.0
      %569 = vmatpush1.msra.mxu0 0.0
      %570 = vmatprep.subr.mxu0 0.0
      %571 = vmatpush1.msra.mxu0 0.0
      %572 = vmatprep.subr.mxu0 0.0
      %573 = vmatpush1.msra.mxu0 0.0
      %574 = vmatprep.subr.mxu0 0.0
      %575 = vmatpush1.msra.mxu0 0.0
      %576 = vmatprep.subr.mxu0 0.0
      %577 = vmatpush1.msra.mxu0 0.0
      %578 = vmatprep.subr.mxu0 %v560
      %579 = vmatpush1.msra.mxu0 %v558
      %580 = vmatprep.subr.mxu0 %v530
      %581 = vmatpush1.msra.mxu0 %v529
      %582 = vmatprep.subr.mxu0 %v528
      %583 = vmatpush1.msra.mxu0 %v527
      %584 = vmatprep.subr.mxu0 %v526
      %585 = vmatpush1.msra.mxu0 %v525
      %586 = vmatprep.subr.mxu0 %v524
      %587 = vmatpush1.msra.mxu0 %v523
      %588 = vmatprep.subr.mxu0 %v522
      %589 = vmatpush1.msra.mxu0 %v521
      %590 = vmatprep.subr.mxu0 %v520
      %591 = vmatpush1.msra.mxu0 %v519
      %592 = vmatprep.subr.mxu0 %v518
      %593 = vmatpush1.msra.mxu0 %v517
      %594 = vmatprep.subr.mxu0 0.0
      %595 = vmatpush2.msra.mxu0 0.0
      %596 = vmatprep.subr.mxu0 0.0
      %597 = vmatpush2.msra.mxu0 0.0
      %598 = vmatprep.subr.mxu0 0.0
      %599 = vmatpush2.msra.mxu0 0.0
      %600 = vmatprep.subr.mxu0 0.0
      %601 = vmatpush2.msra.mxu0 0.0
      %602 = vmatprep.subr.mxu0 0.0
      %603 = vmatpush2.msra.mxu0 0.0
      %604 = vmatprep.subr.mxu0 0.0
      %605 = vmatpush2.msra.mxu0 0.0
      %606 = vmatprep.subr.mxu0 0.0
      %607 = vmatpush2.msra.mxu0 0.0
      %608 = vmatprep.subr.mxu0 0.0
      %609 = vmatpush2.msra.mxu0 0.0
      %610 = vmatprep.subr.mxu0 0.0
      %611 = vmatpush2.msra.mxu0 0.0
      %612 = vmatprep.subr.mxu0 0.0
      %613 = vmatpush2.msra.mxu0 0.0
      %614 = vmatprep.subr.mxu0 0.0
      %615 = vmatpush2.msra.mxu0 0.0
      %616 = vmatprep.subr.mxu0 0.0
      %617 = vmatpush2.msra.mxu0 0.0
      %618 = vmatprep.subr.mxu0 0.0
      %619 = vmatpush2.msra.mxu0 0.0
      %620 = vmatprep.subr.mxu0 0.0
      %621 = vmatpush2.msra.mxu0 0.0
      %622 = vmatprep.subr.mxu0 0.0
      %623 = vmatpush2.msra.mxu0 0.0
      %624 = vmatprep.subr.mxu0 0.0
      %625 = vmatpush2.msra.mxu0 0.0
      %626 = vmatprep.mubr.f32.mxu0 0.0
      %627 = vmatmul.mubr.f32.gmra.mxu0 %v549
      %v628 = vpop.f32.mrf.mxu0
      %v629 = vadd.f32 0.0, %v628
      %v630 = vpop.f32.mrf.mxu0
      %v631 = vadd.f32 0.0, %v630
      %632 = vmatprep.mubr.f32.mxu0 0.0
      %633 = vmatmul.mubr.f32.gmra.mxu0 %v552
      %v634 = vpop.f32.mrf.mxu0
      %v635 = vadd.f32 0.0, %v634
      %v636 = vpop.f32.mrf.mxu0
      %v637 = vadd.f32 0.0, %v636
      %638 = vmatprep.mubr.f32.mxu0 0.0
      %639 = vmatmul.mubr.f32.gmra.mxu0 %v555
      %v640 = vpop.f32.mrf.mxu0
      %v641 = vadd.f32 0.0, %v640
      %v642 = vpop.f32.mrf.mxu0
      %v643 = vadd.f32 0.0, %v642
      %644 = vdwg.mxu0
      %v646 = vlaneseq
      %v647 = vshrl.u32 %v646, 7
      %v648 = vsub.s32 0, %v647
      %v649 = vrot.slane %v414, %v648
      %v650 = vlaneseq
      %v651 = vshrl.u32 %v650, 7
      %v652 = vsub.s32 1, %v651
      %v653 = vrot.slane %v414, %v652
      %v656 = vmul.f32 %v629, %v649
      %v657 = vmul.f32 %v631, %v653
      %v658 = vmul.f32 %v635, %v649
      %v659 = vmul.f32 %v637, %v653
      %v660 = vmul.f32 %v641, %v649
      %v661 = vmul.f32 %v643, %v653
      %s662 = scalar_lea.vmem %s2, 24
      %v663 = vld [vmem:[%s662] sm:$0xff]
      %v664 = vld [vmem:[%s662 + $0x8] sm:$0xff]
      %v665 = vld [vmem:[%s662 + $0x10] sm:$0xf]
      %666 = vrot.lane.b32.xlu0 %v417, 16
      %v667 = vpop.permute.xlu0 %666
      %668 = vrot.lane.b32.xlu0 %v418, 16
      %v669 = vpop.permute.xlu0 %668
      %670 = vrot.lane.b32.xlu0 %v419, 16
      %v671 = vpop.permute.xlu0 %670
      %672 = vrot.lane.b32.xlu0 %v420, 16
      %v673 = vpop.permute.xlu0 %672
      %674 = vrot.lane.b32.xlu0 %v421, 16
      %v675 = vpop.permute.xlu0 %674
      %676 = vrot.lane.b32.xlu0 %v422, 16
      %v677 = vpop.permute.xlu0 %676
      %678 = vrot.lane.b32.xlu0 %v423, 16
      %v679 = vpop.permute.xlu0 %678
      %680 = vrot.lane.b32.xlu0 %v424, 16
      %v681 = vpop.permute.xlu0 %680
      %682 = vrot.lane.b32.xlu0 %v425, 16
      %v683 = vpop.permute.xlu0 %682
      %684 = vrot.lane.b32.xlu0 %v426, 16
      %v685 = vpop.permute.xlu0 %684
      %686 = vrot.lane.b32.xlu0 %v427, 16
      %v687 = vpop.permute.xlu0 %686
      %688 = vrot.lane.b32.xlu0 %v428, 16
      %v689 = vpop.permute.xlu0 %688
      %690 = vrot.lane.b32.xlu0 %v429, 16
      %v691 = vpop.permute.xlu0 %690
      %692 = vrot.lane.b32.xlu0 %v430, 16
      %v693 = vpop.permute.xlu0 %692
      %694 = vrot.lane.b32.xlu0 %v431, 16
      %v695 = vpop.permute.xlu0 %694
      %696 = vrot.lane.b32.xlu0 %v432, 16
      %v697 = vpop.permute.xlu0 %696
      %698 = vrot.lane.b32.xlu0 %v433, 16
      %v699 = vpop.permute.xlu0 %698
      %700 = vrot.lane.b32.xlu0 %v434, 16
      %v701 = vpop.permute.xlu0 %700
      %702 = vrot.lane.b32.xlu0 %v435, 16
      %v703 = vpop.permute.xlu0 %702
      %704 = vrot.lane.b32.xlu0 %v436, 16
      %v705 = vpop.permute.xlu0 %704
      %706 = vrot.lane.b32.xlu0 %v437, 16
      %v707 = vpop.permute.xlu0 %706
      %708 = vrot.lane.b32.xlu0 %v438, 16
      %v709 = vpop.permute.xlu0 %708
      %710 = vrot.lane.b32.xlu0 %v439, 16
      %v711 = vpop.permute.xlu0 %710
      %712 = vrot.lane.b32.xlu0 %v440, 16
      %v713 = vpop.permute.xlu0 %712
      %vm714 = vcmask 130048
      %v715 = vsel %vm714, %v667, %v669
      %v716 = vsel %vm714, %v669, %v671
      %v717 = vsel %vm714, %v673, %v675
      %v718 = vsel %vm714, %v675, %v677
      %v719 = vsel %vm714, %v679, %v681
      %v720 = vsel %vm714, %v681, %v683
      %v721 = vsel %vm714, %v685, %v687
      %v722 = vsel %vm714, %v687, %v689
      %v723 = vsel %vm714, %v691, %v693
      %v724 = vsel %vm714, %v693, %v695
      %v725 = vsel %vm714, %v697, %v699
      %v726 = vsel %vm714, %v699, %v701
      %v727 = vsel %vm714, %v703, %v705
      %v728 = vsel %vm714, %v705, %v707
      %v729 = vsel %vm714, %v709, %v711
      %v730 = vsel %vm714, %v711, %v713
      %v746 = vsel %vm547, %v663, 0
      %v749 = vsel %vm547, %v664, 0
      %v752 = vsel %vm547, %v665, 0
      %v754 = vsel %vm557, %v729, 0
      %v756 = vsel %vm557, %v730, 0
      %758 = vmatprep.subr.mxu0 0.0
      %759 = vmatpush1.msra.mxu0 0.0
      %760 = vmatprep.subr.mxu0 0.0
      %761 = vmatpush1.msra.mxu0 0.0
      %762 = vmatprep.subr.mxu0 0.0
      %763 = vmatpush1.msra.mxu0 0.0
      %764 = vmatprep.subr.mxu0 0.0
      %765 = vmatpush1.msra.mxu0 0.0
      %766 = vmatprep.subr.mxu0 0.0
      %767 = vmatpush1.msra.mxu0 0.0
      %768 = vmatprep.subr.mxu0 0.0
      %769 = vmatpush1.msra.mxu0 0.0
      %770 = vmatprep.subr.mxu0 0.0
      %771 = vmatpush1.msra.mxu0 0.0
      %772 = vmatprep.subr.mxu0 0.0
      %773 = vmatpush1.msra.mxu0 0.0
      %774 = vmatprep.subr.mxu0 %v756
      %775 = vmatpush1.msra.mxu0 %v754
      %776 = vmatprep.subr.mxu0 %v728
      %777 = vmatpush1.msra.mxu0 %v727
      %778 = vmatprep.subr.mxu0 %v726
      %779 = vmatpush1.msra.mxu0 %v725
      %780 = vmatprep.subr.mxu0 %v724
      %781 = vmatpush1.msra.mxu0 %v723
      %782 = vmatprep.subr.mxu0 %v722
      %783 = vmatpush1.msra.mxu0 %v721
      %784 = vmatprep.subr.mxu0 %v720
      %785 = vmatpush1.msra.mxu0 %v719
      %786 = vmatprep.subr.mxu0 %v718
      %787 = vmatpush1.msra.mxu0 %v717
      %788 = vmatprep.subr.mxu0 %v716
      %789 = vmatpush1.msra.mxu0 %v715
      %790 = vmatprep.subr.mxu0 0.0
      %791 = vmatpush2.msra.mxu0 0.0
      %792 = vmatprep.subr.mxu0 0.0
      %793 = vmatpush2.msra.mxu0 0.0
      %794 = vmatprep.subr.mxu0 0.0
      %795 = vmatpush2.msra.mxu0 0.0
      %796 = vmatprep.subr.mxu0 0.0
      %797 = vmatpush2.msra.mxu0 0.0
      %798 = vmatprep.subr.mxu0 0.0
      %799 = vmatpush2.msra.mxu0 0.0
      %800 = vmatprep.subr.mxu0 0.0
      %801 = vmatpush2.msra.mxu0 0.0
      %802 = vmatprep.subr.mxu0 0.0
      %803 = vmatpush2.msra.mxu0 0.0
      %804 = vmatprep.subr.mxu0 0.0
      %805 = vmatpush2.msra.mxu0 0.0
      %806 = vmatprep.subr.mxu0 0.0
      %807 = vmatpush2.msra.mxu0 0.0
      %808 = vmatprep.subr.mxu0 0.0
      %809 = vmatpush2.msra.mxu0 0.0
      %810 = vmatprep.subr.mxu0 0.0
      %811 = vmatpush2.msra.mxu0 0.0
      %812 = vmatprep.subr.mxu0 0.0
      %813 = vmatpush2.msra.mxu0 0.0
      %814 = vmatprep.subr.mxu0 0.0
      %815 = vmatpush2.msra.mxu0 0.0
      %816 = vmatprep.subr.mxu0 0.0
      %817 = vmatpush2.msra.mxu0 0.0
      %818 = vmatprep.subr.mxu0 0.0
      %819 = vmatpush2.msra.mxu0 0.0
      %820 = vmatprep.subr.mxu0 0.0
      %821 = vmatpush2.msra.mxu0 0.0
      %822 = vmatprep.mubr.f32.mxu0 0.0
      %823 = vmatmul.mubr.f32.gmra.mxu0 %v746
      %v824 = vpop.f32.mrf.mxu0
      %v825 = vadd.f32 0.0, %v824
      %v826 = vpop.f32.mrf.mxu0
      %v827 = vadd.f32 0.0, %v826
      %828 = vmatprep.mubr.f32.mxu0 0.0
      %829 = vmatmul.mubr.f32.gmra.mxu0 %v749
      %v830 = vpop.f32.mrf.mxu0
      %v831 = vadd.f32 0.0, %v830
      %v832 = vpop.f32.mrf.mxu0
      %v833 = vadd.f32 0.0, %v832
      %834 = vmatprep.mubr.f32.mxu0 0.0
      %835 = vmatmul.mubr.f32.gmra.mxu0 %v752
      %v836 = vpop.f32.mrf.mxu0
      %v837 = vadd.f32 0.0, %v836
      %v838 = vpop.f32.mrf.mxu0
      %v839 = vadd.f32 0.0, %v838
      %840 = vdwg.mxu0
      %v841 = vadd.f32 %v656, %v825
      %v842 = vadd.f32 %v657, %v827
      %v843 = vadd.f32 %v658, %v831
      %v844 = vadd.f32 %v659, %v833
      %v845 = vadd.f32 %v660, %v837
      %v846 = vadd.f32 %v661, %v839
      %s847 = scalar_lea.vmem %s2, 48
      %v848 = vld [vmem:[%s847] sm:$0xff]
      %v849 = vld [vmem:[%s847 + $0x8] sm:$0xff]
      %v850 = vld [vmem:[%s847 + $0x10] sm:$0xf]
      %851 = vrot.lane.b32.xlu0 %v417, 15
      %v852 = vpop.permute.xlu0 %851
      %853 = vrot.lane.b32.xlu0 %v418, 15
      %v854 = vpop.permute.xlu0 %853
      %855 = vrot.lane.b32.xlu0 %v419, 15
      %v856 = vpop.permute.xlu0 %855
      %857 = vrot.lane.b32.xlu0 %v420, 15
      %v858 = vpop.permute.xlu0 %857
      %859 = vrot.lane.b32.xlu0 %v421, 15
      %v860 = vpop.permute.xlu0 %859
      %861 = vrot.lane.b32.xlu0 %v422, 15
      %v862 = vpop.permute.xlu0 %861
      %863 = vrot.lane.b32.xlu0 %v423, 15
      %v864 = vpop.permute.xlu0 %863
      %865 = vrot.lane.b32.xlu0 %v424, 15
      %v866 = vpop.permute.xlu0 %865
      %867 = vrot.lane.b32.xlu0 %v425, 15
      %v868 = vpop.permute.xlu0 %867
      %869 = vrot.lane.b32.xlu0 %v426, 15
      %v870 = vpop.permute.xlu0 %869
      %871 = vrot.lane.b32.xlu0 %v427, 15
      %v872 = vpop.permute.xlu0 %871
      %873 = vrot.lane.b32.xlu0 %v428, 15
      %v874 = vpop.permute.xlu0 %873
      %875 = vrot.lane.b32.xlu0 %v429, 15
      %v876 = vpop.permute.xlu0 %875
      %877 = vrot.lane.b32.xlu0 %v430, 15
      %v878 = vpop.permute.xlu0 %877
      %879 = vrot.lane.b32.xlu0 %v431, 15
      %v880 = vpop.permute.xlu0 %879
      %881 = vrot.lane.b32.xlu0 %v432, 15
      %v882 = vpop.permute.xlu0 %881
      %883 = vrot.lane.b32.xlu0 %v433, 15
      %v884 = vpop.permute.xlu0 %883
      %885 = vrot.lane.b32.xlu0 %v434, 15
      %v886 = vpop.permute.xlu0 %885
      %887 = vrot.lane.b32.xlu0 %v435, 15
      %v888 = vpop.permute.xlu0 %887
      %889 = vrot.lane.b32.xlu0 %v436, 15
      %v890 = vpop.permute.xlu0 %889
      %891 = vrot.lane.b32.xlu0 %v437, 15
      %v892 = vpop.permute.xlu0 %891
      %893 = vrot.lane.b32.xlu0 %v438, 15
      %v894 = vpop.permute.xlu0 %893
      %895 = vrot.lane.b32.xlu0 %v439, 15
      %v896 = vpop.permute.xlu0 %895
      %897 = vrot.lane.b32.xlu0 %v440, 15
      %v898 = vpop.permute.xlu0 %897
      %vm899 = vcmask 121856
      %v900 = vsel %vm899, %v852, %v854
      %v901 = vsel %vm899, %v854, %v856
      %v902 = vsel %vm899, %v858, %v860
      %v903 = vsel %vm899, %v860, %v862
      %v904 = vsel %vm899, %v864, %v866
      %v905 = vsel %vm899, %v866, %v868
      %v906 = vsel %vm899, %v870, %v872
      %v907 = vsel %vm899, %v872, %v874
      %v908 = vsel %vm899, %v876, %v878
      %v909 = vsel %vm899, %v878, %v880
      %v910 = vsel %vm899, %v882, %v884
      %v911 = vsel %vm899, %v884, %v886
      %v912 = vsel %vm899, %v888, %v890
      %v913 = vsel %vm899, %v890, %v892
      %v914 = vsel %vm899, %v894, %v896
      %v915 = vsel %vm899, %v896, %v898
      %v931 = vsel %vm547, %v848, 0
      %v934 = vsel %vm547, %v849, 0
      %v937 = vsel %vm547, %v850, 0
      %v939 = vsel %vm557, %v914, 0
      %v941 = vsel %vm557, %v915, 0
      %943 = vmatprep.subr.mxu0 0.0
      %944 = vmatpush1.msra.mxu0 0.0
      %945 = vmatprep.subr.mxu0 0.0
      %946 = vmatpush1.msra.mxu0 0.0
      %947 = vmatprep.subr.mxu0 0.0
      %948 = vmatpush1.msra.mxu0 0.0
      %949 = vmatprep.subr.mxu0 0.0
      %950 = vmatpush1.msra.mxu0 0.0
      %951 = vmatprep.subr.mxu0 0.0
      %952 = vmatpush1.msra.mxu0 0.0
      %953 = vmatprep.subr.mxu0 0.0
      %954 = vmatpush1.msra.mxu0 0.0
      %955 = vmatprep.subr.mxu0 0.0
      %956 = vmatpush1.msra.mxu0 0.0
      %957 = vmatprep.subr.mxu0 0.0
      %958 = vmatpush1.msra.mxu0 0.0
      %959 = vmatprep.subr.mxu0 %v941
      %960 = vmatpush1.msra.mxu0 %v939
      %961 = vmatprep.subr.mxu0 %v913
      %962 = vmatpush1.msra.mxu0 %v912
      %963 = vmatprep.subr.mxu0 %v911
      %964 = vmatpush1.msra.mxu0 %v910
      %965 = vmatprep.subr.mxu0 %v909
      %966 = vmatpush1.msra.mxu0 %v908
      %967 = vmatprep.subr.mxu0 %v907
      %968 = vmatpush1.msra.mxu0 %v906
      %969 = vmatprep.subr.mxu0 %v905
      %970 = vmatpush1.msra.mxu0 %v904
      %971 = vmatprep.subr.mxu0 %v903
      %972 = vmatpush1.msra.mxu0 %v902
      %973 = vmatprep.subr.mxu0 %v901
      %974 = vmatpush1.msra.mxu0 %v900
      %975 = vmatprep.subr.mxu0 0.0
      %976 = vmatpush2.msra.mxu0 0.0
      %977 = vmatprep.subr.mxu0 0.0
      %978 = vmatpush2.msra.mxu0 0.0
      %979 = vmatprep.subr.mxu0 0.0
      %980 = vmatpush2.msra.mxu0 0.0
      %981 = vmatprep.subr.mxu0 0.0
      %982 = vmatpush2.msra.mxu0 0.0
      %983 = vmatprep.subr.mxu0 0.0
      %984 = vmatpush2.msra.mxu0 0.0
      %985 = vmatprep.subr.mxu0 0.0
      %986 = vmatpush2.msra.mxu0 0.0
      %987 = vmatprep.subr.mxu0 0.0
      %988 = vmatpush2.msra.mxu0 0.0
      %989 = vmatprep.subr.mxu0 0.0
      %990 = vmatpush2.msra.mxu0 0.0
      %991 = vmatprep.subr.mxu0 0.0
      %992 = vmatpush2.msra.mxu0 0.0
      %993 = vmatprep.subr.mxu0 0.0
      %994 = vmatpush2.msra.mxu0 0.0
      %995 = vmatprep.subr.mxu0 0.0
      %996 = vmatpush2.msra.mxu0 0.0
      %997 = vmatprep.subr.mxu0 0.0
      %998 = vmatpush2.msra.mxu0 0.0
      %999 = vmatprep.subr.mxu0 0.0
      %1000 = vmatpush2.msra.mxu0 0.0
      %1001 = vmatprep.subr.mxu0 0.0
      %1002 = vmatpush2.msra.mxu0 0.0
      %1003 = vmatprep.subr.mxu0 0.0
      %1004 = vmatpush2.msra.mxu0 0.0
      %1005 = vmatprep.subr.mxu0 0.0
      %1006 = vmatpush2.msra.mxu0 0.0
      %1007 = vmatprep.mubr.f32.mxu0 0.0
      %1008 = vmatmul.mubr.f32.gmra.mxu0 %v931
      %v1009 = vpop.f32.mrf.mxu0
      %v1010 = vadd.f32 0.0, %v1009
      %v1011 = vpop.f32.mrf.mxu0
      %v1012 = vadd.f32 0.0, %v1011
      %1013 = vmatprep.mubr.f32.mxu0 0.0
      %1014 = vmatmul.mubr.f32.gmra.mxu0 %v934
      %v1015 = vpop.f32.mrf.mxu0
      %v1016 = vadd.f32 0.0, %v1015
      %v1017 = vpop.f32.mrf.mxu0
      %v1018 = vadd.f32 0.0, %v1017
      %1019 = vmatprep.mubr.f32.mxu0 0.0
      %1020 = vmatmul.mubr.f32.gmra.mxu0 %v937
      %v1021 = vpop.f32.mrf.mxu0
      %v1022 = vadd.f32 0.0, %v1021
      %v1023 = vpop.f32.mrf.mxu0
      %v1024 = vadd.f32 0.0, %v1023
      %1025 = vdwg.mxu0
      %v1027 = vlaneseq
      %v1028 = vshrl.u32 %v1027, 7
      %v1029 = vsub.s32 0, %v1028
      %v1030 = vrot.slane %v416, %v1029
      %v1031 = vlaneseq
      %v1032 = vshrl.u32 %v1031, 7
      %v1033 = vsub.s32 1, %v1032
      %v1034 = vrot.slane %v416, %v1033
      %v1037 = vmul.f32 %v1010, %v1030
      %v1038 = vmul.f32 %v1012, %v1034
      %v1039 = vmul.f32 %v1016, %v1030
      %v1040 = vmul.f32 %v1018, %v1034
      %v1041 = vmul.f32 %v1022, %v1030
      %v1042 = vmul.f32 %v1024, %v1034
      %v1043 = vadd.f32 %v841, %v1037
      %v1044 = vadd.f32 %v842, %v1038
      %v1045 = vadd.f32 %v843, %v1039
      %v1046 = vadd.f32 %v844, %v1040
      %v1047 = vadd.f32 %v845, %v1041
      %v1048 = vadd.f32 %v846, %v1042
      %s1049 = scalar_lea.vmem %s2, 72
      %v1050 = vld [vmem:[%s1049] sm:$0xff]
      %v1051 = vld [vmem:[%s1049 + $0x8] sm:$0xff]
      %v1052 = vld [vmem:[%s1049 + $0x10] sm:$0xf]
      %1053 = vrot.lane.b32.xlu0 %v417, 1
      %v1054 = vpop.permute.xlu0 %1053
      %1055 = vrot.lane.b32.xlu0 %v418, 1
      %v1056 = vpop.permute.xlu0 %1055
      %1057 = vrot.lane.b32.xlu0 %v419, 1
      %v1058 = vpop.permute.xlu0 %1057
      %1059 = vrot.lane.b32.xlu0 %v420, 1
      %v1060 = vpop.permute.xlu0 %1059
      %1061 = vrot.lane.b32.xlu0 %v421, 1
      %v1062 = vpop.permute.xlu0 %1061
      %1063 = vrot.lane.b32.xlu0 %v422, 1
      %v1064 = vpop.permute.xlu0 %1063
      %1065 = vrot.lane.b32.xlu0 %v423, 1
      %v1066 = vpop.permute.xlu0 %1065
      %1067 = vrot.lane.b32.xlu0 %v424, 1
      %v1068 = vpop.permute.xlu0 %1067
      %1069 = vrot.lane.b32.xlu0 %v425, 1
      %v1070 = vpop.permute.xlu0 %1069
      %1071 = vrot.lane.b32.xlu0 %v426, 1
      %v1072 = vpop.permute.xlu0 %1071
      %1073 = vrot.lane.b32.xlu0 %v427, 1
      %v1074 = vpop.permute.xlu0 %1073
      %1075 = vrot.lane.b32.xlu0 %v428, 1
      %v1076 = vpop.permute.xlu0 %1075
      %1077 = vrot.lane.b32.xlu0 %v429, 1
      %v1078 = vpop.permute.xlu0 %1077
      %1079 = vrot.lane.b32.xlu0 %v430, 1
      %v1080 = vpop.permute.xlu0 %1079
      %1081 = vrot.lane.b32.xlu0 %v431, 1
      %v1082 = vpop.permute.xlu0 %1081
      %1083 = vrot.lane.b32.xlu0 %v432, 1
      %v1084 = vpop.permute.xlu0 %1083
      %1085 = vrot.lane.b32.xlu0 %v433, 1
      %v1086 = vpop.permute.xlu0 %1085
      %1087 = vrot.lane.b32.xlu0 %v434, 1
      %v1088 = vpop.permute.xlu0 %1087
      %1089 = vrot.lane.b32.xlu0 %v435, 1
      %v1090 = vpop.permute.xlu0 %1089
      %1091 = vrot.lane.b32.xlu0 %v436, 1
      %v1092 = vpop.permute.xlu0 %1091
      %1093 = vrot.lane.b32.xlu0 %v437, 1
      %v1094 = vpop.permute.xlu0 %1093
      %1095 = vrot.lane.b32.xlu0 %v438, 1
      %v1096 = vpop.permute.xlu0 %1095
      %1097 = vrot.lane.b32.xlu0 %v439, 1
      %v1098 = vpop.permute.xlu0 %1097
      %1099 = vrot.lane.b32.xlu0 %v440, 1
      %v1100 = vpop.permute.xlu0 %1099
      %vm1101 = vcmask 7168
      %v1102 = vsel %vm1101, %v1054, %v1056
      %v1103 = vsel %vm1101, %v1056, %v1058
      %v1104 = vsel %vm1101, %v1060, %v1062
      %v1105 = vsel %vm1101, %v1062, %v1064
      %v1106 = vsel %vm1101, %v1066, %v1068
      %v1107 = vsel %vm1101, %v1068, %v1070
      %v1108 = vsel %vm1101, %v1072, %v1074
      %v1109 = vsel %vm1101, %v1074, %v1076
      %v1110 = vsel %vm1101, %v1078, %v1080
      %v1111 = vsel %vm1101, %v1080, %v1082
      %v1112 = vsel %vm1101, %v1084, %v1086
      %v1113 = vsel %vm1101, %v1086, %v1088
      %v1114 = vsel %vm1101, %v1090, %v1092
      %v1115 = vsel %vm1101, %v1092, %v1094
      %v1116 = vsel %vm1101, %v1096, %v1098
      %v1117 = vsel %vm1101, %v1098, %v1100
      %v1133 = vsel %vm547, %v1050, 0
      %v1136 = vsel %vm547, %v1051, 0
      %v1139 = vsel %vm547, %v1052, 0
      %v1141 = vsel %vm557, %v1116, 0
      %v1143 = vsel %vm557, %v1117, 0
      %1145 = vmatprep.subr.mxu0 0.0
      %1146 = vmatpush1.msra.mxu0 0.0
      %1147 = vmatprep.subr.mxu0 0.0
      %1148 = vmatpush1.msra.mxu0 0.0
      %1149 = vmatprep.subr.mxu0 0.0
      %1150 = vmatpush1.msra.mxu0 0.0
      %1151 = vmatprep.subr.mxu0 0.0
      %1152 = vmatpush1.msra.mxu0 0.0
      %1153 = vmatprep.subr.mxu0 0.0
      %1154 = vmatpush1.msra.mxu0 0.0
      %1155 = vmatprep.subr.mxu0 0.0
      %1156 = vmatpush1.msra.mxu0 0.0
      %1157 = vmatprep.subr.mxu0 0.0
      %1158 = vmatpush1.msra.mxu0 0.0
      %1159 = vmatprep.subr.mxu0 0.0
      %1160 = vmatpush1.msra.mxu0 0.0
      %1161 = vmatprep.subr.mxu0 %v1143
      %1162 = vmatpush1.msra.mxu0 %v1141
      %1163 = vmatprep.subr.mxu0 %v1115
      %1164 = vmatpush1.msra.mxu0 %v1114
      %1165 = vmatprep.subr.mxu0 %v1113
      %1166 = vmatpush1.msra.mxu0 %v1112
      %1167 = vmatprep.subr.mxu0 %v1111
      %1168 = vmatpush1.msra.mxu0 %v1110
      %1169 = vmatprep.subr.mxu0 %v1109
      %1170 = vmatpush1.msra.mxu0 %v1108
      %1171 = vmatprep.subr.mxu0 %v1107
      %1172 = vmatpush1.msra.mxu0 %v1106
      %1173 = vmatprep.subr.mxu0 %v1105
      %1174 = vmatpush1.msra.mxu0 %v1104
      %1175 = vmatprep.subr.mxu0 %v1103
      %1176 = vmatpush1.msra.mxu0 %v1102
      %1177 = vmatprep.subr.mxu0 0.0
      %1178 = vmatpush2.msra.mxu0 0.0
      %1179 = vmatprep.subr.mxu0 0.0
      %1180 = vmatpush2.msra.mxu0 0.0
      %1181 = vmatprep.subr.mxu0 0.0
      %1182 = vmatpush2.msra.mxu0 0.0
      %1183 = vmatprep.subr.mxu0 0.0
      %1184 = vmatpush2.msra.mxu0 0.0
      %1185 = vmatprep.subr.mxu0 0.0
      %1186 = vmatpush2.msra.mxu0 0.0
      %1187 = vmatprep.subr.mxu0 0.0
      %1188 = vmatpush2.msra.mxu0 0.0
      %1189 = vmatprep.subr.mxu0 0.0
      %1190 = vmatpush2.msra.mxu0 0.0
      %1191 = vmatprep.subr.mxu0 0.0
      %1192 = vmatpush2.msra.mxu0 0.0
      %1193 = vmatprep.subr.mxu0 0.0
      %1194 = vmatpush2.msra.mxu0 0.0
      %1195 = vmatprep.subr.mxu0 0.0
      %1196 = vmatpush2.msra.mxu0 0.0
      %1197 = vmatprep.subr.mxu0 0.0
      %1198 = vmatpush2.msra.mxu0 0.0
      %1199 = vmatprep.subr.mxu0 0.0
      %1200 = vmatpush2.msra.mxu0 0.0
      %1201 = vmatprep.subr.mxu0 0.0
      %1202 = vmatpush2.msra.mxu0 0.0
      %1203 = vmatprep.subr.mxu0 0.0
      %1204 = vmatpush2.msra.mxu0 0.0
      %1205 = vmatprep.subr.mxu0 0.0
      %1206 = vmatpush2.msra.mxu0 0.0
      %1207 = vmatprep.subr.mxu0 0.0
      %1208 = vmatpush2.msra.mxu0 0.0
      %1209 = vmatprep.mubr.f32.mxu0 0.0
      %1210 = vmatmul.mubr.f32.gmra.mxu0 %v1133
      %v1211 = vpop.f32.mrf.mxu0
      %v1212 = vadd.f32 0.0, %v1211
      %v1213 = vpop.f32.mrf.mxu0
      %v1214 = vadd.f32 0.0, %v1213
      %1215 = vmatprep.mubr.f32.mxu0 0.0
      %1216 = vmatmul.mubr.f32.gmra.mxu0 %v1136
      %v1217 = vpop.f32.mrf.mxu0
      %v1218 = vadd.f32 0.0, %v1217
      %v1219 = vpop.f32.mrf.mxu0
      %v1220 = vadd.f32 0.0, %v1219
      %1221 = vmatprep.mubr.f32.mxu0 0.0
      %1222 = vmatmul.mubr.f32.gmra.mxu0 %v1139
      %v1223 = vpop.f32.mrf.mxu0
      %v1224 = vadd.f32 0.0, %v1223
      %v1225 = vpop.f32.mrf.mxu0
      %v1226 = vadd.f32 0.0, %v1225
      %1227 = vdwg.mxu0
      %v1228 = vmul.f32 %v1212, %v649
      %v1229 = vmul.f32 %v1214, %v653
      %v1230 = vmul.f32 %v1218, %v649
      %v1231 = vmul.f32 %v1220, %v653
      %v1232 = vmul.f32 %v1224, %v649
      %v1233 = vmul.f32 %v1226, %v653
      %v1234 = vadd.f32 %v1043, %v1228
      %v1235 = vadd.f32 %v1044, %v1229
      %v1236 = vadd.f32 %v1045, %v1230
      %v1237 = vadd.f32 %v1046, %v1231
      %v1238 = vadd.f32 %v1047, %v1232
      %v1239 = vadd.f32 %v1048, %v1233
      %s1240 = scalar_lea.vmem %s2, 96
      %v1241 = vld [vmem:[%s1240] sm:$0xff]
      %v1242 = vld [vmem:[%s1240 + $0x8] sm:$0xff]
      %v1243 = vld [vmem:[%s1240 + $0x10] sm:$0xf]
      %v1245 = vsel %vm547, %v1241, 0
      %v1248 = vsel %vm547, %v1242, 0
      %v1251 = vsel %vm547, %v1243, 0
      %v1253 = vsel %vm557, %v439, 0
      %v1255 = vsel %vm557, %v440, 0
      %1257 = vmatprep.subr.mxu0 0.0
      %1258 = vmatpush1.msra.mxu0 0.0
      %1259 = vmatprep.subr.mxu0 0.0
      %1260 = vmatpush1.msra.mxu0 0.0
      %1261 = vmatprep.subr.mxu0 0.0
      %1262 = vmatpush1.msra.mxu0 0.0
      %1263 = vmatprep.subr.mxu0 0.0
      %1264 = vmatpush1.msra.mxu0 0.0
      %1265 = vmatprep.subr.mxu0 0.0
      %1266 = vmatpush1.msra.mxu0 0.0
      %1267 = vmatprep.subr.mxu0 0.0
      %1268 = vmatpush1.msra.mxu0 0.0
      %1269 = vmatprep.subr.mxu0 0.0
      %1270 = vmatpush1.msra.mxu0 0.0
      %1271 = vmatprep.subr.mxu0 0.0
      %1272 = vmatpush1.msra.mxu0 0.0
      %1273 = vmatprep.subr.mxu0 %v1255
      %1274 = vmatpush1.msra.mxu0 %v1253
      %1275 = vmatprep.subr.mxu0 %v437
      %1276 = vmatpush1.msra.mxu0 %v436
      %1277 = vmatprep.subr.mxu0 %v434
      %1278 = vmatpush1.msra.mxu0 %v433
      %1279 = vmatprep.subr.mxu0 %v431
      %1280 = vmatpush1.msra.mxu0 %v430
      %1281 = vmatprep.subr.mxu0 %v428
      %1282 = vmatpush1.msra.mxu0 %v427
      %1283 = vmatprep.subr.mxu0 %v425
      %1284 = vmatpush1.msra.mxu0 %v424
      %1285 = vmatprep.subr.mxu0 %v422
      %1286 = vmatpush1.msra.mxu0 %v421
      %1287 = vmatprep.subr.mxu0 %v419
      %1288 = vmatpush1.msra.mxu0 %v418
      %1289 = vmatprep.subr.mxu0 0.0
      %1290 = vmatpush2.msra.mxu0 0.0
      %1291 = vmatprep.subr.mxu0 0.0
      %1292 = vmatpush2.msra.mxu0 0.0
      %1293 = vmatprep.subr.mxu0 0.0
      %1294 = vmatpush2.msra.mxu0 0.0
      %1295 = vmatprep.subr.mxu0 0.0
      %1296 = vmatpush2.msra.mxu0 0.0
      %1297 = vmatprep.subr.mxu0 0.0
      %1298 = vmatpush2.msra.mxu0 0.0
      %1299 = vmatprep.subr.mxu0 0.0
      %1300 = vmatpush2.msra.mxu0 0.0
      %1301 = vmatprep.subr.mxu0 0.0
      %1302 = vmatpush2.msra.mxu0 0.0
      %1303 = vmatprep.subr.mxu0 0.0
      %1304 = vmatpush2.msra.mxu0 0.0
      %1305 = vmatprep.subr.mxu0 0.0
      %1306 = vmatpush2.msra.mxu0 0.0
      %1307 = vmatprep.subr.mxu0 0.0
      %1308 = vmatpush2.msra.mxu0 0.0
      %1309 = vmatprep.subr.mxu0 0.0
      %1310 = vmatpush2.msra.mxu0 0.0
      %1311 = vmatprep.subr.mxu0 0.0
      %1312 = vmatpush2.msra.mxu0 0.0
      %1313 = vmatprep.subr.mxu0 0.0
      %1314 = vmatpush2.msra.mxu0 0.0
      %1315 = vmatprep.subr.mxu0 0.0
      %1316 = vmatpush2.msra.mxu0 0.0
      %1317 = vmatprep.subr.mxu0 0.0
      %1318 = vmatpush2.msra.mxu0 0.0
      %1319 = vmatprep.subr.mxu0 0.0
      %1320 = vmatpush2.msra.mxu0 0.0
      %1321 = vmatprep.mubr.f32.mxu0 0.0
      %1322 = vmatmul.mubr.f32.gmra.mxu0 %v1245
      %v1323 = vpop.f32.mrf.mxu0
      %v1324 = vadd.f32 0.0, %v1323
      %v1325 = vpop.f32.mrf.mxu0
      %v1326 = vadd.f32 0.0, %v1325
      %1327 = vmatprep.mubr.f32.mxu0 0.0
      %1328 = vmatmul.mubr.f32.gmra.mxu0 %v1248
      %v1329 = vpop.f32.mrf.mxu0
      %v1330 = vadd.f32 0.0, %v1329
      %v1331 = vpop.f32.mrf.mxu0
      %v1332 = vadd.f32 0.0, %v1331
      %1333 = vmatprep.mubr.f32.mxu0 0.0
      %1334 = vmatmul.mubr.f32.gmra.mxu0 %v1251
      %v1335 = vpop.f32.mrf.mxu0
      %v1336 = vadd.f32 0.0, %v1335
      %v1337 = vpop.f32.mrf.mxu0
      %v1338 = vadd.f32 0.0, %v1337
      %1339 = vdwg.mxu0
      %v1340 = vadd.f32 %v1234, %v1324
      %v1341 = vadd.f32 %v1235, %v1326
      %v1342 = vadd.f32 %v1236, %v1330
      %v1343 = vadd.f32 %v1237, %v1332
      %v1344 = vadd.f32 %v1238, %v1336
      %v1345 = vadd.f32 %v1239, %v1338
      %v1346 = vld [vmem:[#allocation2 + $0x8] sm:$0xff]
      %v1347 = vld [vmem:[#allocation2 + $0x10] sm:$0xff]
      %v1348 = vld [vmem:[#allocation2 + $0x18] sm:$0xff]
      %v1349 = vld [vmem:[#allocation2 + $0x28] sm:$0xff]
      %v1350 = vld [vmem:[#allocation2 + $0x30] sm:$0xff]
      %v1351 = vld [vmem:[#allocation2 + $0x38] sm:$0xff]
      %v1352 = vld [vmem:[#allocation2 + $0x48] sm:$0xff]
      %v1353 = vld [vmem:[#allocation2 + $0x50] sm:$0xff]
      %v1354 = vld [vmem:[#allocation2 + $0x58] sm:$0xff]
      %v1355 = vld [vmem:[#allocation2 + $0x68] sm:$0xff]
      %v1356 = vld [vmem:[#allocation2 + $0x70] sm:$0xff]
      %v1357 = vld [vmem:[#allocation2 + $0x78] sm:$0xff]
      %v1358 = vld [vmem:[#allocation2 + $0x88] sm:$0xff]
      %v1359 = vld [vmem:[#allocation2 + $0x90] sm:$0xff]
      %v1360 = vld [vmem:[#allocation2 + $0x98] sm:$0xff]
      %v1361 = vld [vmem:[#allocation2 + $0xa8] sm:$0xff]
      %v1362 = vld [vmem:[#allocation2 + $0xb0] sm:$0xff]
      %v1363 = vld [vmem:[#allocation2 + $0xb8] sm:$0xff]
      %v1364 = vld [vmem:[#allocation2 + $0xc8] sm:$0xff]
      %v1365 = vld [vmem:[#allocation2 + $0xd0] sm:$0xff]
      %v1366 = vld [vmem:[#allocation2 + $0xd8] sm:$0xff]
      %v1367 = vld [vmem:[#allocation2 + $0xe8] sm:$0xf]
      %v1368 = vld [vmem:[#allocation2 + $0xf0] sm:$0xf]
      %v1369 = vld [vmem:[#allocation2 + $0xf8] sm:$0xf]
      %s1370 = scalar_lea.vmem %s2, 120
      %v1371 = vld [vmem:[%s1370] sm:$0xff]
      %v1372 = vld [vmem:[%s1370 + $0x8] sm:$0xff]
      %v1373 = vld [vmem:[%s1370 + $0x10] sm:$0xf]
      %1398 = vrot.lane.b32.xlu0 %v1346, 127
      %v1399 = vpop.permute.xlu0 %1398
      %1400 = vrot.lane.b32.xlu0 %v1347, 127
      %v1401 = vpop.permute.xlu0 %1400
      %1402 = vrot.lane.b32.xlu0 %v1348, 127
      %v1403 = vpop.permute.xlu0 %1402
      %1404 = vrot.lane.b32.xlu0 %v1349, 127
      %v1405 = vpop.permute.xlu0 %1404
      %1406 = vrot.lane.b32.xlu0 %v1350, 127
      %v1407 = vpop.permute.xlu0 %1406
      %1408 = vrot.lane.b32.xlu0 %v1351, 127
      %v1409 = vpop.permute.xlu0 %1408
      %1410 = vrot.lane.b32.xlu0 %v1352, 127
      %v1411 = vpop.permute.xlu0 %1410
      %1412 = vrot.lane.b32.xlu0 %v1353, 127
      %v1413 = vpop.permute.xlu0 %1412
      %1414 = vrot.lane.b32.xlu0 %v1354, 127
      %v1415 = vpop.permute.xlu0 %1414
      %1416 = vrot.lane.b32.xlu0 %v1355, 127
      %v1417 = vpop.permute.xlu0 %1416
      %1418 = vrot.lane.b32.xlu0 %v1356, 127
      %v1419 = vpop.permute.xlu0 %1418
      %1420 = vrot.lane.b32.xlu0 %v1357, 127
      %v1421 = vpop.permute.xlu0 %1420
      %1422 = vrot.lane.b32.xlu0 %v1358, 127
      %v1423 = vpop.permute.xlu0 %1422
      %1424 = vrot.lane.b32.xlu0 %v1359, 127
      %v1425 = vpop.permute.xlu0 %1424
      %1426 = vrot.lane.b32.xlu0 %v1360, 127
      %v1427 = vpop.permute.xlu0 %1426
      %1428 = vrot.lane.b32.xlu0 %v1361, 127
      %v1429 = vpop.permute.xlu0 %1428
      %1430 = vrot.lane.b32.xlu0 %v1362, 127
      %v1431 = vpop.permute.xlu0 %1430
      %1432 = vrot.lane.b32.xlu0 %v1363, 127
      %v1433 = vpop.permute.xlu0 %1432
      %1434 = vrot.lane.b32.xlu0 %v1364, 127
      %v1435 = vpop.permute.xlu0 %1434
      %1436 = vrot.lane.b32.xlu0 %v1365, 127
      %v1437 = vpop.permute.xlu0 %1436
      %1438 = vrot.lane.b32.xlu0 %v1366, 127
      %v1439 = vpop.permute.xlu0 %1438
      %1440 = vrot.lane.b32.xlu0 %v1367, 127
      %v1441 = vpop.permute.xlu0 %1440
      %1442 = vrot.lane.b32.xlu0 %v1368, 127
      %v1443 = vpop.permute.xlu0 %1442
      %1444 = vrot.lane.b32.xlu0 %v1369, 127
      %v1445 = vpop.permute.xlu0 %1444
      %vm1446 = vcmask 1039360
      %v1447 = vsel %vm1446, %v1399, %v1401
      %v1448 = vsel %vm1446, %v1401, %v1403
      %v1449 = vsel %vm1446, %v1405, %v1407
      %v1450 = vsel %vm1446, %v1407, %v1409
      %v1451 = vsel %vm1446, %v1411, %v1413
      %v1452 = vsel %vm1446, %v1413, %v1415
      %v1453 = vsel %vm1446, %v1417, %v1419
      %v1454 = vsel %vm1446, %v1419, %v1421
      %v1455 = vsel %vm1446, %v1423, %v1425
      %v1456 = vsel %vm1446, %v1425, %v1427
      %v1457 = vsel %vm1446, %v1429, %v1431
      %v1458 = vsel %vm1446, %v1431, %v1433
      %v1459 = vsel %vm1446, %v1435, %v1437
      %v1460 = vsel %vm1446, %v1437, %v1439
      %v1461 = vsel %vm1446, %v1441, %v1443
      %v1462 = vsel %vm1446, %v1443, %v1445
      %v1478 = vsel %vm547, %v1371, 0
      %v1481 = vsel %vm547, %v1372, 0
      %v1484 = vsel %vm547, %v1373, 0
      %v1486 = vsel %vm557, %v1461, 0
      %v1488 = vsel %vm557, %v1462, 0
      %1490 = vmatprep.subr.mxu0 0.0
      %1491 = vmatpush1.msra.mxu0 0.0
      %1492 = vmatprep.subr.mxu0 0.0
      %1493 = vmatpush1.msra.mxu0 0.0
      %1494 = vmatprep.subr.mxu0 0.0
      %1495 = vmatpush1.msra.mxu0 0.0
      %1496 = vmatprep.subr.mxu0 0.0
      %1497 = vmatpush1.msra.mxu0 0.0
      %1498 = vmatprep.subr.mxu0 0.0
      %1499 = vmatpush1.msra.mxu0 0.0
      %1500 = vmatprep.subr.mxu0 0.0
      %1501 = vmatpush1.msra.mxu0 0.0
      %1502 = vmatprep.subr.mxu0 0.0
      %1503 = vmatpush1.msra.mxu0 0.0
      %1504 = vmatprep.subr.mxu0 0.0
      %1505 = vmatpush1.msra.mxu0 0.0
      %1506 = vmatprep.subr.mxu0 %v1488
      %1507 = vmatpush1.msra.mxu0 %v1486
      %1508 = vmatprep.subr.mxu0 %v1460
      %1509 = vmatpush1.msra.mxu0 %v1459
      %1510 = vmatprep.subr.mxu0 %v1458
      %1511 = vmatpush1.msra.mxu0 %v1457
      %1512 = vmatprep.subr.mxu0 %v1456
      %1513 = vmatpush1.msra.mxu0 %v1455
      %1514 = vmatprep.subr.mxu0 %v1454
      %1515 = vmatpush1.msra.mxu0 %v1453
      %1516 = vmatprep.subr.mxu0 %v1452
      %1517 = vmatpush1.msra.mxu0 %v1451
      %1518 = vmatprep.subr.mxu0 %v1450
      %1519 = vmatpush1.msra.mxu0 %v1449
      %1520 = vmatprep.subr.mxu0 %v1448
      %1521 = vmatpush1.msra.mxu0 %v1447
      %1522 = vmatprep.subr.mxu0 0.0
      %1523 = vmatpush2.msra.mxu0 0.0
      %1524 = vmatprep.subr.mxu0 0.0
      %1525 = vmatpush2.msra.mxu0 0.0
      %1526 = vmatprep.subr.mxu0 0.0
      %1527 = vmatpush2.msra.mxu0 0.0
      %1528 = vmatprep.subr.mxu0 0.0
      %1529 = vmatpush2.msra.mxu0 0.0
      %1530 = vmatprep.subr.mxu0 0.0
      %1531 = vmatpush2.msra.mxu0 0.0
      %1532 = vmatprep.subr.mxu0 0.0
      %1533 = vmatpush2.msra.mxu0 0.0
      %1534 = vmatprep.subr.mxu0 0.0
      %1535 = vmatpush2.msra.mxu0 0.0
      %1536 = vmatprep.subr.mxu0 0.0
      %1537 = vmatpush2.msra.mxu0 0.0
      %1538 = vmatprep.subr.mxu0 0.0
      %1539 = vmatpush2.msra.mxu0 0.0
      %1540 = vmatprep.subr.mxu0 0.0
      %1541 = vmatpush2.msra.mxu0 0.0
      %1542 = vmatprep.subr.mxu0 0.0
      %1543 = vmatpush2.msra.mxu0 0.0
      %1544 = vmatprep.subr.mxu0 0.0
      %1545 = vmatpush2.msra.mxu0 0.0
      %1546 = vmatprep.subr.mxu0 0.0
      %1547 = vmatpush2.msra.mxu0 0.0
      %1548 = vmatprep.subr.mxu0 0.0
      %1549 = vmatpush2.msra.mxu0 0.0
      %1550 = vmatprep.subr.mxu0 0.0
      %1551 = vmatpush2.msra.mxu0 0.0
      %1552 = vmatprep.subr.mxu0 0.0
      %1553 = vmatpush2.msra.mxu0 0.0
      %1554 = vmatprep.mubr.f32.mxu0 0.0
      %1555 = vmatmul.mubr.f32.gmra.mxu0 %v1478
      %v1556 = vpop.f32.mrf.mxu0
      %v1557 = vadd.f32 0.0, %v1556
      %v1558 = vpop.f32.mrf.mxu0
      %v1559 = vadd.f32 0.0, %v1558
      %1560 = vmatprep.mubr.f32.mxu0 0.0
      %1561 = vmatmul.mubr.f32.gmra.mxu0 %v1481
      %v1562 = vpop.f32.mrf.mxu0
      %v1563 = vadd.f32 0.0, %v1562
      %v1564 = vpop.f32.mrf.mxu0
      %v1565 = vadd.f32 0.0, %v1564
      %1566 = vmatprep.mubr.f32.mxu0 0.0
      %1567 = vmatmul.mubr.f32.gmra.mxu0 %v1484
      %v1568 = vpop.f32.mrf.mxu0
      %v1569 = vadd.f32 0.0, %v1568
      %v1570 = vpop.f32.mrf.mxu0
      %v1571 = vadd.f32 0.0, %v1570
      %1572 = vdwg.mxu0
      %v1573 = vmul.f32 %v1557, %v1030
      %v1574 = vmul.f32 %v1559, %v1034
      %v1575 = vmul.f32 %v1563, %v1030
      %v1576 = vmul.f32 %v1565, %v1034
      %v1577 = vmul.f32 %v1569, %v1030
      %v1578 = vmul.f32 %v1571, %v1034
      %v1579 = vadd.f32 %v1340, %v1573
      %v1580 = vadd.f32 %v1341, %v1574
      %v1581 = vadd.f32 %v1342, %v1575
      %v1582 = vadd.f32 %v1343, %v1576
      %v1583 = vadd.f32 %v1344, %v1577
      %v1584 = vadd.f32 %v1345, %v1578
      %s1585 = scalar_lea.vmem %s2, 144
      %v1586 = vld [vmem:[%s1585] sm:$0xff]
      %v1587 = vld [vmem:[%s1585 + $0x8] sm:$0xff]
      %v1588 = vld [vmem:[%s1585 + $0x10] sm:$0xf]
      %1589 = vrot.lane.b32.xlu0 %v1346, 113
      %v1590 = vpop.permute.xlu0 %1589
      %1591 = vrot.lane.b32.xlu0 %v1347, 113
      %v1592 = vpop.permute.xlu0 %1591
      %1593 = vrot.lane.b32.xlu0 %v1348, 113
      %v1594 = vpop.permute.xlu0 %1593
      %1595 = vrot.lane.b32.xlu0 %v1349, 113
      %v1596 = vpop.permute.xlu0 %1595
      %1597 = vrot.lane.b32.xlu0 %v1350, 113
      %v1598 = vpop.permute.xlu0 %1597
      %1599 = vrot.lane.b32.xlu0 %v1351, 113
      %v1600 = vpop.permute.xlu0 %1599
      %1601 = vrot.lane.b32.xlu0 %v1352, 113
      %v1602 = vpop.permute.xlu0 %1601
      %1603 = vrot.lane.b32.xlu0 %v1353, 113
      %v1604 = vpop.permute.xlu0 %1603
      %1605 = vrot.lane.b32.xlu0 %v1354, 113
      %v1606 = vpop.permute.xlu0 %1605
      %1607 = vrot.lane.b32.xlu0 %v1355, 113
      %v1608 = vpop.permute.xlu0 %1607
      %1609 = vrot.lane.b32.xlu0 %v1356, 113
      %v1610 = vpop.permute.xlu0 %1609
      %1611 = vrot.lane.b32.xlu0 %v1357, 113
      %v1612 = vpop.permute.xlu0 %1611
      %1613 = vrot.lane.b32.xlu0 %v1358, 113
      %v1614 = vpop.permute.xlu0 %1613
      %1615 = vrot.lane.b32.xlu0 %v1359, 113
      %v1616 = vpop.permute.xlu0 %1615
      %1617 = vrot.lane.b32.xlu0 %v1360, 113
      %v1618 = vpop.permute.xlu0 %1617
      %1619 = vrot.lane.b32.xlu0 %v1361, 113
      %v1620 = vpop.permute.xlu0 %1619
      %1621 = vrot.lane.b32.xlu0 %v1362, 113
      %v1622 = vpop.permute.xlu0 %1621
      %1623 = vrot.lane.b32.xlu0 %v1363, 113
      %v1624 = vpop.permute.xlu0 %1623
      %1625 = vrot.lane.b32.xlu0 %v1364, 113
      %v1626 = vpop.permute.xlu0 %1625
      %1627 = vrot.lane.b32.xlu0 %v1365, 113
      %v1628 = vpop.permute.xlu0 %1627
      %1629 = vrot.lane.b32.xlu0 %v1366, 113
      %v1630 = vpop.permute.xlu0 %1629
      %1631 = vrot.lane.b32.xlu0 %v1367, 113
      %v1632 = vpop.permute.xlu0 %1631
      %1633 = vrot.lane.b32.xlu0 %v1368, 113
      %v1634 = vpop.permute.xlu0 %1633
      %1635 = vrot.lane.b32.xlu0 %v1369, 113
      %v1636 = vpop.permute.xlu0 %1635
      %vm1637 = vcmask 924672
      %v1638 = vsel %vm1637, %v1590, %v1592
      %v1639 = vsel %vm1637, %v1592, %v1594
      %v1640 = vsel %vm1637, %v1596, %v1598
      %v1641 = vsel %vm1637, %v1598, %v1600
      %v1642 = vsel %vm1637, %v1602, %v1604
      %v1643 = vsel %vm1637, %v1604, %v1606
      %v1644 = vsel %vm1637, %v1608, %v1610
      %v1645 = vsel %vm1637, %v1610, %v1612
      %v1646 = vsel %vm1637, %v1614, %v1616
      %v1647 = vsel %vm1637, %v1616, %v1618
      %v1648 = vsel %vm1637, %v1620, %v1622
      %v1649 = vsel %vm1637, %v1622, %v1624
      %v1650 = vsel %vm1637, %v1626, %v1628
      %v1651 = vsel %vm1637, %v1628, %v1630
      %v1652 = vsel %vm1637, %v1632, %v1634
      %v1653 = vsel %vm1637, %v1634, %v1636
      %v1669 = vsel %vm547, %v1586, 0
      %v1672 = vsel %vm547, %v1587, 0
      %v1675 = vsel %vm547, %v1588, 0
      %v1677 = vsel %vm557, %v1652, 0
      %v1679 = vsel %vm557, %v1653, 0
      %1681 = vmatprep.subr.mxu0 0.0
      %1682 = vmatpush1.msra.mxu0 0.0
      %1683 = vmatprep.subr.mxu0 0.0
      %1684 = vmatpush1.msra.mxu0 0.0
      %1685 = vmatprep.subr.mxu0 0.0
      %1686 = vmatpush1.msra.mxu0 0.0
      %1687 = vmatprep.subr.mxu0 0.0
      %1688 = vmatpush1.msra.mxu0 0.0
      %1689 = vmatprep.subr.mxu0 0.0
      %1690 = vmatpush1.msra.mxu0 0.0
      %1691 = vmatprep.subr.mxu0 0.0
      %1692 = vmatpush1.msra.mxu0 0.0
      %1693 = vmatprep.subr.mxu0 0.0
      %1694 = vmatpush1.msra.mxu0 0.0
      %1695 = vmatprep.subr.mxu0 0.0
      %1696 = vmatpush1.msra.mxu0 0.0
      %1697 = vmatprep.subr.mxu0 %v1679
      %1698 = vmatpush1.msra.mxu0 %v1677
      %1699 = vmatprep.subr.mxu0 %v1651
      %1700 = vmatpush1.msra.mxu0 %v1650
      %1701 = vmatprep.subr.mxu0 %v1649
      %1702 = vmatpush1.msra.mxu0 %v1648
      %1703 = vmatprep.subr.mxu0 %v1647
      %1704 = vmatpush1.msra.mxu0 %v1646
      %1705 = vmatprep.subr.mxu0 %v1645
      %1706 = vmatpush1.msra.mxu0 %v1644
      %1707 = vmatprep.subr.mxu0 %v1643
      %1708 = vmatpush1.msra.mxu0 %v1642
      %1709 = vmatprep.subr.mxu0 %v1641
      %1710 = vmatpush1.msra.mxu0 %v1640
      %1711 = vmatprep.subr.mxu0 %v1639
      %1712 = vmatpush1.msra.mxu0 %v1638
      %1713 = vmatprep.subr.mxu0 0.0
      %1714 = vmatpush2.msra.mxu0 0.0
      %1715 = vmatprep.subr.mxu0 0.0
      %1716 = vmatpush2.msra.mxu0 0.0
      %1717 = vmatprep.subr.mxu0 0.0
      %1718 = vmatpush2.msra.mxu0 0.0
      %1719 = vmatprep.subr.mxu0 0.0
      %1720 = vmatpush2.msra.mxu0 0.0
      %1721 = vmatprep.subr.mxu0 0.0
      %1722 = vmatpush2.msra.mxu0 0.0
      %1723 = vmatprep.subr.mxu0 0.0
      %1724 = vmatpush2.msra.mxu0 0.0
      %1725 = vmatprep.subr.mxu0 0.0
      %1726 = vmatpush2.msra.mxu0 0.0
      %1727 = vmatprep.subr.mxu0 0.0
      %1728 = vmatpush2.msra.mxu0 0.0
      %1729 = vmatprep.subr.mxu0 0.0
      %1730 = vmatpush2.msra.mxu0 0.0
      %1731 = vmatprep.subr.mxu0 0.0
      %1732 = vmatpush2.msra.mxu0 0.0
      %1733 = vmatprep.subr.mxu0 0.0
      %1734 = vmatpush2.msra.mxu0 0.0
      %1735 = vmatprep.subr.mxu0 0.0
      %1736 = vmatpush2.msra.mxu0 0.0
      %1737 = vmatprep.subr.mxu0 0.0
      %1738 = vmatpush2.msra.mxu0 0.0
      %1739 = vmatprep.subr.mxu0 0.0
      %1740 = vmatpush2.msra.mxu0 0.0
      %1741 = vmatprep.subr.mxu0 0.0
      %1742 = vmatpush2.msra.mxu0 0.0
      %1743 = vmatprep.subr.mxu0 0.0
      %1744 = vmatpush2.msra.mxu0 0.0
      %1745 = vmatprep.mubr.f32.mxu0 0.0
      %1746 = vmatmul.mubr.f32.gmra.mxu0 %v1669
      %v1747 = vpop.f32.mrf.mxu0
      %v1748 = vadd.f32 0.0, %v1747
      %v1749 = vpop.f32.mrf.mxu0
      %v1750 = vadd.f32 0.0, %v1749
      %1751 = vmatprep.mubr.f32.mxu0 0.0
      %1752 = vmatmul.mubr.f32.gmra.mxu0 %v1672
      %v1753 = vpop.f32.mrf.mxu0
      %v1754 = vadd.f32 0.0, %v1753
      %v1755 = vpop.f32.mrf.mxu0
      %v1756 = vadd.f32 0.0, %v1755
      %1757 = vmatprep.mubr.f32.mxu0 0.0
      %1758 = vmatmul.mubr.f32.gmra.mxu0 %v1675
      %v1759 = vpop.f32.mrf.mxu0
      %v1760 = vadd.f32 0.0, %v1759
      %v1761 = vpop.f32.mrf.mxu0
      %v1762 = vadd.f32 0.0, %v1761
      %1763 = vdwg.mxu0
      %v1764 = vmul.f32 %v1748, %v649
      %v1765 = vmul.f32 %v1750, %v653
      %v1766 = vmul.f32 %v1754, %v649
      %v1767 = vmul.f32 %v1756, %v653
      %v1768 = vmul.f32 %v1760, %v649
      %v1769 = vmul.f32 %v1762, %v653
      %v1770 = vadd.f32 %v1579, %v1764
      %v1771 = vadd.f32 %v1580, %v1765
      %v1772 = vadd.f32 %v1581, %v1766
      %v1773 = vadd.f32 %v1582, %v1767
      %v1774 = vadd.f32 %v1583, %v1768
      %v1775 = vadd.f32 %v1584, %v1769
      %s1776 = scalar_lea.vmem %s2, 168
      %v1777 = vld [vmem:[%s1776] sm:$0xff]
      %v1778 = vld [vmem:[%s1776 + $0x8] sm:$0xff]
      %v1779 = vld [vmem:[%s1776 + $0x10] sm:$0xf]
      %1780 = vrot.lane.b32.xlu0 %v1346, 112
      %v1781 = vpop.permute.xlu0 %1780
      %1782 = vrot.lane.b32.xlu0 %v1347, 112
      %v1783 = vpop.permute.xlu0 %1782
      %1784 = vrot.lane.b32.xlu0 %v1348, 112
      %v1785 = vpop.permute.xlu0 %1784
      %1786 = vrot.lane.b32.xlu0 %v1349, 112
      %v1787 = vpop.permute.xlu0 %1786
      %1788 = vrot.lane.b32.xlu0 %v1350, 112
      %v1789 = vpop.permute.xlu0 %1788
      %1790 = vrot.lane.b32.xlu0 %v1351, 112
      %v1791 = vpop.permute.xlu0 %1790
      %1792 = vrot.lane.b32.xlu0 %v1352, 112
      %v1793 = vpop.permute.xlu0 %1792
      %1794 = vrot.lane.b32.xlu0 %v1353, 112
      %v1795 = vpop.permute.xlu0 %1794
      %1796 = vrot.lane.b32.xlu0 %v1354, 112
      %v1797 = vpop.permute.xlu0 %1796
      %1798 = vrot.lane.b32.xlu0 %v1355, 112
      %v1799 = vpop.permute.xlu0 %1798
      %1800 = vrot.lane.b32.xlu0 %v1356, 112
      %v1801 = vpop.permute.xlu0 %1800
      %1802 = vrot.lane.b32.xlu0 %v1357, 112
      %v1803 = vpop.permute.xlu0 %1802
      %1804 = vrot.lane.b32.xlu0 %v1358, 112
      %v1805 = vpop.permute.xlu0 %1804
      %1806 = vrot.lane.b32.xlu0 %v1359, 112
      %v1807 = vpop.permute.xlu0 %1806
      %1808 = vrot.lane.b32.xlu0 %v1360, 112
      %v1809 = vpop.permute.xlu0 %1808
      %1810 = vrot.lane.b32.xlu0 %v1361, 112
      %v1811 = vpop.permute.xlu0 %1810
      %1812 = vrot.lane.b32.xlu0 %v1362, 112
      %v1813 = vpop.permute.xlu0 %1812
      %1814 = vrot.lane.b32.xlu0 %v1363, 112
      %v1815 = vpop.permute.xlu0 %1814
      %1816 = vrot.lane.b32.xlu0 %v1364, 112
      %v1817 = vpop.permute.xlu0 %1816
      %1818 = vrot.lane.b32.xlu0 %v1365, 112
      %v1819 = vpop.permute.xlu0 %1818
      %1820 = vrot.lane.b32.xlu0 %v1366, 112
      %v1821 = vpop.permute.xlu0 %1820
      %1822 = vrot.lane.b32.xlu0 %v1367, 112
      %v1823 = vpop.permute.xlu0 %1822
      %1824 = vrot.lane.b32.xlu0 %v1368, 112
      %v1825 = vpop.permute.xlu0 %1824
      %1826 = vrot.lane.b32.xlu0 %v1369, 112
      %v1827 = vpop.permute.xlu0 %1826
      %vm1828 = vcmask 916480
      %v1829 = vsel %vm1828, %v1781, %v1783
      %v1830 = vsel %vm1828, %v1783, %v1785
      %v1831 = vsel %vm1828, %v1787, %v1789
      %v1832 = vsel %vm1828, %v1789, %v1791
      %v1833 = vsel %vm1828, %v1793, %v1795
      %v1834 = vsel %vm1828, %v1795, %v1797
      %v1835 = vsel %vm1828, %v1799, %v1801
      %v1836 = vsel %vm1828, %v1801, %v1803
      %v1837 = vsel %vm1828, %v1805, %v1807
      %v1838 = vsel %vm1828, %v1807, %v1809
      %v1839 = vsel %vm1828, %v1811, %v1813
      %v1840 = vsel %vm1828, %v1813, %v1815
      %v1841 = vsel %vm1828, %v1817, %v1819
      %v1842 = vsel %vm1828, %v1819, %v1821
      %v1843 = vsel %vm1828, %v1823, %v1825
      %v1844 = vsel %vm1828, %v1825, %v1827
      %v1860 = vsel %vm547, %v1777, 0
      %v1863 = vsel %vm547, %v1778, 0
      %v1866 = vsel %vm547, %v1779, 0
      %v1868 = vsel %vm557, %v1843, 0
      %v1870 = vsel %vm557, %v1844, 0
      %1872 = vmatprep.subr.mxu0 0.0
      %1873 = vmatpush1.msra.mxu0 0.0
      %1874 = vmatprep.subr.mxu0 0.0
      %1875 = vmatpush1.msra.mxu0 0.0
      %1876 = vmatprep.subr.mxu0 0.0
      %1877 = vmatpush1.msra.mxu0 0.0
      %1878 = vmatprep.subr.mxu0 0.0
      %1879 = vmatpush1.msra.mxu0 0.0
      %1880 = vmatprep.subr.mxu0 0.0
      %1881 = vmatpush1.msra.mxu0 0.0
      %1882 = vmatprep.subr.mxu0 0.0
      %1883 = vmatpush1.msra.mxu0 0.0
      %1884 = vmatprep.subr.mxu0 0.0
      %1885 = vmatpush1.msra.mxu0 0.0
      %1886 = vmatprep.subr.mxu0 0.0
      %1887 = vmatpush1.msra.mxu0 0.0
      %1888 = vmatprep.subr.mxu0 %v1870
      %1889 = vmatpush1.msra.mxu0 %v1868
      %1890 = vmatprep.subr.mxu0 %v1842
      %1891 = vmatpush1.msra.mxu0 %v1841
      %1892 = vmatprep.subr.mxu0 %v1840
      %1893 = vmatpush1.msra.mxu0 %v1839
      %1894 = vmatprep.subr.mxu0 %v1838
      %1895 = vmatpush1.msra.mxu0 %v1837
      %1896 = vmatprep.subr.mxu0 %v1836
      %1897 = vmatpush1.msra.mxu0 %v1835
      %1898 = vmatprep.subr.mxu0 %v1834
      %1899 = vmatpush1.msra.mxu0 %v1833
      %1900 = vmatprep.subr.mxu0 %v1832
      %1901 = vmatpush1.msra.mxu0 %v1831
      %1902 = vmatprep.subr.mxu0 %v1830
      %1903 = vmatpush1.msra.mxu0 %v1829
      %1904 = vmatprep.subr.mxu0 0.0
      %1905 = vmatpush2.msra.mxu0 0.0
      %1906 = vmatprep.subr.mxu0 0.0
      %1907 = vmatpush2.msra.mxu0 0.0
      %1908 = vmatprep.subr.mxu0 0.0
      %1909 = vmatpush2.msra.mxu0 0.0
      %1910 = vmatprep.subr.mxu0 0.0
      %1911 = vmatpush2.msra.mxu0 0.0
      %1912 = vmatprep.subr.mxu0 0.0
      %1913 = vmatpush2.msra.mxu0 0.0
      %1914 = vmatprep.subr.mxu0 0.0
      %1915 = vmatpush2.msra.mxu0 0.0
      %1916 = vmatprep.subr.mxu0 0.0
      %1917 = vmatpush2.msra.mxu0 0.0
      %1918 = vmatprep.subr.mxu0 0.0
      %1919 = vmatpush2.msra.mxu0 0.0
      %1920 = vmatprep.subr.mxu0 0.0
      %1921 = vmatpush2.msra.mxu0 0.0
      %1922 = vmatprep.subr.mxu0 0.0
      %1923 = vmatpush2.msra.mxu0 0.0
      %1924 = vmatprep.subr.mxu0 0.0
      %1925 = vmatpush2.msra.mxu0 0.0
      %1926 = vmatprep.subr.mxu0 0.0
      %1927 = vmatpush2.msra.mxu0 0.0
      %1928 = vmatprep.subr.mxu0 0.0
      %1929 = vmatpush2.msra.mxu0 0.0
      %1930 = vmatprep.subr.mxu0 0.0
      %1931 = vmatpush2.msra.mxu0 0.0
      %1932 = vmatprep.subr.mxu0 0.0
      %1933 = vmatpush2.msra.mxu0 0.0
      %1934 = vmatprep.subr.mxu0 0.0
      %1935 = vmatpush2.msra.mxu0 0.0
      %1936 = vmatprep.mubr.f32.mxu0 0.0
      %1937 = vmatmul.mubr.f32.gmra.mxu0 %v1860
      %v1938 = vpop.f32.mrf.mxu0
      %v1939 = vadd.f32 0.0, %v1938
      %v1940 = vpop.f32.mrf.mxu0
      %v1941 = vadd.f32 0.0, %v1940
      %1942 = vmatprep.mubr.f32.mxu0 0.0
      %1943 = vmatmul.mubr.f32.gmra.mxu0 %v1863
      %v1944 = vpop.f32.mrf.mxu0
      %v1945 = vadd.f32 0.0, %v1944
      %v1946 = vpop.f32.mrf.mxu0
      %v1947 = vadd.f32 0.0, %v1946
      %1948 = vmatprep.mubr.f32.mxu0 0.0
      %1949 = vmatmul.mubr.f32.gmra.mxu0 %v1866
      %v1950 = vpop.f32.mrf.mxu0
      %v1951 = vadd.f32 0.0, %v1950
      %v1952 = vpop.f32.mrf.mxu0
      %v1953 = vadd.f32 0.0, %v1952
      %1954 = vdwg.mxu0
      %v1955 = vadd.f32 %v1770, %v1939
      %v1956 = vadd.f32 %v1771, %v1941
      %v1957 = vadd.f32 %v1772, %v1945
      %v1958 = vadd.f32 %v1773, %v1947
      %v1959 = vadd.f32 %v1774, %v1951
      %v1960 = vadd.f32 %v1775, %v1953
      %s1961 = scalar_lea.vmem %s2, 192
      %v1962 = vld [vmem:[%s1961] sm:$0xff]
      %v1963 = vld [vmem:[%s1961 + $0x8] sm:$0xff]
      %v1964 = vld [vmem:[%s1961 + $0x10] sm:$0xf]
      %1965 = vrot.lane.b32.xlu0 %v1346, 111
      %v1966 = vpop.permute.xlu0 %1965
      %1967 = vrot.lane.b32.xlu0 %v1347, 111
      %v1968 = vpop.permute.xlu0 %1967
      %1969 = vrot.lane.b32.xlu0 %v1348, 111
      %v1970 = vpop.permute.xlu0 %1969
      %1971 = vrot.lane.b32.xlu0 %v1349, 111
      %v1972 = vpop.permute.xlu0 %1971
      %1973 = vrot.lane.b32.xlu0 %v1350, 111
      %v1974 = vpop.permute.xlu0 %1973
      %1975 = vrot.lane.b32.xlu0 %v1351, 111
      %v1976 = vpop.permute.xlu0 %1975
      %1977 = vrot.lane.b32.xlu0 %v1352, 111
      %v1978 = vpop.permute.xlu0 %1977
      %1979 = vrot.lane.b32.xlu0 %v1353, 111
      %v1980 = vpop.permute.xlu0 %1979
      %1981 = vrot.lane.b32.xlu0 %v1354, 111
      %v1982 = vpop.permute.xlu0 %1981
      %1983 = vrot.lane.b32.xlu0 %v1355, 111
      %v1984 = vpop.permute.xlu0 %1983
      %1985 = vrot.lane.b32.xlu0 %v1356, 111
      %v1986 = vpop.permute.xlu0 %1985
      %1987 = vrot.lane.b32.xlu0 %v1357, 111
      %v1988 = vpop.permute.xlu0 %1987
      %1989 = vrot.lane.b32.xlu0 %v1358, 111
      %v1990 = vpop.permute.xlu0 %1989
      %1991 = vrot.lane.b32.xlu0 %v1359, 111
      %v1992 = vpop.permute.xlu0 %1991
      %1993 = vrot.lane.b32.xlu0 %v1360, 111
      %v1994 = vpop.permute.xlu0 %1993
      %1995 = vrot.lane.b32.xlu0 %v1361, 111
      %v1996 = vpop.permute.xlu0 %1995
      %1997 = vrot.lane.b32.xlu0 %v1362, 111
      %v1998 = vpop.permute.xlu0 %1997
      %1999 = vrot.lane.b32.xlu0 %v1363, 111
      %v2000 = vpop.permute.xlu0 %1999
      %2001 = vrot.lane.b32.xlu0 %v1364, 111
      %v2002 = vpop.permute.xlu0 %2001
      %2003 = vrot.lane.b32.xlu0 %v1365, 111
      %v2004 = vpop.permute.xlu0 %2003
      %2005 = vrot.lane.b32.xlu0 %v1366, 111
      %v2006 = vpop.permute.xlu0 %2005
      %2007 = vrot.lane.b32.xlu0 %v1367, 111
      %v2008 = vpop.permute.xlu0 %2007
      %2009 = vrot.lane.b32.xlu0 %v1368, 111
      %v2010 = vpop.permute.xlu0 %2009
      %2011 = vrot.lane.b32.xlu0 %v1369, 111
      %v2012 = vpop.permute.xlu0 %2011
      %vm2013 = vcmask 908288
      %v2014 = vsel %vm2013, %v1966, %v1968
      %v2015 = vsel %vm2013, %v1968, %v1970
      %v2016 = vsel %vm2013, %v1972, %v1974
      %v2017 = vsel %vm2013, %v1974, %v1976
      %v2018 = vsel %vm2013, %v1978, %v1980
      %v2019 = vsel %vm2013, %v1980, %v1982
      %v2020 = vsel %vm2013, %v1984, %v1986
      %v2021 = vsel %vm2013, %v1986, %v1988
      %v2022 = vsel %vm2013, %v1990, %v1992
      %v2023 = vsel %vm2013, %v1992, %v1994
      %v2024 = vsel %vm2013, %v1996, %v1998
      %v2025 = vsel %vm2013, %v1998, %v2000
      %v2026 = vsel %vm2013, %v2002, %v2004
      %v2027 = vsel %vm2013, %v2004, %v2006
      %v2028 = vsel %vm2013, %v2008, %v2010
      %v2029 = vsel %vm2013, %v2010, %v2012
      %v2045 = vsel %vm547, %v1962, 0
      %v2048 = vsel %vm547, %v1963, 0
      %v2051 = vsel %vm547, %v1964, 0
      %v2053 = vsel %vm557, %v2028, 0
      %v2055 = vsel %vm557, %v2029, 0
      %2057 = vmatprep.subr.mxu0 0.0
      %2058 = vmatpush1.msra.mxu0 0.0
      %2059 = vmatprep.subr.mxu0 0.0
      %2060 = vmatpush1.msra.mxu0 0.0
      %2061 = vmatprep.subr.mxu0 0.0
      %2062 = vmatpush1.msra.mxu0 0.0
      %2063 = vmatprep.subr.mxu0 0.0
      %2064 = vmatpush1.msra.mxu0 0.0
      %2065 = vmatprep.subr.mxu0 0.0
      %2066 = vmatpush1.msra.mxu0 0.0
      %2067 = vmatprep.subr.mxu0 0.0
      %2068 = vmatpush1.msra.mxu0 0.0
      %2069 = vmatprep.subr.mxu0 0.0
      %2070 = vmatpush1.msra.mxu0 0.0
      %2071 = vmatprep.subr.mxu0 0.0
      %2072 = vmatpush1.msra.mxu0 0.0
      %2073 = vmatprep.subr.mxu0 %v2055
      %2074 = vmatpush1.msra.mxu0 %v2053
      %2075 = vmatprep.subr.mxu0 %v2027
      %2076 = vmatpush1.msra.mxu0 %v2026
      %2077 = vmatprep.subr.mxu0 %v2025
      %2078 = vmatpush1.msra.mxu0 %v2024
      %2079 = vmatprep.subr.mxu0 %v2023
      %2080 = vmatpush1.msra.mxu0 %v2022
      %2081 = vmatprep.subr.mxu0 %v2021
      %2082 = vmatpush1.msra.mxu0 %v2020
      %2083 = vmatprep.subr.mxu0 %v2019
      %2084 = vmatpush1.msra.mxu0 %v2018
      %2085 = vmatprep.subr.mxu0 %v2017
      %2086 = vmatpush1.msra.mxu0 %v2016
      %2087 = vmatprep.subr.mxu0 %v2015
      %2088 = vmatpush1.msra.mxu0 %v2014
      %2089 = vmatprep.subr.mxu0 0.0
      %2090 = vmatpush2.msra.mxu0 0.0
      %2091 = vmatprep.subr.mxu0 0.0
      %2092 = vmatpush2.msra.mxu0 0.0
      %2093 = vmatprep.subr.mxu0 0.0
      %2094 = vmatpush2.msra.mxu0 0.0
      %2095 = vmatprep.subr.mxu0 0.0
      %2096 = vmatpush2.msra.mxu0 0.0
      %2097 = vmatprep.subr.mxu0 0.0
      %2098 = vmatpush2.msra.mxu0 0.0
      %2099 = vmatprep.subr.mxu0 0.0
      %2100 = vmatpush2.msra.mxu0 0.0
      %2101 = vmatprep.subr.mxu0 0.0
      %2102 = vmatpush2.msra.mxu0 0.0
      %2103 = vmatprep.subr.mxu0 0.0
      %2104 = vmatpush2.msra.mxu0 0.0
      %2105 = vmatprep.subr.mxu0 0.0
      %2106 = vmatpush2.msra.mxu0 0.0
      %2107 = vmatprep.subr.mxu0 0.0
      %2108 = vmatpush2.msra.mxu0 0.0
      %2109 = vmatprep.subr.mxu0 0.0
      %2110 = vmatpush2.msra.mxu0 0.0
      %2111 = vmatprep.subr.mxu0 0.0
      %2112 = vmatpush2.msra.mxu0 0.0
      %2113 = vmatprep.subr.mxu0 0.0
      %2114 = vmatpush2.msra.mxu0 0.0
      %2115 = vmatprep.subr.mxu0 0.0
      %2116 = vmatpush2.msra.mxu0 0.0
      %2117 = vmatprep.subr.mxu0 0.0
      %2118 = vmatpush2.msra.mxu0 0.0
      %2119 = vmatprep.subr.mxu0 0.0
      %2120 = vmatpush2.msra.mxu0 0.0
      %2121 = vmatprep.mubr.f32.mxu0 0.0
      %2122 = vmatmul.mubr.f32.gmra.mxu0 %v2045
      %v2123 = vpop.f32.mrf.mxu0
      %v2124 = vadd.f32 0.0, %v2123
      %v2125 = vpop.f32.mrf.mxu0
      %v2126 = vadd.f32 0.0, %v2125
      %2127 = vmatprep.mubr.f32.mxu0 0.0
      %2128 = vmatmul.mubr.f32.gmra.mxu0 %v2048
      %v2129 = vpop.f32.mrf.mxu0
      %v2130 = vadd.f32 0.0, %v2129
      %v2131 = vpop.f32.mrf.mxu0
      %v2132 = vadd.f32 0.0, %v2131
      %2133 = vmatprep.mubr.f32.mxu0 0.0
      %2134 = vmatmul.mubr.f32.gmra.mxu0 %v2051
      %v2135 = vpop.f32.mrf.mxu0
      %v2136 = vadd.f32 0.0, %v2135
      %v2137 = vpop.f32.mrf.mxu0
      %v2138 = vadd.f32 0.0, %v2137
      %2139 = vdwg.mxu0
      %v2140 = vmul.f32 %v2124, %v1030
      %v2141 = vmul.f32 %v2126, %v1034
      %v2142 = vmul.f32 %v2130, %v1030
      %v2143 = vmul.f32 %v2132, %v1034
      %v2144 = vmul.f32 %v2136, %v1030
      %v2145 = vmul.f32 %v2138, %v1034
      %v2146 = vadd.f32 %v1955, %v2140
      %v2147 = vadd.f32 %v1956, %v2141
      %v2148 = vadd.f32 %v1957, %v2142
      %v2149 = vadd.f32 %v1958, %v2143
      %v2150 = vadd.f32 %v1959, %v2144
      %v2151 = vadd.f32 %v1960, %v2145
      %v2152 = vld [vmem:[%s3] sm:$0xff]
      %v2153 = vld [vmem:[%s3 + $0x8] sm:$0xff]
      %v2154 = vld [vmem:[%s3 + $0x10] sm:$0xf]
      %2156 = vset.pattern.permute.xlu0 0
      %2157 = vperm.xlu0 %2156, %v2152
      %v2158 = vpop.permute.xlu0 %2157
      %2161 = vset.pattern.permute.xlu0 0
      %2162 = vperm.xlu0 %2161, %v2153
      %v2163 = vpop.permute.xlu0 %2162
      %2166 = vset.pattern.permute.xlu0 0
      %2167 = vperm.xlu0 %2166, %v2154
      %v2168 = vpop.permute.xlu0 %2167
      %v2170 = vadd.f32 %v2146, %v2158
      %v2171 = vadd.f32 %v2147, %v2158
      %v2172 = vadd.f32 %v2148, %v2163
      %v2173 = vadd.f32 %v2149, %v2163
      %v2174 = vadd.f32 %v2150, %v2168
      %v2175 = vadd.f32 %v2151, %v2168
      %v2176 = vmul.f32 %v2170, 0.5
      %v2177 = vmul.f32 %v2171, 0.5
      %v2178 = vmul.f32 %v2172, 0.5
      %v2179 = vmul.f32 %v2173, 0.5
      %v2180 = vmul.f32 %v2174, 0.5
      %v2181 = vmul.f32 %v2175, 0.5
      %v2182 = vmul.f32 %v2170, 0.70710677
      %v2183 = vmul.f32 %v2171, 0.70710677
      %v2184 = vmul.f32 %v2172, 0.70710677
      %v2185 = vmul.f32 %v2173, 0.70710677
      %v2186 = vmul.f32 %v2174, 0.70710677
      %v2187 = vmul.f32 %v2175, 0.70710677
      %v2188 = verf.f32.pop %v2182
      %v2189 = verf.f32.pop %v2183
      %v2190 = verf.f32.pop %v2184
      %v2191 = verf.f32.pop %v2185
      %v2192 = verf.f32.pop %v2186
      %v2193 = verf.f32.pop %v2187
      %v2194 = vadd.f32 %v2188, 1.0
      %v2195 = vadd.f32 %v2189, 1.0
      %v2196 = vadd.f32 %v2190, 1.0
      %v2197 = vadd.f32 %v2191, 1.0
      %v2198 = vadd.f32 %v2192, 1.0
      %v2199 = vadd.f32 %v2193, 1.0
      %v2200 = vmul.f32 %v2176, %v2194
      %v2201 = vmul.f32 %v2177, %v2195
      %v2202 = vmul.f32 %v2178, %v2196
      %v2203 = vmul.f32 %v2179, %v2197
      %v2204 = vmul.f32 %v2180, %v2198
      %v2205 = vmul.f32 %v2181, %v2199
      %2206 = vst [vmem:[#allocation3 + $0x8] sm:$0xff] %v2200
      %2207 = vst [vmem:[#allocation3 + $0x10] sm:$0xff] %v2201
      %2208 = vst [vmem:[#allocation3 + $0x28] sm:$0xff] %v2202
      %2209 = vst [vmem:[#allocation3 + $0x30] sm:$0xff] %v2203
      %2210 = vst [vmem:[#allocation3 + $0x48] sm:$0xf] %v2204
      %2211 = vst [vmem:[#allocation3 + $0x50] sm:$0xf] %v2205
      %v2212 = vld [vmem:[#allocation3] sm:$0xff]
      %v2213 = vld [vmem:[#allocation3 + $0x8] sm:$0xff]
      %v2214 = vld [vmem:[#allocation3 + $0x10] sm:$0xff]
      %v2215 = vld [vmem:[#allocation3 + $0x20] sm:$0xff]
      %v2216 = vld [vmem:[#allocation3 + $0x28] sm:$0xff]
      %v2217 = vld [vmem:[#allocation3 + $0x30] sm:$0xff]
      %v2218 = vld [vmem:[#allocation3 + $0x40] sm:$0xf]
      %v2219 = vld [vmem:[#allocation3 + $0x48] sm:$0xf]
      %v2220 = vld [vmem:[#allocation3 + $0x50] sm:$0xf]
      %2221 = vrot.lane.b32.xlu0 %v649, 111
      %v2222 = vpop.permute.xlu0 %2221
      %2223 = vrot.lane.b32.xlu0 %v653, 111
      %v2224 = vpop.permute.xlu0 %2223
      %v2225 = vsel %vm2013, %v2222, %v2224
      %v2229 = vmul.f32 %v2212, %v2222
      %v2230 = vmul.f32 %v2213, %v2225
      %v2231 = vmul.f32 %v2214, %v2224
      %v2232 = vmul.f32 %v2215, %v2222
      %v2233 = vmul.f32 %v2216, %v2225
      %v2234 = vmul.f32 %v2217, %v2224
      %v2235 = vmul.f32 %v2218, %v2222
      %v2236 = vmul.f32 %v2219, %v2225
      %v2237 = vmul.f32 %v2220, %v2224
      %v2238 = vld [vmem:[%s4] sm:$0xff]
      %v2239 = vld [vmem:[%s4 + $0x8] sm:$0xff]
      %v2240 = vld [vmem:[%s4 + $0x10] sm:$0xff]
      %v2241 = vld [vmem:[%s4 + $0x18] sm:$0xff]
      %v2242 = vld [vmem:[%s4 + $0x20] sm:$0xff]
      %v2243 = vld [vmem:[%s4 + $0x28] sm:$0xff]
      %v2244 = vld [vmem:[%s4 + $0x30] sm:$0xff]
      %v2245 = vld [vmem:[%s4 + $0x38] sm:$0xf]
      %s2246 = scalar_lea.vmem %s4, 64
      %v2247 = vld [vmem:[%s2246] sm:$0xff]
      %v2248 = vld [vmem:[%s2246 + $0x8] sm:$0xff]
      %v2249 = vld [vmem:[%s2246 + $0x10] sm:$0xff]
      %v2250 = vld [vmem:[%s2246 + $0x18] sm:$0xff]
      %v2251 = vld [vmem:[%s2246 + $0x20] sm:$0xff]
      %v2252 = vld [vmem:[%s2246 + $0x28] sm:$0xff]
      %v2253 = vld [vmem:[%s2246 + $0x30] sm:$0xff]
      %v2254 = vld [vmem:[%s2246 + $0x38] sm:$0xf]
      %2264 = vrot.lane.b32.xlu0 %v2212, 16
      %v2265 = vpop.permute.xlu0 %2264
      %2266 = vrot.lane.b32.xlu0 %v2213, 16
      %v2267 = vpop.permute.xlu0 %2266
      %2268 = vrot.lane.b32.xlu0 %v2214, 16
      %v2269 = vpop.permute.xlu0 %2268
      %2270 = vrot.lane.b32.xlu0 %v2215, 16
      %v2271 = vpop.permute.xlu0 %2270
      %2272 = vrot.lane.b32.xlu0 %v2216, 16
      %v2273 = vpop.permute.xlu0 %2272
      %2274 = vrot.lane.b32.xlu0 %v2217, 16
      %v2275 = vpop.permute.xlu0 %2274
      %2276 = vrot.lane.b32.xlu0 %v2218, 16
      %v2277 = vpop.permute.xlu0 %2276
      %2278 = vrot.lane.b32.xlu0 %v2219, 16
      %v2279 = vpop.permute.xlu0 %2278
      %2280 = vrot.lane.b32.xlu0 %v2220, 16
      %v2281 = vpop.permute.xlu0 %2280
      %v2282 = vsel %vm714, %v2265, %v2267
      %v2283 = vsel %vm714, %v2267, %v2269
      %v2284 = vsel %vm714, %v2271, %v2273
      %v2285 = vsel %vm714, %v2273, %v2275
      %v2286 = vsel %vm714, %v2277, %v2279
      %v2287 = vsel %vm714, %v2279, %v2281
      %vm2292 = vcmask 162816
      %v2294 = vsel %vm2292, %v2247, 0
      %v2297 = vsel %vm2292, %v2248, 0
      %v2300 = vsel %vm2292, %v2249, 0
      %v2303 = vsel %vm2292, %v2250, 0
      %v2306 = vsel %vm2292, %v2251, 0
      %v2309 = vsel %vm2292, %v2252, 0
      %v2312 = vsel %vm2292, %v2253, 0
      %v2315 = vsel %vm2292, %v2254, 0
      %v2317 = vsel %vm557, %v2286, 0
      %v2319 = vsel %vm557, %v2287, 0
      %2321 = vmatprep.subr.mxu0 0.0
      %2322 = vmatpush1.msra.mxu0 0.0
      %2323 = vmatprep.subr.mxu0 0.0
      %2324 = vmatpush1.msra.mxu0 0.0
      %2325 = vmatprep.subr.mxu0 0.0
      %2326 = vmatpush1.msra.mxu0 0.0
      %2327 = vmatprep.subr.mxu0 0.0
      %2328 = vmatpush1.msra.mxu0 0.0
      %2329 = vmatprep.subr.mxu0 0.0
      %2330 = vmatpush1.msra.mxu0 0.0
      %2331 = vmatprep.subr.mxu0 0.0
      %2332 = vmatpush1.msra.mxu0 0.0
      %2333 = vmatprep.subr.mxu0 0.0
      %2334 = vmatpush1.msra.mxu0 0.0
      %2335 = vmatprep.subr.mxu0 0.0
      %2336 = vmatpush1.msra.mxu0 0.0
      %2337 = vmatprep.subr.mxu0 0.0
      %2338 = vmatpush1.msra.mxu0 0.0
      %2339 = vmatprep.subr.mxu0 0.0
      %2340 = vmatpush1.msra.mxu0 0.0
      %2341 = vmatprep.subr.mxu0 0.0
      %2342 = vmatpush1.msra.mxu0 0.0
      %2343 = vmatprep.subr.mxu0 0.0
      %2344 = vmatpush1.msra.mxu0 0.0
      %2345 = vmatprep.subr.mxu0 0.0
      %2346 = vmatpush1.msra.mxu0 0.0
      %2347 = vmatprep.subr.mxu0 %v2319
      %2348 = vmatpush1.msra.mxu0 %v2317
      %2349 = vmatprep.subr.mxu0 %v2285
      %2350 = vmatpush1.msra.mxu0 %v2284
      %2351 = vmatprep.subr.mxu0 %v2283
      %2352 = vmatpush1.msra.mxu0 %v2282
      %2353 = vmatprep.subr.mxu0 0.0
      %2354 = vmatpush2.msra.mxu0 0.0
      %2355 = vmatprep.subr.mxu0 0.0
      %2356 = vmatpush2.msra.mxu0 0.0
      %2357 = vmatprep.subr.mxu0 0.0
      %2358 = vmatpush2.msra.mxu0 0.0
      %2359 = vmatprep.subr.mxu0 0.0
      %2360 = vmatpush2.msra.mxu0 0.0
      %2361 = vmatprep.subr.mxu0 0.0
      %2362 = vmatpush2.msra.mxu0 0.0
      %2363 = vmatprep.subr.mxu0 0.0
      %2364 = vmatpush2.msra.mxu0 0.0
      %2365 = vmatprep.subr.mxu0 0.0
      %2366 = vmatpush2.msra.mxu0 0.0
      %2367 = vmatprep.subr.mxu0 0.0
      %2368 = vmatpush2.msra.mxu0 0.0
      %2369 = vmatprep.subr.mxu0 0.0
      %2370 = vmatpush2.msra.mxu0 0.0
      %2371 = vmatprep.subr.mxu0 0.0
      %2372 = vmatpush2.msra.mxu0 0.0
      %2373 = vmatprep.subr.mxu0 0.0
      %2374 = vmatpush2.msra.mxu0 0.0
      %2375 = vmatprep.subr.mxu0 0.0
      %2376 = vmatpush2.msra.mxu0 0.0
      %2377 = vmatprep.subr.mxu0 0.0
      %2378 = vmatpush2.msra.mxu0 0.0
      %2379 = vmatprep.subr.mxu0 0.0
      %2380 = vmatpush2.msra.mxu0 0.0
      %2381 = vmatprep.subr.mxu0 0.0
      %2382 = vmatpush2.msra.mxu0 0.0
      %2383 = vmatprep.subr.mxu0 0.0
      %2384 = vmatpush2.msra.mxu0 0.0
      %2385 = vmatprep.mubr.f32.mxu0 0.0
      %2386 = vmatmul.mubr.f32.gmra.mxu0 %v2294
      %v2387 = vpop.f32.mrf.mxu0
      %v2388 = vadd.f32 0.0, %v2387
      %v2389 = vpop.f32.mrf.mxu0
      %v2390 = vadd.f32 0.0, %v2389
      %2391 = vmatprep.mubr.f32.mxu0 0.0
      %2392 = vmatmul.mubr.f32.gmra.mxu0 %v2297
      %v2393 = vpop.f32.mrf.mxu0
      %v2394 = vadd.f32 0.0, %v2393
      %v2395 = vpop.f32.mrf.mxu0
      %v2396 = vadd.f32 0.0, %v2395
      %2397 = vmatprep.mubr.f32.mxu0 0.0
      %2398 = vmatmul.mubr.f32.gmra.mxu0 %v2300
      %v2399 = vpop.f32.mrf.mxu0
      %v2400 = vadd.f32 0.0, %v2399
      %v2401 = vpop.f32.mrf.mxu0
      %v2402 = vadd.f32 0.0, %v2401
      %2403 = vmatprep.mubr.f32.mxu0 0.0
      %2404 = vmatmul.mubr.f32.gmra.mxu0 %v2303
      %v2405 = vpop.f32.mrf.mxu0
      %v2406 = vadd.f32 0.0, %v2405
      %v2407 = vpop.f32.mrf.mxu0
      %v2408 = vadd.f32 0.0, %v2407
      %2409 = vmatprep.mubr.f32.mxu0 0.0
      %2410 = vmatmul.mubr.f32.gmra.mxu0 %v2306
      %v2411 = vpop.f32.mrf.mxu0
      %v2412 = vadd.f32 0.0, %v2411
      %v2413 = vpop.f32.mrf.mxu0
      %v2414 = vadd.f32 0.0, %v2413
      %2415 = vmatprep.mubr.f32.mxu0 0.0
      %2416 = vmatmul.mubr.f32.gmra.mxu0 %v2309
      %v2417 = vpop.f32.mrf.mxu0
      %v2418 = vadd.f32 0.0, %v2417
      %v2419 = vpop.f32.mrf.mxu0
      %v2420 = vadd.f32 0.0, %v2419
      %2421 = vmatprep.mubr.f32.mxu0 0.0
      %2422 = vmatmul.mubr.f32.gmra.mxu0 %v2312
      %v2423 = vpop.f32.mrf.mxu0
      %v2424 = vadd.f32 0.0, %v2423
      %v2425 = vpop.f32.mrf.mxu0
      %v2426 = vadd.f32 0.0, %v2425
      %2427 = vmatprep.mubr.f32.mxu0 0.0
      %2428 = vmatmul.mubr.f32.gmra.mxu0 %v2315
      %v2429 = vpop.f32.mrf.mxu0
      %v2430 = vadd.f32 0.0, %v2429
      %v2431 = vpop.f32.mrf.mxu0
      %v2432 = vadd.f32 0.0, %v2431
      %2433 = vdwg.mxu0
      %2443 = vrot.lane.b32.xlu0 %v2229, 17
      %v2444 = vpop.permute.xlu0 %2443
      %2445 = vrot.lane.b32.xlu0 %v2230, 17
      %v2446 = vpop.permute.xlu0 %2445
      %2447 = vrot.lane.b32.xlu0 %v2231, 17
      %v2448 = vpop.permute.xlu0 %2447
      %2449 = vrot.lane.b32.xlu0 %v2232, 17
      %v2450 = vpop.permute.xlu0 %2449
      %2451 = vrot.lane.b32.xlu0 %v2233, 17
      %v2452 = vpop.permute.xlu0 %2451
      %2453 = vrot.lane.b32.xlu0 %v2234, 17
      %v2454 = vpop.permute.xlu0 %2453
      %2455 = vrot.lane.b32.xlu0 %v2235, 17
      %v2456 = vpop.permute.xlu0 %2455
      %2457 = vrot.lane.b32.xlu0 %v2236, 17
      %v2458 = vpop.permute.xlu0 %2457
      %2459 = vrot.lane.b32.xlu0 %v2237, 17
      %v2460 = vpop.permute.xlu0 %2459
      %v2461 = vsel %vm516, %v2444, %v2446
      %v2462 = vsel %vm516, %v2446, %v2448
      %v2463 = vsel %vm516, %v2450, %v2452
      %v2464 = vsel %vm516, %v2452, %v2454
      %v2465 = vsel %vm516, %v2456, %v2458
      %v2466 = vsel %vm516, %v2458, %v2460
      %v2472 = vsel %vm2292, %v2238, 0
      %v2475 = vsel %vm2292, %v2239, 0
      %v2478 = vsel %vm2292, %v2240, 0
      %v2481 = vsel %vm2292, %v2241, 0
      %v2484 = vsel %vm2292, %v2242, 0
      %v2487 = vsel %vm2292, %v2243, 0
      %v2490 = vsel %vm2292, %v2244, 0
      %v2493 = vsel %vm2292, %v2245, 0
      %v2495 = vsel %vm557, %v2465, 0
      %v2497 = vsel %vm557, %v2466, 0
      %2499 = vmatprep.subr.mxu0 0.0
      %2500 = vmatpush1.msra.mxu0 0.0
      %2501 = vmatprep.subr.mxu0 0.0
      %2502 = vmatpush1.msra.mxu0 0.0
      %2503 = vmatprep.subr.mxu0 0.0
      %2504 = vmatpush1.msra.mxu0 0.0
      %2505 = vmatprep.subr.mxu0 0.0
      %2506 = vmatpush1.msra.mxu0 0.0
      %2507 = vmatprep.subr.mxu0 0.0
      %2508 = vmatpush1.msra.mxu0 0.0
      %2509 = vmatprep.subr.mxu0 0.0
      %2510 = vmatpush1.msra.mxu0 0.0
      %2511 = vmatprep.subr.mxu0 0.0
      %2512 = vmatpush1.msra.mxu0 0.0
      %2513 = vmatprep.subr.mxu0 0.0
      %2514 = vmatpush1.msra.mxu0 0.0
      %2515 = vmatprep.subr.mxu0 0.0
      %2516 = vmatpush1.msra.mxu0 0.0
      %2517 = vmatprep.subr.mxu0 0.0
      %2518 = vmatpush1.msra.mxu0 0.0
      %2519 = vmatprep.subr.mxu0 0.0
      %2520 = vmatpush1.msra.mxu0 0.0
      %2521 = vmatprep.subr.mxu0 0.0
      %2522 = vmatpush1.msra.mxu0 0.0
      %2523 = vmatprep.subr.mxu0 0.0
      %2524 = vmatpush1.msra.mxu0 0.0
      %2525 = vmatprep.subr.mxu0 %v2497
      %2526 = vmatpush1.msra.mxu0 %v2495
      %2527 = vmatprep.subr.mxu0 %v2464
      %2528 = vmatpush1.msra.mxu0 %v2463
      %2529 = vmatprep.subr.mxu0 %v2462
      %2530 = vmatpush1.msra.mxu0 %v2461
      %2531 = vmatprep.subr.mxu0 0.0
      %2532 = vmatpush2.msra.mxu0 0.0
      %2533 = vmatprep.subr.mxu0 0.0
      %2534 = vmatpush2.msra.mxu0 0.0
      %2535 = vmatprep.subr.mxu0 0.0
      %2536 = vmatpush2.msra.mxu0 0.0
      %2537 = vmatprep.subr.mxu0 0.0
      %2538 = vmatpush2.msra.mxu0 0.0
      %2539 = vmatprep.subr.mxu0 0.0
      %2540 = vmatpush2.msra.mxu0 0.0
      %2541 = vmatprep.subr.mxu0 0.0
      %2542 = vmatpush2.msra.mxu0 0.0
      %2543 = vmatprep.subr.mxu0 0.0
      %2544 = vmatpush2.msra.mxu0 0.0
      %2545 = vmatprep.subr.mxu0 0.0
      %2546 = vmatpush2.msra.mxu0 0.0
      %2547 = vmatprep.subr.mxu0 0.0
      %2548 = vmatpush2.msra.mxu0 0.0
      %2549 = vmatprep.subr.mxu0 0.0
      %2550 = vmatpush2.msra.mxu0 0.0
      %2551 = vmatprep.subr.mxu0 0.0
      %2552 = vmatpush2.msra.mxu0 0.0
      %2553 = vmatprep.subr.mxu0 0.0
      %2554 = vmatpush2.msra.mxu0 0.0
      %2555 = vmatprep.subr.mxu0 0.0
      %2556 = vmatpush2.msra.mxu0 0.0
      %2557 = vmatprep.subr.mxu0 0.0
      %2558 = vmatpush2.msra.mxu0 0.0
      %2559 = vmatprep.subr.mxu0 0.0
      %2560 = vmatpush2.msra.mxu0 0.0
      %2561 = vmatprep.subr.mxu0 0.0
      %2562 = vmatpush2.msra.mxu0 0.0
      %2563 = vmatprep.mubr.f32.mxu0 0.0
      %2564 = vmatmul.mubr.f32.gmra.mxu0 %v2472
      %v2565 = vpop.f32.mrf.mxu0
      %v2566 = vadd.f32 %v2388, %v2565
      %v2567 = vpop.f32.mrf.mxu0
      %v2568 = vadd.f32 %v2390, %v2567
      %2569 = vmatprep.mubr.f32.mxu0 0.0
      %2570 = vmatmul.mubr.f32.gmra.mxu0 %v2475
      %v2571 = vpop.f32.mrf.mxu0
      %v2572 = vadd.f32 %v2394, %v2571
      %v2573 = vpop.f32.mrf.mxu0
      %v2574 = vadd.f32 %v2396, %v2573
      %2575 = vmatprep.mubr.f32.mxu0 0.0
      %2576 = vmatmul.mubr.f32.gmra.mxu0 %v2478
      %v2577 = vpop.f32.mrf.mxu0
      %v2578 = vadd.f32 %v2400, %v2577
      %v2579 = vpop.f32.mrf.mxu0
      %v2580 = vadd.f32 %v2402, %v2579
      %2581 = vmatprep.mubr.f32.mxu0 0.0
      %2582 = vmatmul.mubr.f32.gmra.mxu0 %v2481
      %v2583 = vpop.f32.mrf.mxu0
      %v2584 = vadd.f32 %v2406, %v2583
      %v2585 = vpop.f32.mrf.mxu0
      %v2586 = vadd.f32 %v2408, %v2585
      %2587 = vmatprep.mubr.f32.mxu0 0.0
      %2588 = vmatmul.mubr.f32.gmra.mxu0 %v2484
      %v2589 = vpop.f32.mrf.mxu0
      %v2590 = vadd.f32 %v2412, %v2589
      %v2591 = vpop.f32.mrf.mxu0
      %v2592 = vadd.f32 %v2414, %v2591
      %2593 = vmatprep.mubr.f32.mxu0 0.0
      %2594 = vmatmul.mubr.f32.gmra.mxu0 %v2487
      %v2595 = vpop.f32.mrf.mxu0
      %v2596 = vadd.f32 %v2418, %v2595
      %v2597 = vpop.f32.mrf.mxu0
      %v2598 = vadd.f32 %v2420, %v2597
      %2599 = vmatprep.mubr.f32.mxu0 0.0
      %2600 = vmatmul.mubr.f32.gmra.mxu0 %v2490
      %v2601 = vpop.f32.mrf.mxu0
      %v2602 = vadd.f32 %v2424, %v2601
      %v2603 = vpop.f32.mrf.mxu0
      %v2604 = vadd.f32 %v2426, %v2603
      %2605 = vmatprep.mubr.f32.mxu0 0.0
      %2606 = vmatmul.mubr.f32.gmra.mxu0 %v2493
      %v2607 = vpop.f32.mrf.mxu0
      %v2608 = vadd.f32 %v2430, %v2607
      %v2609 = vpop.f32.mrf.mxu0
      %v2610 = vadd.f32 %v2432, %v2609
      %2611 = vdwg.mxu0
      %2612 = vrot.lane.b32.xlu0 %v1030, 113
      %v2613 = vpop.permute.xlu0 %2612
      %2614 = vrot.lane.b32.xlu0 %v1034, 113
      %v2615 = vpop.permute.xlu0 %2614
      %v2616 = vsel %vm1637, %v2613, %v2615
      %v2620 = vmul.f32 %v2212, %v2613
      %v2621 = vmul.f32 %v2213, %v2616
      %v2622 = vmul.f32 %v2214, %v2615
      %v2623 = vmul.f32 %v2215, %v2613
      %v2624 = vmul.f32 %v2216, %v2616
      %v2625 = vmul.f32 %v2217, %v2615
      %v2626 = vmul.f32 %v2218, %v2613
      %v2627 = vmul.f32 %v2219, %v2616
      %v2628 = vmul.f32 %v2220, %v2615
      %s2629 = scalar_lea.vmem %s4, 128
      %v2630 = vld [vmem:[%s2629] sm:$0xff]
      %v2631 = vld [vmem:[%s2629 + $0x8] sm:$0xff]
      %v2632 = vld [vmem:[%s2629 + $0x10] sm:$0xff]
      %v2633 = vld [vmem:[%s2629 + $0x18] sm:$0xff]
      %v2634 = vld [vmem:[%s2629 + $0x20] sm:$0xff]
      %v2635 = vld [vmem:[%s2629 + $0x28] sm:$0xff]
      %v2636 = vld [vmem:[%s2629 + $0x30] sm:$0xff]
      %v2637 = vld [vmem:[%s2629 + $0x38] sm:$0xf]
      %2647 = vrot.lane.b32.xlu0 %v2620, 15
      %v2648 = vpop.permute.xlu0 %2647
      %2649 = vrot.lane.b32.xlu0 %v2621, 15
      %v2650 = vpop.permute.xlu0 %2649
      %2651 = vrot.lane.b32.xlu0 %v2622, 15
      %v2652 = vpop.permute.xlu0 %2651
      %2653 = vrot.lane.b32.xlu0 %v2623, 15
      %v2654 = vpop.permute.xlu0 %2653
      %2655 = vrot.lane.b32.xlu0 %v2624, 15
      %v2656 = vpop.permute.xlu0 %2655
      %2657 = vrot.lane.b32.xlu0 %v2625, 15
      %v2658 = vpop.permute.xlu0 %2657
      %2659 = vrot.lane.b32.xlu0 %v2626, 15
      %v2660 = vpop.permute.xlu0 %2659
      %2661 = vrot.lane.b32.xlu0 %v2627, 15
      %v2662 = vpop.permute.xlu0 %2661
      %2663 = vrot.lane.b32.xlu0 %v2628, 15
      %v2664 = vpop.permute.xlu0 %2663
      %v2665 = vsel %vm899, %v2648, %v2650
      %v2666 = vsel %vm899, %v2650, %v2652
      %v2667 = vsel %vm899, %v2654, %v2656
      %v2668 = vsel %vm899, %v2656, %v2658
      %v2669 = vsel %vm899, %v2660, %v2662
      %v2670 = vsel %vm899, %v2662, %v2664
      %v2676 = vsel %vm2292, %v2630, 0
      %v2679 = vsel %vm2292, %v2631, 0
      %v2682 = vsel %vm2292, %v2632, 0
      %v2685 = vsel %vm2292, %v2633, 0
      %v2688 = vsel %vm2292, %v2634, 0
      %v2691 = vsel %vm2292, %v2635, 0
      %v2694 = vsel %vm2292, %v2636, 0
      %v2697 = vsel %vm2292, %v2637, 0
      %v2699 = vsel %vm557, %v2669, 0
      %v2701 = vsel %vm557, %v2670, 0
      %2703 = vmatprep.subr.mxu0 0.0
      %2704 = vmatpush1.msra.mxu0 0.0
      %2705 = vmatprep.subr.mxu0 0.0
      %2706 = vmatpush1.msra.mxu0 0.0
      %2707 = vmatprep.subr.mxu0 0.0
      %2708 = vmatpush1.msra.mxu0 0.0
      %2709 = vmatprep.subr.mxu0 0.0
      %2710 = vmatpush1.msra.mxu0 0.0
      %2711 = vmatprep.subr.mxu0 0.0
      %2712 = vmatpush1.msra.mxu0 0.0
      %2713 = vmatprep.subr.mxu0 0.0
      %2714 = vmatpush1.msra.mxu0 0.0
      %2715 = vmatprep.subr.mxu0 0.0
      %2716 = vmatpush1.msra.mxu0 0.0
      %2717 = vmatprep.subr.mxu0 0.0
      %2718 = vmatpush1.msra.mxu0 0.0
      %2719 = vmatprep.subr.mxu0 0.0
      %2720 = vmatpush1.msra.mxu0 0.0
      %2721 = vmatprep.subr.mxu0 0.0
      %2722 = vmatpush1.msra.mxu0 0.0
      %2723 = vmatprep.subr.mxu0 0.0
      %2724 = vmatpush1.msra.mxu0 0.0
      %2725 = vmatprep.subr.mxu0 0.0
      %2726 = vmatpush1.msra.mxu0 0.0
      %2727 = vmatprep.subr.mxu0 0.0
      %2728 = vmatpush1.msra.mxu0 0.0
      %2729 = vmatprep.subr.mxu0 %v2701
      %2730 = vmatpush1.msra.mxu0 %v2699
      %2731 = vmatprep.subr.mxu0 %v2668
      %2732 = vmatpush1.msra.mxu0 %v2667
      %2733 = vmatprep.subr.mxu0 %v2666
      %2734 = vmatpush1.msra.mxu0 %v2665
      %2735 = vmatprep.subr.mxu0 0.0
      %2736 = vmatpush2.msra.mxu0 0.0
      %2737 = vmatprep.subr.mxu0 0.0
      %2738 = vmatpush2.msra.mxu0 0.0
      %2739 = vmatprep.subr.mxu0 0.0
      %2740 = vmatpush2.msra.mxu0 0.0
      %2741 = vmatprep.subr.mxu0 0.0
      %2742 = vmatpush2.msra.mxu0 0.0
      %2743 = vmatprep.subr.mxu0 0.0
      %2744 = vmatpush2.msra.mxu0 0.0
      %2745 = vmatprep.subr.mxu0 0.0
      %2746 = vmatpush2.msra.mxu0 0.0
      %2747 = vmatprep.subr.mxu0 0.0
      %2748 = vmatpush2.msra.mxu0 0.0
      %2749 = vmatprep.subr.mxu0 0.0
      %2750 = vmatpush2.msra.mxu0 0.0
      %2751 = vmatprep.subr.mxu0 0.0
      %2752 = vmatpush2.msra.mxu0 0.0
      %2753 = vmatprep.subr.mxu0 0.0
      %2754 = vmatpush2.msra.mxu0 0.0
      %2755 = vmatprep.subr.mxu0 0.0
      %2756 = vmatpush2.msra.mxu0 0.0
      %2757 = vmatprep.subr.mxu0 0.0
      %2758 = vmatpush2.msra.mxu0 0.0
      %2759 = vmatprep.subr.mxu0 0.0
      %2760 = vmatpush2.msra.mxu0 0.0
      %2761 = vmatprep.subr.mxu0 0.0
      %2762 = vmatpush2.msra.mxu0 0.0
      %2763 = vmatprep.subr.mxu0 0.0
      %2764 = vmatpush2.msra.mxu0 0.0
      %2765 = vmatprep.subr.mxu0 0.0
      %2766 = vmatpush2.msra.mxu0 0.0
      %2767 = vmatprep.mubr.f32.mxu0 0.0
      %2768 = vmatmul.mubr.f32.gmra.mxu0 %v2676
      %v2769 = vpop.f32.mrf.mxu0
      %v2770 = vadd.f32 0.0, %v2769
      %v2771 = vpop.f32.mrf.mxu0
      %v2772 = vadd.f32 0.0, %v2771
      %2773 = vmatprep.mubr.f32.mxu0 0.0
      %2774 = vmatmul.mubr.f32.gmra.mxu0 %v2679
      %v2775 = vpop.f32.mrf.mxu0
      %v2776 = vadd.f32 0.0, %v2775
      %v2777 = vpop.f32.mrf.mxu0
      %v2778 = vadd.f32 0.0, %v2777
      %2779 = vmatprep.mubr.f32.mxu0 0.0
      %2780 = vmatmul.mubr.f32.gmra.mxu0 %v2682
      %v2781 = vpop.f32.mrf.mxu0
      %v2782 = vadd.f32 0.0, %v2781
      %v2783 = vpop.f32.mrf.mxu0
      %v2784 = vadd.f32 0.0, %v2783
      %2785 = vmatprep.mubr.f32.mxu0 0.0
      %2786 = vmatmul.mubr.f32.gmra.mxu0 %v2685
      %v2787 = vpop.f32.mrf.mxu0
      %v2788 = vadd.f32 0.0, %v2787
      %v2789 = vpop.f32.mrf.mxu0
      %v2790 = vadd.f32 0.0, %v2789
      %2791 = vmatprep.mubr.f32.mxu0 0.0
      %2792 = vmatmul.mubr.f32.gmra.mxu0 %v2688
      %v2793 = vpop.f32.mrf.mxu0
      %v2794 = vadd.f32 0.0, %v2793
      %v2795 = vpop.f32.mrf.mxu0
      %v2796 = vadd.f32 0.0, %v2795
      %2797 = vmatprep.mubr.f32.mxu0 0.0
      %2798 = vmatmul.mubr.f32.gmra.mxu0 %v2691
      %v2799 = vpop.f32.mrf.mxu0
      %v2800 = vadd.f32 0.0, %v2799
      %v2801 = vpop.f32.mrf.mxu0
      %v2802 = vadd.f32 0.0, %v2801
      %2803 = vmatprep.mubr.f32.mxu0 0.0
      %2804 = vmatmul.mubr.f32.gmra.mxu0 %v2694
      %v2805 = vpop.f32.mrf.mxu0
      %v2806 = vadd.f32 0.0, %v2805
      %v2807 = vpop.f32.mrf.mxu0
      %v2808 = vadd.f32 0.0, %v2807
      %2809 = vmatprep.mubr.f32.mxu0 0.0
      %2810 = vmatmul.mubr.f32.gmra.mxu0 %v2697
      %v2811 = vpop.f32.mrf.mxu0
      %v2812 = vadd.f32 0.0, %v2811
      %v2813 = vpop.f32.mrf.mxu0
      %v2814 = vadd.f32 0.0, %v2813
      %2815 = vdwg.mxu0
      %v2816 = vadd.f32 %v2566, %v2770
      %v2817 = vadd.f32 %v2568, %v2772
      %v2818 = vadd.f32 %v2572, %v2776
      %v2819 = vadd.f32 %v2574, %v2778
      %v2820 = vadd.f32 %v2578, %v2782
      %v2821 = vadd.f32 %v2580, %v2784
      %v2822 = vadd.f32 %v2584, %v2788
      %v2823 = vadd.f32 %v2586, %v2790
      %v2824 = vadd.f32 %v2590, %v2794
      %v2825 = vadd.f32 %v2592, %v2796
      %v2826 = vadd.f32 %v2596, %v2800
      %v2827 = vadd.f32 %v2598, %v2802
      %v2828 = vadd.f32 %v2602, %v2806
      %v2829 = vadd.f32 %v2604, %v2808
      %v2830 = vadd.f32 %v2608, %v2812
      %v2831 = vadd.f32 %v2610, %v2814
      %2832 = vrot.lane.b32.xlu0 %v649, 127
      %v2833 = vpop.permute.xlu0 %2832
      %2834 = vrot.lane.b32.xlu0 %v653, 127
      %v2835 = vpop.permute.xlu0 %2834
      %v2836 = vsel %vm1446, %v2833, %v2835
      %v2840 = vmul.f32 %v2212, %v2833
      %v2841 = vmul.f32 %v2213, %v2836
      %v2842 = vmul.f32 %v2214, %v2835
      %v2843 = vmul.f32 %v2215, %v2833
      %v2844 = vmul.f32 %v2216, %v2836
      %v2845 = vmul.f32 %v2217, %v2835
      %v2846 = vmul.f32 %v2218, %v2833
      %v2847 = vmul.f32 %v2219, %v2836
      %v2848 = vmul.f32 %v2220, %v2835
      %s2849 = scalar_lea.vmem %s4, 192
      %v2850 = vld [vmem:[%s2849] sm:$0xff]
      %v2851 = vld [vmem:[%s2849 + $0x8] sm:$0xff]
      %v2852 = vld [vmem:[%s2849 + $0x10] sm:$0xff]
      %v2853 = vld [vmem:[%s2849 + $0x18] sm:$0xff]
      %v2854 = vld [vmem:[%s2849 + $0x20] sm:$0xff]
      %v2855 = vld [vmem:[%s2849 + $0x28] sm:$0xff]
      %v2856 = vld [vmem:[%s2849 + $0x30] sm:$0xff]
      %v2857 = vld [vmem:[%s2849 + $0x38] sm:$0xf]
      %2867 = vrot.lane.b32.xlu0 %v2840, 1
      %v2868 = vpop.permute.xlu0 %2867
      %2869 = vrot.lane.b32.xlu0 %v2841, 1
      %v2870 = vpop.permute.xlu0 %2869
      %2871 = vrot.lane.b32.xlu0 %v2842, 1
      %v2872 = vpop.permute.xlu0 %2871
      %2873 = vrot.lane.b32.xlu0 %v2843, 1
      %v2874 = vpop.permute.xlu0 %2873
      %2875 = vrot.lane.b32.xlu0 %v2844, 1
      %v2876 = vpop.permute.xlu0 %2875
      %2877 = vrot.lane.b32.xlu0 %v2845, 1
      %v2878 = vpop.permute.xlu0 %2877
      %2879 = vrot.lane.b32.xlu0 %v2846, 1
      %v2880 = vpop.permute.xlu0 %2879
      %2881 = vrot.lane.b32.xlu0 %v2847, 1
      %v2882 = vpop.permute.xlu0 %2881
      %2883 = vrot.lane.b32.xlu0 %v2848, 1
      %v2884 = vpop.permute.xlu0 %2883
      %v2885 = vsel %vm1101, %v2868, %v2870
      %v2886 = vsel %vm1101, %v2870, %v2872
      %v2887 = vsel %vm1101, %v2874, %v2876
      %v2888 = vsel %vm1101, %v2876, %v2878
      %v2889 = vsel %vm1101, %v2880, %v2882
      %v2890 = vsel %vm1101, %v2882, %v2884
      %v2896 = vsel %vm2292, %v2850, 0
      %v2899 = vsel %vm2292, %v2851, 0
      %v2902 = vsel %vm2292, %v2852, 0
      %v2905 = vsel %vm2292, %v2853, 0
      %v2908 = vsel %vm2292, %v2854, 0
      %v2911 = vsel %vm2292, %v2855, 0
      %v2914 = vsel %vm2292, %v2856, 0
      %v2917 = vsel %vm2292, %v2857, 0
      %v2919 = vsel %vm557, %v2889, 0
      %v2921 = vsel %vm557, %v2890, 0
      %2923 = vmatprep.subr.mxu0 0.0
      %2924 = vmatpush1.msra.mxu0 0.0
      %2925 = vmatprep.subr.mxu0 0.0
      %2926 = vmatpush1.msra.mxu0 0.0
      %2927 = vmatprep.subr.mxu0 0.0
      %2928 = vmatpush1.msra.mxu0 0.0
      %2929 = vmatprep.subr.mxu0 0.0
      %2930 = vmatpush1.msra.mxu0 0.0
      %2931 = vmatprep.subr.mxu0 0.0
      %2932 = vmatpush1.msra.mxu0 0.0
      %2933 = vmatprep.subr.mxu0 0.0
      %2934 = vmatpush1.msra.mxu0 0.0
      %2935 = vmatprep.subr.mxu0 0.0
      %2936 = vmatpush1.msra.mxu0 0.0
      %2937 = vmatprep.subr.mxu0 0.0
      %2938 = vmatpush1.msra.mxu0 0.0
      %2939 = vmatprep.subr.mxu0 0.0
      %2940 = vmatpush1.msra.mxu0 0.0
      %2941 = vmatprep.subr.mxu0 0.0
      %2942 = vmatpush1.msra.mxu0 0.0
      %2943 = vmatprep.subr.mxu0 0.0
      %2944 = vmatpush1.msra.mxu0 0.0
      %2945 = vmatprep.subr.mxu0 0.0
      %2946 = vmatpush1.msra.mxu0 0.0
      %2947 = vmatprep.subr.mxu0 0.0
      %2948 = vmatpush1.msra.mxu0 0.0
      %2949 = vmatprep.subr.mxu0 %v2921
      %2950 = vmatpush1.msra.mxu0 %v2919
      %2951 = vmatprep.subr.mxu0 %v2888
      %2952 = vmatpush1.msra.mxu0 %v2887
      %2953 = vmatprep.subr.mxu0 %v2886
      %2954 = vmatpush1.msra.mxu0 %v2885
      %2955 = vmatprep.subr.mxu0 0.0
      %2956 = vmatpush2.msra.mxu0 0.0
      %2957 = vmatprep.subr.mxu0 0.0
      %2958 = vmatpush2.msra.mxu0 0.0
      %2959 = vmatprep.subr.mxu0 0.0
      %2960 = vmatpush2.msra.mxu0 0.0
      %2961 = vmatprep.subr.mxu0 0.0
      %2962 = vmatpush2.msra.mxu0 0.0
      %2963 = vmatprep.subr.mxu0 0.0
      %2964 = vmatpush2.msra.mxu0 0.0
      %2965 = vmatprep.subr.mxu0 0.0
      %2966 = vmatpush2.msra.mxu0 0.0
      %2967 = vmatprep.subr.mxu0 0.0
      %2968 = vmatpush2.msra.mxu0 0.0
      %2969 = vmatprep.subr.mxu0 0.0
      %2970 = vmatpush2.msra.mxu0 0.0
      %2971 = vmatprep.subr.mxu0 0.0
      %2972 = vmatpush2.msra.mxu0 0.0
      %2973 = vmatprep.subr.mxu0 0.0
      %2974 = vmatpush2.msra.mxu0 0.0
      %2975 = vmatprep.subr.mxu0 0.0
      %2976 = vmatpush2.msra.mxu0 0.0
      %2977 = vmatprep.subr.mxu0 0.0
      %2978 = vmatpush2.msra.mxu0 0.0
      %2979 = vmatprep.subr.mxu0 0.0
      %2980 = vmatpush2.msra.mxu0 0.0
      %2981 = vmatprep.subr.mxu0 0.0
      %2982 = vmatpush2.msra.mxu0 0.0
      %2983 = vmatprep.subr.mxu0 0.0
      %2984 = vmatpush2.msra.mxu0 0.0
      %2985 = vmatprep.subr.mxu0 0.0
      %2986 = vmatpush2.msra.mxu0 0.0
      %2987 = vmatprep.mubr.f32.mxu0 0.0
      %2988 = vmatmul.mubr.f32.gmra.mxu0 %v2896
      %v2989 = vpop.f32.mrf.mxu0
      %v2990 = vadd.f32 0.0, %v2989
      %v2991 = vpop.f32.mrf.mxu0
      %v2992 = vadd.f32 0.0, %v2991
      %2993 = vmatprep.mubr.f32.mxu0 0.0
      %2994 = vmatmul.mubr.f32.gmra.mxu0 %v2899
      %v2995 = vpop.f32.mrf.mxu0
      %v2996 = vadd.f32 0.0, %v2995
      %v2997 = vpop.f32.mrf.mxu0
      %v2998 = vadd.f32 0.0, %v2997
      %2999 = vmatprep.mubr.f32.mxu0 0.0
      %3000 = vmatmul.mubr.f32.gmra.mxu0 %v2902
      %v3001 = vpop.f32.mrf.mxu0
      %v3002 = vadd.f32 0.0, %v3001
      %v3003 = vpop.f32.mrf.mxu0
      %v3004 = vadd.f32 0.0, %v3003
      %3005 = vmatprep.mubr.f32.mxu0 0.0
      %3006 = vmatmul.mubr.f32.gmra.mxu0 %v2905
      %v3007 = vpop.f32.mrf.mxu0
      %v3008 = vadd.f32 0.0, %v3007
      %v3009 = vpop.f32.mrf.mxu0
      %v3010 = vadd.f32 0.0, %v3009
      %3011 = vmatprep.mubr.f32.mxu0 0.0
      %3012 = vmatmul.mubr.f32.gmra.mxu0 %v2908
      %v3013 = vpop.f32.mrf.mxu0
      %v3014 = vadd.f32 0.0, %v3013
      %v3015 = vpop.f32.mrf.mxu0
      %v3016 = vadd.f32 0.0, %v3015
      %3017 = vmatprep.mubr.f32.mxu0 0.0
      %3018 = vmatmul.mubr.f32.gmra.mxu0 %v2911
      %v3019 = vpop.f32.mrf.mxu0
      %v3020 = vadd.f32 0.0, %v3019
      %v3021 = vpop.f32.mrf.mxu0
      %v3022 = vadd.f32 0.0, %v3021
      %3023 = vmatprep.mubr.f32.mxu0 0.0
      %3024 = vmatmul.mubr.f32.gmra.mxu0 %v2914
      %v3025 = vpop.f32.mrf.mxu0
      %v3026 = vadd.f32 0.0, %v3025
      %v3027 = vpop.f32.mrf.mxu0
      %v3028 = vadd.f32 0.0, %v3027
      %3029 = vmatprep.mubr.f32.mxu0 0.0
      %3030 = vmatmul.mubr.f32.gmra.mxu0 %v2917
      %v3031 = vpop.f32.mrf.mxu0
      %v3032 = vadd.f32 0.0, %v3031
      %v3033 = vpop.f32.mrf.mxu0
      %v3034 = vadd.f32 0.0, %v3033
      %3035 = vdwg.mxu0
      %v3036 = vadd.f32 %v2816, %v2990
      %v3037 = vadd.f32 %v2817, %v2992
      %v3038 = vadd.f32 %v2818, %v2996
      %v3039 = vadd.f32 %v2819, %v2998
      %v3040 = vadd.f32 %v2820, %v3002
      %v3041 = vadd.f32 %v2821, %v3004
      %v3042 = vadd.f32 %v2822, %v3008
      %v3043 = vadd.f32 %v2823, %v3010
      %v3044 = vadd.f32 %v2824, %v3014
      %v3045 = vadd.f32 %v2825, %v3016
      %v3046 = vadd.f32 %v2826, %v3020
      %v3047 = vadd.f32 %v2827, %v3022
      %v3048 = vadd.f32 %v2828, %v3026
      %v3049 = vadd.f32 %v2829, %v3028
      %v3050 = vadd.f32 %v2830, %v3032
      %v3051 = vadd.f32 %v2831, %v3034
      %s3052 = scalar_lea.vmem %s4, 256
      %v3053 = vld [vmem:[%s3052] sm:$0xff]
      %v3054 = vld [vmem:[%s3052 + $0x8] sm:$0xff]
      %v3055 = vld [vmem:[%s3052 + $0x10] sm:$0xff]
      %v3056 = vld [vmem:[%s3052 + $0x18] sm:$0xff]
      %v3057 = vld [vmem:[%s3052 + $0x20] sm:$0xff]
      %v3058 = vld [vmem:[%s3052 + $0x28] sm:$0xff]
      %v3059 = vld [vmem:[%s3052 + $0x30] sm:$0xff]
      %v3060 = vld [vmem:[%s3052 + $0x38] sm:$0xf]
      %v3062 = vsel %vm2292, %v3053, 0
      %v3065 = vsel %vm2292, %v3054, 0
      %v3068 = vsel %vm2292, %v3055, 0
      %v3071 = vsel %vm2292, %v3056, 0
      %v3074 = vsel %vm2292, %v3057, 0
      %v3077 = vsel %vm2292, %v3058, 0
      %v3080 = vsel %vm2292, %v3059, 0
      %v3083 = vsel %vm2292, %v3060, 0
      %v3085 = vsel %vm557, %v2219, 0
      %v3087 = vsel %vm557, %v2220, 0
      %3089 = vmatprep.subr.mxu0 0.0
      %3090 = vmatpush1.msra.mxu0 0.0
      %3091 = vmatprep.subr.mxu0 0.0
      %3092 = vmatpush1.msra.mxu0 0.0
      %3093 = vmatprep.subr.mxu0 0.0
      %3094 = vmatpush1.msra.mxu0 0.0
      %3095 = vmatprep.subr.mxu0 0.0
      %3096 = vmatpush1.msra.mxu0 0.0
      %3097 = vmatprep.subr.mxu0 0.0
      %3098 = vmatpush1.msra.mxu0 0.0
      %3099 = vmatprep.subr.mxu0 0.0
      %3100 = vmatpush1.msra.mxu0 0.0
      %3101 = vmatprep.subr.mxu0 0.0
      %3102 = vmatpush1.msra.mxu0 0.0
      %3103 = vmatprep.subr.mxu0 0.0
      %3104 = vmatpush1.msra.mxu0 0.0
      %3105 = vmatprep.subr.mxu0 0.0
      %3106 = vmatpush1.msra.mxu0 0.0
      %3107 = vmatprep.subr.mxu0 0.0
      %3108 = vmatpush1.msra.mxu0 0.0
      %3109 = vmatprep.subr.mxu0 0.0
      %3110 = vmatpush1.msra.mxu0 0.0
      %3111 = vmatprep.subr.mxu0 0.0
      %3112 = vmatpush1.msra.mxu0 0.0
      %3113 = vmatprep.subr.mxu0 0.0
      %3114 = vmatpush1.msra.mxu0 0.0
      %3115 = vmatprep.subr.mxu0 %v3087
      %3116 = vmatpush1.msra.mxu0 %v3085
      %3117 = vmatprep.subr.mxu0 %v2217
      %3118 = vmatpush1.msra.mxu0 %v2216
      %3119 = vmatprep.subr.mxu0 %v2214
      %3120 = vmatpush1.msra.mxu0 %v2213
      %3121 = vmatprep.subr.mxu0 0.0
      %3122 = vmatpush2.msra.mxu0 0.0
      %3123 = vmatprep.subr.mxu0 0.0
      %3124 = vmatpush2.msra.mxu0 0.0
      %3125 = vmatprep.subr.mxu0 0.0
      %3126 = vmatpush2.msra.mxu0 0.0
      %3127 = vmatprep.subr.mxu0 0.0
      %3128 = vmatpush2.msra.mxu0 0.0
      %3129 = vmatprep.subr.mxu0 0.0
      %3130 = vmatpush2.msra.mxu0 0.0
      %3131 = vmatprep.subr.mxu0 0.0
      %3132 = vmatpush2.msra.mxu0 0.0
      %3133 = vmatprep.subr.mxu0 0.0
      %3134 = vmatpush2.msra.mxu0 0.0
      %3135 = vmatprep.subr.mxu0 0.0
      %3136 = vmatpush2.msra.mxu0 0.0
      %3137 = vmatprep.subr.mxu0 0.0
      %3138 = vmatpush2.msra.mxu0 0.0
      %3139 = vmatprep.subr.mxu0 0.0
      %3140 = vmatpush2.msra.mxu0 0.0
      %3141 = vmatprep.subr.mxu0 0.0
      %3142 = vmatpush2.msra.mxu0 0.0
      %3143 = vmatprep.subr.mxu0 0.0
      %3144 = vmatpush2.msra.mxu0 0.0
      %3145 = vmatprep.subr.mxu0 0.0
      %3146 = vmatpush2.msra.mxu0 0.0
      %3147 = vmatprep.subr.mxu0 0.0
      %3148 = vmatpush2.msra.mxu0 0.0
      %3149 = vmatprep.subr.mxu0 0.0
      %3150 = vmatpush2.msra.mxu0 0.0
      %3151 = vmatprep.subr.mxu0 0.0
      %3152 = vmatpush2.msra.mxu0 0.0
      %3153 = vmatprep.mubr.f32.mxu0 0.0
      %3154 = vmatmul.mubr.f32.gmra.mxu0 %v3062
      %v3155 = vpop.f32.mrf.mxu0
      %v3156 = vadd.f32 0.0, %v3155
      %v3157 = vpop.f32.mrf.mxu0
      %v3158 = vadd.f32 0.0, %v3157
      %3159 = vmatprep.mubr.f32.mxu0 0.0
      %3160 = vmatmul.mubr.f32.gmra.mxu0 %v3065
      %v3161 = vpop.f32.mrf.mxu0
      %v3162 = vadd.f32 0.0, %v3161
      %v3163 = vpop.f32.mrf.mxu0
      %v3164 = vadd.f32 0.0, %v3163
      %3165 = vmatprep.mubr.f32.mxu0 0.0
      %3166 = vmatmul.mubr.f32.gmra.mxu0 %v3068
      %v3167 = vpop.f32.mrf.mxu0
      %v3168 = vadd.f32 0.0, %v3167
      %v3169 = vpop.f32.mrf.mxu0
      %v3170 = vadd.f32 0.0, %v3169
      %3171 = vmatprep.mubr.f32.mxu0 0.0
      %3172 = vmatmul.mubr.f32.gmra.mxu0 %v3071
      %v3173 = vpop.f32.mrf.mxu0
      %v3174 = vadd.f32 0.0, %v3173
      %v3175 = vpop.f32.mrf.mxu0
      %v3176 = vadd.f32 0.0, %v3175
      %3177 = vmatprep.mubr.f32.mxu0 0.0
      %3178 = vmatmul.mubr.f32.gmra.mxu0 %v3074
      %v3179 = vpop.f32.mrf.mxu0
      %v3180 = vadd.f32 0.0, %v3179
      %v3181 = vpop.f32.mrf.mxu0
      %v3182 = vadd.f32 0.0, %v3181
      %3183 = vmatprep.mubr.f32.mxu0 0.0
      %3184 = vmatmul.mubr.f32.gmra.mxu0 %v3077
      %v3185 = vpop.f32.mrf.mxu0
      %v3186 = vadd.f32 0.0, %v3185
      %v3187 = vpop.f32.mrf.mxu0
      %v3188 = vadd.f32 0.0, %v3187
      %3189 = vmatprep.mubr.f32.mxu0 0.0
      %3190 = vmatmul.mubr.f32.gmra.mxu0 %v3080
      %v3191 = vpop.f32.mrf.mxu0
      %v3192 = vadd.f32 0.0, %v3191
      %v3193 = vpop.f32.mrf.mxu0
      %v3194 = vadd.f32 0.0, %v3193
      %3195 = vmatprep.mubr.f32.mxu0 0.0
      %3196 = vmatmul.mubr.f32.gmra.mxu0 %v3083
      %v3197 = vpop.f32.mrf.mxu0
      %v3198 = vadd.f32 0.0, %v3197
      %v3199 = vpop.f32.mrf.mxu0
      %v3200 = vadd.f32 0.0, %v3199
      %3201 = vdwg.mxu0
      %v3202 = vadd.f32 %v3036, %v3156
      %v3203 = vadd.f32 %v3037, %v3158
      %v3204 = vadd.f32 %v3038, %v3162
      %v3205 = vadd.f32 %v3039, %v3164
      %v3206 = vadd.f32 %v3040, %v3168
      %v3207 = vadd.f32 %v3041, %v3170
      %v3208 = vadd.f32 %v3042, %v3174
      %v3209 = vadd.f32 %v3043, %v3176
      %v3210 = vadd.f32 %v3044, %v3180
      %v3211 = vadd.f32 %v3045, %v3182
      %v3212 = vadd.f32 %v3046, %v3186
      %v3213 = vadd.f32 %v3047, %v3188
      %v3214 = vadd.f32 %v3048, %v3192
      %v3215 = vadd.f32 %v3049, %v3194
      %v3216 = vadd.f32 %v3050, %v3198
      %v3217 = vadd.f32 %v3051, %v3200
      %v3218 = vld [vmem:[#allocation3 + $0x8] sm:$0xff]
      %v3219 = vld [vmem:[#allocation3 + $0x10] sm:$0xff]
      %v3220 = vld [vmem:[#allocation3 + $0x18] sm:$0xff]
      %v3221 = vld [vmem:[#allocation3 + $0x28] sm:$0xff]
      %v3222 = vld [vmem:[#allocation3 + $0x30] sm:$0xff]
      %v3223 = vld [vmem:[#allocation3 + $0x38] sm:$0xff]
      %v3224 = vld [vmem:[#allocation3 + $0x48] sm:$0xf]
      %v3225 = vld [vmem:[#allocation3 + $0x50] sm:$0xf]
      %v3226 = vld [vmem:[#allocation3 + $0x58] sm:$0xf]
      %3227 = vrot.lane.b32.xlu0 %v1030, 1
      %v3228 = vpop.permute.xlu0 %3227
      %3229 = vrot.lane.b32.xlu0 %v1034, 1
      %v3230 = vpop.permute.xlu0 %3229
      %v3231 = vsel %vm1101, %v3228, %v3230
      %v3235 = vmul.f32 %v3218, %v3228
      %v3236 = vmul.f32 %v3219, %v3231
      %v3237 = vmul.f32 %v3220, %v3230
      %v3238 = vmul.f32 %v3221, %v3228
      %v3239 = vmul.f32 %v3222, %v3231
      %v3240 = vmul.f32 %v3223, %v3230
      %v3241 = vmul.f32 %v3224, %v3228
      %v3242 = vmul.f32 %v3225, %v3231
      %v3243 = vmul.f32 %v3226, %v3230
      %s3244 = scalar_lea.vmem %s4, 320
      %v3245 = vld [vmem:[%s3244] sm:$0xff]
      %v3246 = vld [vmem:[%s3244 + $0x8] sm:$0xff]
      %v3247 = vld [vmem:[%s3244 + $0x10] sm:$0xff]
      %v3248 = vld [vmem:[%s3244 + $0x18] sm:$0xff]
      %v3249 = vld [vmem:[%s3244 + $0x20] sm:$0xff]
      %v3250 = vld [vmem:[%s3244 + $0x28] sm:$0xff]
      %v3251 = vld [vmem:[%s3244 + $0x30] sm:$0xff]
      %v3252 = vld [vmem:[%s3244 + $0x38] sm:$0xf]
      %3262 = vrot.lane.b32.xlu0 %v3235, 127
      %v3263 = vpop.permute.xlu0 %3262
      %3264 = vrot.lane.b32.xlu0 %v3236, 127
      %v3265 = vpop.permute.xlu0 %3264
      %3266 = vrot.lane.b32.xlu0 %v3237, 127
      %v3267 = vpop.permute.xlu0 %3266
      %3268 = vrot.lane.b32.xlu0 %v3238, 127
      %v3269 = vpop.permute.xlu0 %3268
      %3270 = vrot.lane.b32.xlu0 %v3239, 127
      %v3271 = vpop.permute.xlu0 %3270
      %3272 = vrot.lane.b32.xlu0 %v3240, 127
      %v3273 = vpop.permute.xlu0 %3272
      %3274 = vrot.lane.b32.xlu0 %v3241, 127
      %v3275 = vpop.permute.xlu0 %3274
      %3276 = vrot.lane.b32.xlu0 %v3242, 127
      %v3277 = vpop.permute.xlu0 %3276
      %3278 = vrot.lane.b32.xlu0 %v3243, 127
      %v3279 = vpop.permute.xlu0 %3278
      %v3280 = vsel %vm1446, %v3263, %v3265
      %v3281 = vsel %vm1446, %v3265, %v3267
      %v3282 = vsel %vm1446, %v3269, %v3271
      %v3283 = vsel %vm1446, %v3271, %v3273
      %v3284 = vsel %vm1446, %v3275, %v3277
      %v3285 = vsel %vm1446, %v3277, %v3279
      %v3291 = vsel %vm2292, %v3245, 0
      %v3294 = vsel %vm2292, %v3246, 0
      %v3297 = vsel %vm2292, %v3247, 0
      %v3300 = vsel %vm2292, %v3248, 0
      %v3303 = vsel %vm2292, %v3249, 0
      %v3306 = vsel %vm2292, %v3250, 0
      %v3309 = vsel %vm2292, %v3251, 0
      %v3312 = vsel %vm2292, %v3252, 0
      %v3314 = vsel %vm557, %v3284, 0
      %v3316 = vsel %vm557, %v3285, 0
      %3318 = vmatprep.subr.mxu0 0.0
      %3319 = vmatpush1.msra.mxu0 0.0
      %3320 = vmatprep.subr.mxu0 0.0
      %3321 = vmatpush1.msra.mxu0 0.0
      %3322 = vmatprep.subr.mxu0 0.0
      %3323 = vmatpush1.msra.mxu0 0.0
      %3324 = vmatprep.subr.mxu0 0.0
      %3325 = vmatpush1.msra.mxu0 0.0
      %3326 = vmatprep.subr.mxu0 0.0
      %3327 = vmatpush1.msra.mxu0 0.0
      %3328 = vmatprep.subr.mxu0 0.0
      %3329 = vmatpush1.msra.mxu0 0.0
      %3330 = vmatprep.subr.mxu0 0.0
      %3331 = vmatpush1.msra.mxu0 0.0
      %3332 = vmatprep.subr.mxu0 0.0
      %3333 = vmatpush1.msra.mxu0 0.0
      %3334 = vmatprep.subr.mxu0 0.0
      %3335 = vmatpush1.msra.mxu0 0.0
      %3336 = vmatprep.subr.mxu0 0.0
      %3337 = vmatpush1.msra.mxu0 0.0
      %3338 = vmatprep.subr.mxu0 0.0
      %3339 = vmatpush1.msra.mxu0 0.0
      %3340 = vmatprep.subr.mxu0 0.0
      %3341 = vmatpush1.msra.mxu0 0.0
      %3342 = vmatprep.subr.mxu0 0.0
      %3343 = vmatpush1.msra.mxu0 0.0
      %3344 = vmatprep.subr.mxu0 %v3316
      %3345 = vmatpush1.msra.mxu0 %v3314
      %3346 = vmatprep.subr.mxu0 %v3283
      %3347 = vmatpush1.msra.mxu0 %v3282
      %3348 = vmatprep.subr.mxu0 %v3281
      %3349 = vmatpush1.msra.mxu0 %v3280
      %3350 = vmatprep.subr.mxu0 0.0
      %3351 = vmatpush2.msra.mxu0 0.0
      %3352 = vmatprep.subr.mxu0 0.0
      %3353 = vmatpush2.msra.mxu0 0.0
      %3354 = vmatprep.subr.mxu0 0.0
      %3355 = vmatpush2.msra.mxu0 0.0
      %3356 = vmatprep.subr.mxu0 0.0
      %3357 = vmatpush2.msra.mxu0 0.0
      %3358 = vmatprep.subr.mxu0 0.0
      %3359 = vmatpush2.msra.mxu0 0.0
      %3360 = vmatprep.subr.mxu0 0.0
      %3361 = vmatpush2.msra.mxu0 0.0
      %3362 = vmatprep.subr.mxu0 0.0
      %3363 = vmatpush2.msra.mxu0 0.0
      %3364 = vmatprep.subr.mxu0 0.0
      %3365 = vmatpush2.msra.mxu0 0.0
      %3366 = vmatprep.subr.mxu0 0.0
      %3367 = vmatpush2.msra.mxu0 0.0
      %3368 = vmatprep.subr.mxu0 0.0
      %3369 = vmatpush2.msra.mxu0 0.0
      %3370 = vmatprep.subr.mxu0 0.0
      %3371 = vmatpush2.msra.mxu0 0.0
      %3372 = vmatprep.subr.mxu0 0.0
      %3373 = vmatpush2.msra.mxu0 0.0
      %3374 = vmatprep.subr.mxu0 0.0
      %3375 = vmatpush2.msra.mxu0 0.0
      %3376 = vmatprep.subr.mxu0 0.0
      %3377 = vmatpush2.msra.mxu0 0.0
      %3378 = vmatprep.subr.mxu0 0.0
      %3379 = vmatpush2.msra.mxu0 0.0
      %3380 = vmatprep.subr.mxu0 0.0
      %3381 = vmatpush2.msra.mxu0 0.0
      %3382 = vmatprep.mubr.f32.mxu0 0.0
      %3383 = vmatmul.mubr.f32.gmra.mxu0 %v3291
      %v3384 = vpop.f32.mrf.mxu0
      %v3385 = vadd.f32 0.0, %v3384
      %v3386 = vpop.f32.mrf.mxu0
      %v3387 = vadd.f32 0.0, %v3386
      %3388 = vmatprep.mubr.f32.mxu0 0.0
      %3389 = vmatmul.mubr.f32.gmra.mxu0 %v3294
      %v3390 = vpop.f32.mrf.mxu0
      %v3391 = vadd.f32 0.0, %v3390
      %v3392 = vpop.f32.mrf.mxu0
      %v3393 = vadd.f32 0.0, %v3392
      %3394 = vmatprep.mubr.f32.mxu0 0.0
      %3395 = vmatmul.mubr.f32.gmra.mxu0 %v3297
      %v3396 = vpop.f32.mrf.mxu0
      %v3397 = vadd.f32 0.0, %v3396
      %v3398 = vpop.f32.mrf.mxu0
      %v3399 = vadd.f32 0.0, %v3398
      %3400 = vmatprep.mubr.f32.mxu0 0.0
      %3401 = vmatmul.mubr.f32.gmra.mxu0 %v3300
      %v3402 = vpop.f32.mrf.mxu0
      %v3403 = vadd.f32 0.0, %v3402
      %v3404 = vpop.f32.mrf.mxu0
      %v3405 = vadd.f32 0.0, %v3404
      %3406 = vmatprep.mubr.f32.mxu0 0.0
      %3407 = vmatmul.mubr.f32.gmra.mxu0 %v3303
      %v3408 = vpop.f32.mrf.mxu0
      %v3409 = vadd.f32 0.0, %v3408
      %v3410 = vpop.f32.mrf.mxu0
      %v3411 = vadd.f32 0.0, %v3410
      %3412 = vmatprep.mubr.f32.mxu0 0.0
      %3413 = vmatmul.mubr.f32.gmra.mxu0 %v3306
      %v3414 = vpop.f32.mrf.mxu0
      %v3415 = vadd.f32 0.0, %v3414
      %v3416 = vpop.f32.mrf.mxu0
      %v3417 = vadd.f32 0.0, %v3416
      %3418 = vmatprep.mubr.f32.mxu0 0.0
      %3419 = vmatmul.mubr.f32.gmra.mxu0 %v3309
      %v3420 = vpop.f32.mrf.mxu0
      %v3421 = vadd.f32 0.0, %v3420
      %v3422 = vpop.f32.mrf.mxu0
      %v3423 = vadd.f32 0.0, %v3422
      %3424 = vmatprep.mubr.f32.mxu0 0.0
      %3425 = vmatmul.mubr.f32.gmra.mxu0 %v3312
      %v3426 = vpop.f32.mrf.mxu0
      %v3427 = vadd.f32 0.0, %v3426
      %v3428 = vpop.f32.mrf.mxu0
      %v3429 = vadd.f32 0.0, %v3428
      %3430 = vdwg.mxu0
      %v3431 = vadd.f32 %v3202, %v3385
      %v3432 = vadd.f32 %v3203, %v3387
      %v3433 = vadd.f32 %v3204, %v3391
      %v3434 = vadd.f32 %v3205, %v3393
      %v3435 = vadd.f32 %v3206, %v3397
      %v3436 = vadd.f32 %v3207, %v3399
      %v3437 = vadd.f32 %v3208, %v3403
      %v3438 = vadd.f32 %v3209, %v3405
      %v3439 = vadd.f32 %v3210, %v3409
      %v3440 = vadd.f32 %v3211, %v3411
      %v3441 = vadd.f32 %v3212, %v3415
      %v3442 = vadd.f32 %v3213, %v3417
      %v3443 = vadd.f32 %v3214, %v3421
      %v3444 = vadd.f32 %v3215, %v3423
      %v3445 = vadd.f32 %v3216, %v3427
      %v3446 = vadd.f32 %v3217, %v3429
      %3447 = vrot.lane.b32.xlu0 %v649, 15
      %v3448 = vpop.permute.xlu0 %3447
      %3449 = vrot.lane.b32.xlu0 %v653, 15
      %v3450 = vpop.permute.xlu0 %3449
      %v3451 = vsel %vm899, %v3448, %v3450
      %v3455 = vmul.f32 %v3218, %v3448
      %v3456 = vmul.f32 %v3219, %v3451
      %v3457 = vmul.f32 %v3220, %v3450
      %v3458 = vmul.f32 %v3221, %v3448
      %v3459 = vmul.f32 %v3222, %v3451
      %v3460 = vmul.f32 %v3223, %v3450
      %v3461 = vmul.f32 %v3224, %v3448
      %v3462 = vmul.f32 %v3225, %v3451
      %v3463 = vmul.f32 %v3226, %v3450
      %s3464 = scalar_lea.vmem %s4, 384
      %v3465 = vld [vmem:[%s3464] sm:$0xff]
      %v3466 = vld [vmem:[%s3464 + $0x8] sm:$0xff]
      %v3467 = vld [vmem:[%s3464 + $0x10] sm:$0xff]
      %v3468 = vld [vmem:[%s3464 + $0x18] sm:$0xff]
      %v3469 = vld [vmem:[%s3464 + $0x20] sm:$0xff]
      %v3470 = vld [vmem:[%s3464 + $0x28] sm:$0xff]
      %v3471 = vld [vmem:[%s3464 + $0x30] sm:$0xff]
      %v3472 = vld [vmem:[%s3464 + $0x38] sm:$0xf]
      %3482 = vrot.lane.b32.xlu0 %v3455, 113
      %v3483 = vpop.permute.xlu0 %3482
      %3484 = vrot.lane.b32.xlu0 %v3456, 113
      %v3485 = vpop.permute.xlu0 %3484
      %3486 = vrot.lane.b32.xlu0 %v3457, 113
      %v3487 = vpop.permute.xlu0 %3486
      %3488 = vrot.lane.b32.xlu0 %v3458, 113
      %v3489 = vpop.permute.xlu0 %3488
      %3490 = vrot.lane.b32.xlu0 %v3459, 113
      %v3491 = vpop.permute.xlu0 %3490
      %3492 = vrot.lane.b32.xlu0 %v3460, 113
      %v3493 = vpop.permute.xlu0 %3492
      %3494 = vrot.lane.b32.xlu0 %v3461, 113
      %v3495 = vpop.permute.xlu0 %3494
      %3496 = vrot.lane.b32.xlu0 %v3462, 113
      %v3497 = vpop.permute.xlu0 %3496
      %3498 = vrot.lane.b32.xlu0 %v3463, 113
      %v3499 = vpop.permute.xlu0 %3498
      %v3500 = vsel %vm1637, %v3483, %v3485
      %v3501 = vsel %vm1637, %v3485, %v3487
      %v3502 = vsel %vm1637, %v3489, %v3491
      %v3503 = vsel %vm1637, %v3491, %v3493
      %v3504 = vsel %vm1637, %v3495, %v3497
      %v3505 = vsel %vm1637, %v3497, %v3499
      %v3511 = vsel %vm2292, %v3465, 0
      %v3514 = vsel %vm2292, %v3466, 0
      %v3517 = vsel %vm2292, %v3467, 0
      %v3520 = vsel %vm2292, %v3468, 0
      %v3523 = vsel %vm2292, %v3469, 0
      %v3526 = vsel %vm2292, %v3470, 0
      %v3529 = vsel %vm2292, %v3471, 0
      %v3532 = vsel %vm2292, %v3472, 0
      %v3534 = vsel %vm557, %v3504, 0
      %v3536 = vsel %vm557, %v3505, 0
      %3538 = vmatprep.subr.mxu0 0.0
      %3539 = vmatpush1.msra.mxu0 0.0
      %3540 = vmatprep.subr.mxu0 0.0
      %3541 = vmatpush1.msra.mxu0 0.0
      %3542 = vmatprep.subr.mxu0 0.0
      %3543 = vmatpush1.msra.mxu0 0.0
      %3544 = vmatprep.subr.mxu0 0.0
      %3545 = vmatpush1.msra.mxu0 0.0
      %3546 = vmatprep.subr.mxu0 0.0
      %3547 = vmatpush1.msra.mxu0 0.0
      %3548 = vmatprep.subr.mxu0 0.0
      %3549 = vmatpush1.msra.mxu0 0.0
      %3550 = vmatprep.subr.mxu0 0.0
      %3551 = vmatpush1.msra.mxu0 0.0
      %3552 = vmatprep.subr.mxu0 0.0
      %3553 = vmatpush1.msra.mxu0 0.0
      %3554 = vmatprep.subr.mxu0 0.0
      %3555 = vmatpush1.msra.mxu0 0.0
      %3556 = vmatprep.subr.mxu0 0.0
      %3557 = vmatpush1.msra.mxu0 0.0
      %3558 = vmatprep.subr.mxu0 0.0
      %3559 = vmatpush1.msra.mxu0 0.0
      %3560 = vmatprep.subr.mxu0 0.0
      %3561 = vmatpush1.msra.mxu0 0.0
      %3562 = vmatprep.subr.mxu0 0.0
      %3563 = vmatpush1.msra.mxu0 0.0
      %3564 = vmatprep.subr.mxu0 %v3536
      %3565 = vmatpush1.msra.mxu0 %v3534
      %3566 = vmatprep.subr.mxu0 %v3503
      %3567 = vmatpush1.msra.mxu0 %v3502
      %3568 = vmatprep.subr.mxu0 %v3501
      %3569 = vmatpush1.msra.mxu0 %v3500
      %3570 = vmatprep.subr.mxu0 0.0
      %3571 = vmatpush2.msra.mxu0 0.0
      %3572 = vmatprep.subr.mxu0 0.0
      %3573 = vmatpush2.msra.mxu0 0.0
      %3574 = vmatprep.subr.mxu0 0.0
      %3575 = vmatpush2.msra.mxu0 0.0
      %3576 = vmatprep.subr.mxu0 0.0
      %3577 = vmatpush2.msra.mxu0 0.0
      %3578 = vmatprep.subr.mxu0 0.0
      %3579 = vmatpush2.msra.mxu0 0.0
      %3580 = vmatprep.subr.mxu0 0.0
      %3581 = vmatpush2.msra.mxu0 0.0
      %3582 = vmatprep.subr.mxu0 0.0
      %3583 = vmatpush2.msra.mxu0 0.0
      %3584 = vmatprep.subr.mxu0 0.0
      %3585 = vmatpush2.msra.mxu0 0.0
      %3586 = vmatprep.subr.mxu0 0.0
      %3587 = vmatpush2.msra.mxu0 0.0
      %3588 = vmatprep.subr.mxu0 0.0
      %3589 = vmatpush2.msra.mxu0 0.0
      %3590 = vmatprep.subr.mxu0 0.0
      %3591 = vmatpush2.msra.mxu0 0.0
      %3592 = vmatprep.subr.mxu0 0.0
      %3593 = vmatpush2.msra.mxu0 0.0
      %3594 = vmatprep.subr.mxu0 0.0
      %3595 = vmatpush2.msra.mxu0 0.0
      %3596 = vmatprep.subr.mxu0 0.0
      %3597 = vmatpush2.msra.mxu0 0.0
      %3598 = vmatprep.subr.mxu0 0.0
      %3599 = vmatpush2.msra.mxu0 0.0
      %3600 = vmatprep.subr.mxu0 0.0
      %3601 = vmatpush2.msra.mxu0 0.0
      %3602 = vmatprep.mubr.f32.mxu0 0.0
      %3603 = vmatmul.mubr.f32.gmra.mxu0 %v3511
      %v3604 = vpop.f32.mrf.mxu0
      %v3605 = vadd.f32 0.0, %v3604
      %v3606 = vpop.f32.mrf.mxu0
      %v3607 = vadd.f32 0.0, %v3606
      %3608 = vmatprep.mubr.f32.mxu0 0.0
      %3609 = vmatmul.mubr.f32.gmra.mxu0 %v3514
      %v3610 = vpop.f32.mrf.mxu0
      %v3611 = vadd.f32 0.0, %v3610
      %v3612 = vpop.f32.mrf.mxu0
      %v3613 = vadd.f32 0.0, %v3612
      %3614 = vmatprep.mubr.f32.mxu0 0.0
      %3615 = vmatmul.mubr.f32.gmra.mxu0 %v3517
      %v3616 = vpop.f32.mrf.mxu0
      %v3617 = vadd.f32 0.0, %v3616
      %v3618 = vpop.f32.mrf.mxu0
      %v3619 = vadd.f32 0.0, %v3618
      %3620 = vmatprep.mubr.f32.mxu0 0.0
      %3621 = vmatmul.mubr.f32.gmra.mxu0 %v3520
      %v3622 = vpop.f32.mrf.mxu0
      %v3623 = vadd.f32 0.0, %v3622
      %v3624 = vpop.f32.mrf.mxu0
      %v3625 = vadd.f32 0.0, %v3624
      %3626 = vmatprep.mubr.f32.mxu0 0.0
      %3627 = vmatmul.mubr.f32.gmra.mxu0 %v3523
      %v3628 = vpop.f32.mrf.mxu0
      %v3629 = vadd.f32 0.0, %v3628
      %v3630 = vpop.f32.mrf.mxu0
      %v3631 = vadd.f32 0.0, %v3630
      %3632 = vmatprep.mubr.f32.mxu0 0.0
      %3633 = vmatmul.mubr.f32.gmra.mxu0 %v3526
      %v3634 = vpop.f32.mrf.mxu0
      %v3635 = vadd.f32 0.0, %v3634
      %v3636 = vpop.f32.mrf.mxu0
      %v3637 = vadd.f32 0.0, %v3636
      %3638 = vmatprep.mubr.f32.mxu0 0.0
      %3639 = vmatmul.mubr.f32.gmra.mxu0 %v3529
      %v3640 = vpop.f32.mrf.mxu0
      %v3641 = vadd.f32 0.0, %v3640
      %v3642 = vpop.f32.mrf.mxu0
      %v3643 = vadd.f32 0.0, %v3642
      %3644 = vmatprep.mubr.f32.mxu0 0.0
      %3645 = vmatmul.mubr.f32.gmra.mxu0 %v3532
      %v3646 = vpop.f32.mrf.mxu0
      %v3647 = vadd.f32 0.0, %v3646
      %v3648 = vpop.f32.mrf.mxu0
      %v3649 = vadd.f32 0.0, %v3648
      %3650 = vdwg.mxu0
      %v3651 = vadd.f32 %v3431, %v3605
      %v3652 = vadd.f32 %v3432, %v3607
      %v3653 = vadd.f32 %v3433, %v3611
      %v3654 = vadd.f32 %v3434, %v3613
      %v3655 = vadd.f32 %v3435, %v3617
      %v3656 = vadd.f32 %v3436, %v3619
      %v3657 = vadd.f32 %v3437, %v3623
      %v3658 = vadd.f32 %v3438, %v3625
      %v3659 = vadd.f32 %v3439, %v3629
      %v3660 = vadd.f32 %v3440, %v3631
      %v3661 = vadd.f32 %v3441, %v3635
      %v3662 = vadd.f32 %v3442, %v3637
      %v3663 = vadd.f32 %v3443, %v3641
      %v3664 = vadd.f32 %v3444, %v3643
      %v3665 = vadd.f32 %v3445, %v3647
      %v3666 = vadd.f32 %v3446, %v3649
      %s3667 = scalar_lea.vmem %s4, 448
      %v3668 = vld [vmem:[%s3667] sm:$0xff]
      %v3669 = vld [vmem:[%s3667 + $0x8] sm:$0xff]
      %v3670 = vld [vmem:[%s3667 + $0x10] sm:$0xff]
      %v3671 = vld [vmem:[%s3667 + $0x18] sm:$0xff]
      %v3672 = vld [vmem:[%s3667 + $0x20] sm:$0xff]
      %v3673 = vld [vmem:[%s3667 + $0x28] sm:$0xff]
      %v3674 = vld [vmem:[%s3667 + $0x30] sm:$0xff]
      %v3675 = vld [vmem:[%s3667 + $0x38] sm:$0xf]
      %3685 = vrot.lane.b32.xlu0 %v3218, 112
      %v3686 = vpop.permute.xlu0 %3685
      %3687 = vrot.lane.b32.xlu0 %v3219, 112
      %v3688 = vpop.permute.xlu0 %3687
      %3689 = vrot.lane.b32.xlu0 %v3220, 112
      %v3690 = vpop.permute.xlu0 %3689
      %3691 = vrot.lane.b32.xlu0 %v3221, 112
      %v3692 = vpop.permute.xlu0 %3691
      %3693 = vrot.lane.b32.xlu0 %v3222, 112
      %v3694 = vpop.permute.xlu0 %3693
      %3695 = vrot.lane.b32.xlu0 %v3223, 112
      %v3696 = vpop.permute.xlu0 %3695
      %3697 = vrot.lane.b32.xlu0 %v3224, 112
      %v3698 = vpop.permute.xlu0 %3697
      %3699 = vrot.lane.b32.xlu0 %v3225, 112
      %v3700 = vpop.permute.xlu0 %3699
      %3701 = vrot.lane.b32.xlu0 %v3226, 112
      %v3702 = vpop.permute.xlu0 %3701
      %v3703 = vsel %vm1828, %v3686, %v3688
      %v3704 = vsel %vm1828, %v3688, %v3690
      %v3705 = vsel %vm1828, %v3692, %v3694
      %v3706 = vsel %vm1828, %v3694, %v3696
      %v3707 = vsel %vm1828, %v3698, %v3700
      %v3708 = vsel %vm1828, %v3700, %v3702
      %v3714 = vsel %vm2292, %v3668, 0
      %v3717 = vsel %vm2292, %v3669, 0
      %v3720 = vsel %vm2292, %v3670, 0
      %v3723 = vsel %vm2292, %v3671, 0
      %v3726 = vsel %vm2292, %v3672, 0
      %v3729 = vsel %vm2292, %v3673, 0
      %v3732 = vsel %vm2292, %v3674, 0
      %v3735 = vsel %vm2292, %v3675, 0
      %v3737 = vsel %vm557, %v3707, 0
      %v3739 = vsel %vm557, %v3708, 0
      %3741 = vmatprep.subr.mxu0 0.0
      %3742 = vmatpush1.msra.mxu0 0.0
      %3743 = vmatprep.subr.mxu0 0.0
      %3744 = vmatpush1.msra.mxu0 0.0
      %3745 = vmatprep.subr.mxu0 0.0
      %3746 = vmatpush1.msra.mxu0 0.0
      %3747 = vmatprep.subr.mxu0 0.0
      %3748 = vmatpush1.msra.mxu0 0.0
      %3749 = vmatprep.subr.mxu0 0.0
      %3750 = vmatpush1.msra.mxu0 0.0
      %3751 = vmatprep.subr.mxu0 0.0
      %3752 = vmatpush1.msra.mxu0 0.0
      %3753 = vmatprep.subr.mxu0 0.0
      %3754 = vmatpush1.msra.mxu0 0.0
      %3755 = vmatprep.subr.mxu0 0.0
      %3756 = vmatpush1.msra.mxu0 0.0
      %3757 = vmatprep.subr.mxu0 0.0
      %3758 = vmatpush1.msra.mxu0 0.0
      %3759 = vmatprep.subr.mxu0 0.0
      %3760 = vmatpush1.msra.mxu0 0.0
      %3761 = vmatprep.subr.mxu0 0.0
      %3762 = vmatpush1.msra.mxu0 0.0
      %3763 = vmatprep.subr.mxu0 0.0
      %3764 = vmatpush1.msra.mxu0 0.0
      %3765 = vmatprep.subr.mxu0 0.0
      %3766 = vmatpush1.msra.mxu0 0.0
      %3767 = vmatprep.subr.mxu0 %v3739
      %3768 = vmatpush1.msra.mxu0 %v3737
      %3769 = vmatprep.subr.mxu0 %v3706
      %3770 = vmatpush1.msra.mxu0 %v3705
      %3771 = vmatprep.subr.mxu0 %v3704
      %3772 = vmatpush1.msra.mxu0 %v3703
      %3773 = vmatprep.subr.mxu0 0.0
      %3774 = vmatpush2.msra.mxu0 0.0
      %3775 = vmatprep.subr.mxu0 0.0
      %3776 = vmatpush2.msra.mxu0 0.0
      %3777 = vmatprep.subr.mxu0 0.0
      %3778 = vmatpush2.msra.mxu0 0.0
      %3779 = vmatprep.subr.mxu0 0.0
      %3780 = vmatpush2.msra.mxu0 0.0
      %3781 = vmatprep.subr.mxu0 0.0
      %3782 = vmatpush2.msra.mxu0 0.0
      %3783 = vmatprep.subr.mxu0 0.0
      %3784 = vmatpush2.msra.mxu0 0.0
      %3785 = vmatprep.subr.mxu0 0.0
      %3786 = vmatpush2.msra.mxu0 0.0
      %3787 = vmatprep.subr.mxu0 0.0
      %3788 = vmatpush2.msra.mxu0 0.0
      %3789 = vmatprep.subr.mxu0 0.0
      %3790 = vmatpush2.msra.mxu0 0.0
      %3791 = vmatprep.subr.mxu0 0.0
      %3792 = vmatpush2.msra.mxu0 0.0
      %3793 = vmatprep.subr.mxu0 0.0
      %3794 = vmatpush2.msra.mxu0 0.0
      %3795 = vmatprep.subr.mxu0 0.0
      %3796 = vmatpush2.msra.mxu0 0.0
      %3797 = vmatprep.subr.mxu0 0.0
      %3798 = vmatpush2.msra.mxu0 0.0
      %3799 = vmatprep.subr.mxu0 0.0
      %3800 = vmatpush2.msra.mxu0 0.0
      %3801 = vmatprep.subr.mxu0 0.0
      %3802 = vmatpush2.msra.mxu0 0.0
      %3803 = vmatprep.subr.mxu0 0.0
      %3804 = vmatpush2.msra.mxu0 0.0
      %3805 = vmatprep.mubr.f32.mxu0 0.0
      %3806 = vmatmul.mubr.f32.gmra.mxu0 %v3714
      %v3807 = vpop.f32.mrf.mxu0
      %v3808 = vadd.f32 0.0, %v3807
      %v3809 = vpop.f32.mrf.mxu0
      %v3810 = vadd.f32 0.0, %v3809
      %3811 = vmatprep.mubr.f32.mxu0 0.0
      %3812 = vmatmul.mubr.f32.gmra.mxu0 %v3717
      %v3813 = vpop.f32.mrf.mxu0
      %v3814 = vadd.f32 0.0, %v3813
      %v3815 = vpop.f32.mrf.mxu0
      %v3816 = vadd.f32 0.0, %v3815
      %3817 = vmatprep.mubr.f32.mxu0 0.0
      %3818 = vmatmul.mubr.f32.gmra.mxu0 %v3720
      %v3819 = vpop.f32.mrf.mxu0
      %v3820 = vadd.f32 0.0, %v3819
      %v3821 = vpop.f32.mrf.mxu0
      %v3822 = vadd.f32 0.0, %v3821
      %3823 = vmatprep.mubr.f32.mxu0 0.0
      %3824 = vmatmul.mubr.f32.gmra.mxu0 %v3723
      %v3825 = vpop.f32.mrf.mxu0
      %v3826 = vadd.f32 0.0, %v3825
      %v3827 = vpop.f32.mrf.mxu0
      %v3828 = vadd.f32 0.0, %v3827
      %3829 = vmatprep.mubr.f32.mxu0 0.0
      %3830 = vmatmul.mubr.f32.gmra.mxu0 %v3726
      %v3831 = vpop.f32.mrf.mxu0
      %v3832 = vadd.f32 0.0, %v3831
      %v3833 = vpop.f32.mrf.mxu0
      %v3834 = vadd.f32 0.0, %v3833
      %3835 = vmatprep.mubr.f32.mxu0 0.0
      %3836 = vmatmul.mubr.f32.gmra.mxu0 %v3729
      %v3837 = vpop.f32.mrf.mxu0
      %v3838 = vadd.f32 0.0, %v3837
      %v3839 = vpop.f32.mrf.mxu0
      %v3840 = vadd.f32 0.0, %v3839
      %3841 = vmatprep.mubr.f32.mxu0 0.0
      %3842 = vmatmul.mubr.f32.gmra.mxu0 %v3732
      %v3843 = vpop.f32.mrf.mxu0
      %v3844 = vadd.f32 0.0, %v3843
      %v3845 = vpop.f32.mrf.mxu0
      %v3846 = vadd.f32 0.0, %v3845
      %3847 = vmatprep.mubr.f32.mxu0 0.0
      %3848 = vmatmul.mubr.f32.gmra.mxu0 %v3735
      %v3849 = vpop.f32.mrf.mxu0
      %v3850 = vadd.f32 0.0, %v3849
      %v3851 = vpop.f32.mrf.mxu0
      %v3852 = vadd.f32 0.0, %v3851
      %3853 = vdwg.mxu0
      %v3854 = vadd.f32 %v3651, %v3808
      %v3855 = vadd.f32 %v3652, %v3810
      %v3856 = vadd.f32 %v3653, %v3814
      %v3857 = vadd.f32 %v3654, %v3816
      %v3858 = vadd.f32 %v3655, %v3820
      %v3859 = vadd.f32 %v3656, %v3822
      %v3860 = vadd.f32 %v3657, %v3826
      %v3861 = vadd.f32 %v3658, %v3828
      %v3862 = vadd.f32 %v3659, %v3832
      %v3863 = vadd.f32 %v3660, %v3834
      %v3864 = vadd.f32 %v3661, %v3838
      %v3865 = vadd.f32 %v3662, %v3840
      %v3866 = vadd.f32 %v3663, %v3844
      %v3867 = vadd.f32 %v3664, %v3846
      %v3868 = vadd.f32 %v3665, %v3850
      %v3869 = vadd.f32 %v3666, %v3852
      %3870 = vrot.lane.b32.xlu0 %v1030, 17
      %v3871 = vpop.permute.xlu0 %3870
      %3872 = vrot.lane.b32.xlu0 %v1034, 17
      %v3873 = vpop.permute.xlu0 %3872
      %v3874 = vsel %vm516, %v3871, %v3873
      %v3878 = vmul.f32 %v3218, %v3871
      %v3879 = vmul.f32 %v3219, %v3874
      %v3880 = vmul.f32 %v3220, %v3873
      %v3881 = vmul.f32 %v3221, %v3871
      %v3882 = vmul.f32 %v3222, %v3874
      %v3883 = vmul.f32 %v3223, %v3873
      %v3884 = vmul.f32 %v3224, %v3871
      %v3885 = vmul.f32 %v3225, %v3874
      %v3886 = vmul.f32 %v3226, %v3873
      %s3887 = scalar_lea.vmem %s4, 512
      %v3888 = vld [vmem:[%s3887] sm:$0xff]
      %v3889 = vld [vmem:[%s3887 + $0x8] sm:$0xff]
      %v3890 = vld [vmem:[%s3887 + $0x10] sm:$0xff]
      %v3891 = vld [vmem:[%s3887 + $0x18] sm:$0xff]
      %v3892 = vld [vmem:[%s3887 + $0x20] sm:$0xff]
      %v3893 = vld [vmem:[%s3887 + $0x28] sm:$0xff]
      %v3894 = vld [vmem:[%s3887 + $0x30] sm:$0xff]
      %v3895 = vld [vmem:[%s3887 + $0x38] sm:$0xf]
      %3905 = vrot.lane.b32.xlu0 %v3878, 111
      %v3906 = vpop.permute.xlu0 %3905
      %3907 = vrot.lane.b32.xlu0 %v3879, 111
      %v3908 = vpop.permute.xlu0 %3907
      %3909 = vrot.lane.b32.xlu0 %v3880, 111
      %v3910 = vpop.permute.xlu0 %3909
      %3911 = vrot.lane.b32.xlu0 %v3881, 111
      %v3912 = vpop.permute.xlu0 %3911
      %3913 = vrot.lane.b32.xlu0 %v3882, 111
      %v3914 = vpop.permute.xlu0 %3913
      %3915 = vrot.lane.b32.xlu0 %v3883, 111
      %v3916 = vpop.permute.xlu0 %3915
      %3917 = vrot.lane.b32.xlu0 %v3884, 111
      %v3918 = vpop.permute.xlu0 %3917
      %3919 = vrot.lane.b32.xlu0 %v3885, 111
      %v3920 = vpop.permute.xlu0 %3919
      %3921 = vrot.lane.b32.xlu0 %v3886, 111
      %v3922 = vpop.permute.xlu0 %3921
      %v3923 = vsel %vm2013, %v3906, %v3908
      %v3924 = vsel %vm2013, %v3908, %v3910
      %v3925 = vsel %vm2013, %v3912, %v3914
      %v3926 = vsel %vm2013, %v3914, %v3916
      %v3927 = vsel %vm2013, %v3918, %v3920
      %v3928 = vsel %vm2013, %v3920, %v3922
      %v3934 = vsel %vm2292, %v3888, 0
      %v3937 = vsel %vm2292, %v3889, 0
      %v3940 = vsel %vm2292, %v3890, 0
      %v3943 = vsel %vm2292, %v3891, 0
      %v3946 = vsel %vm2292, %v3892, 0
      %v3949 = vsel %vm2292, %v3893, 0
      %v3952 = vsel %vm2292, %v3894, 0
      %v3955 = vsel %vm2292, %v3895, 0
      %v3957 = vsel %vm557, %v3927, 0
      %v3959 = vsel %vm557, %v3928, 0
      %3961 = vmatprep.subr.mxu0 0.0
      %3962 = vmatpush1.msra.mxu0 0.0
      %3963 = vmatprep.subr.mxu0 0.0
      %3964 = vmatpush1.msra.mxu0 0.0
      %3965 = vmatprep.subr.mxu0 0.0
      %3966 = vmatpush1.msra.mxu0 0.0
      %3967 = vmatprep.subr.mxu0 0.0
      %3968 = vmatpush1.msra.mxu0 0.0
      %3969 = vmatprep.subr.mxu0 0.0
      %3970 = vmatpush1.msra.mxu0 0.0
      %3971 = vmatprep.subr.mxu0 0.0
      %3972 = vmatpush1.msra.mxu0 0.0
      %3973 = vmatprep.subr.mxu0 0.0
      %3974 = vmatpush1.msra.mxu0 0.0
      %3975 = vmatprep.subr.mxu0 0.0
      %3976 = vmatpush1.msra.mxu0 0.0
      %3977 = vmatprep.subr.mxu0 0.0
      %3978 = vmatpush1.msra.mxu0 0.0
      %3979 = vmatprep.subr.mxu0 0.0
      %3980 = vmatpush1.msra.mxu0 0.0
      %3981 = vmatprep.subr.mxu0 0.0
      %3982 = vmatpush1.msra.mxu0 0.0
      %3983 = vmatprep.subr.mxu0 0.0
      %3984 = vmatpush1.msra.mxu0 0.0
      %3985 = vmatprep.subr.mxu0 0.0
      %3986 = vmatpush1.msra.mxu0 0.0
      %3987 = vmatprep.subr.mxu0 %v3959
      %3988 = vmatpush1.msra.mxu0 %v3957
      %3989 = vmatprep.subr.mxu0 %v3926
      %3990 = vmatpush1.msra.mxu0 %v3925
      %3991 = vmatprep.subr.mxu0 %v3924
      %3992 = vmatpush1.msra.mxu0 %v3923
      %3993 = vmatprep.subr.mxu0 0.0
      %3994 = vmatpush2.msra.mxu0 0.0
      %3995 = vmatprep.subr.mxu0 0.0
      %3996 = vmatpush2.msra.mxu0 0.0
      %3997 = vmatprep.subr.mxu0 0.0
      %3998 = vmatpush2.msra.mxu0 0.0
      %3999 = vmatprep.subr.mxu0 0.0
      %4000 = vmatpush2.msra.mxu0 0.0
      %4001 = vmatprep.subr.mxu0 0.0
      %4002 = vmatpush2.msra.mxu0 0.0
      %4003 = vmatprep.subr.mxu0 0.0
      %4004 = vmatpush2.msra.mxu0 0.0
      %4005 = vmatprep.subr.mxu0 0.0
      %4006 = vmatpush2.msra.mxu0 0.0
      %4007 = vmatprep.subr.mxu0 0.0
      %4008 = vmatpush2.msra.mxu0 0.0
      %4009 = vmatprep.subr.mxu0 0.0
      %4010 = vmatpush2.msra.mxu0 0.0
      %4011 = vmatprep.subr.mxu0 0.0
      %4012 = vmatpush2.msra.mxu0 0.0
      %4013 = vmatprep.subr.mxu0 0.0
      %4014 = vmatpush2.msra.mxu0 0.0
      %4015 = vmatprep.subr.mxu0 0.0
      %4016 = vmatpush2.msra.mxu0 0.0
      %4017 = vmatprep.subr.mxu0 0.0
      %4018 = vmatpush2.msra.mxu0 0.0
      %4019 = vmatprep.subr.mxu0 0.0
      %4020 = vmatpush2.msra.mxu0 0.0
      %4021 = vmatprep.subr.mxu0 0.0
      %4022 = vmatpush2.msra.mxu0 0.0
      %4023 = vmatprep.subr.mxu0 0.0
      %4024 = vmatpush2.msra.mxu0 0.0
      %4025 = vmatprep.mubr.f32.mxu0 0.0
      %4026 = vmatmul.mubr.f32.gmra.mxu0 %v3934
      %v4027 = vpop.f32.mrf.mxu0
      %v4028 = vadd.f32 0.0, %v4027
      %v4029 = vpop.f32.mrf.mxu0
      %v4030 = vadd.f32 0.0, %v4029
      %4031 = vmatprep.mubr.f32.mxu0 0.0
      %4032 = vmatmul.mubr.f32.gmra.mxu0 %v3937
      %v4033 = vpop.f32.mrf.mxu0
      %v4034 = vadd.f32 0.0, %v4033
      %v4035 = vpop.f32.mrf.mxu0
      %v4036 = vadd.f32 0.0, %v4035
      %4037 = vmatprep.mubr.f32.mxu0 0.0
      %4038 = vmatmul.mubr.f32.gmra.mxu0 %v3940
      %v4039 = vpop.f32.mrf.mxu0
      %v4040 = vadd.f32 0.0, %v4039
      %v4041 = vpop.f32.mrf.mxu0
      %v4042 = vadd.f32 0.0, %v4041
      %4043 = vmatprep.mubr.f32.mxu0 0.0
      %4044 = vmatmul.mubr.f32.gmra.mxu0 %v3943
      %v4045 = vpop.f32.mrf.mxu0
      %v4046 = vadd.f32 0.0, %v4045
      %v4047 = vpop.f32.mrf.mxu0
      %v4048 = vadd.f32 0.0, %v4047
      %4049 = vmatprep.mubr.f32.mxu0 0.0
      %4050 = vmatmul.mubr.f32.gmra.mxu0 %v3946
      %v4051 = vpop.f32.mrf.mxu0
      %v4052 = vadd.f32 0.0, %v4051
      %v4053 = vpop.f32.mrf.mxu0
      %v4054 = vadd.f32 0.0, %v4053
      %4055 = vmatprep.mubr.f32.mxu0 0.0
      %4056 = vmatmul.mubr.f32.gmra.mxu0 %v3949
      %v4057 = vpop.f32.mrf.mxu0
      %v4058 = vadd.f32 0.0, %v4057
      %v4059 = vpop.f32.mrf.mxu0
      %v4060 = vadd.f32 0.0, %v4059
      %4061 = vmatprep.mubr.f32.mxu0 0.0
      %4062 = vmatmul.mubr.f32.gmra.mxu0 %v3952
      %v4063 = vpop.f32.mrf.mxu0
      %v4064 = vadd.f32 0.0, %v4063
      %v4065 = vpop.f32.mrf.mxu0
      %v4066 = vadd.f32 0.0, %v4065
      %4067 = vmatprep.mubr.f32.mxu0 0.0
      %4068 = vmatmul.mubr.f32.gmra.mxu0 %v3955
      %v4069 = vpop.f32.mrf.mxu0
      %v4070 = vadd.f32 0.0, %v4069
      %v4071 = vpop.f32.mrf.mxu0
      %v4072 = vadd.f32 0.0, %v4071
      %4073 = vdwg.mxu0
      %v4074 = vadd.f32 %v3854, %v4028
      %v4075 = vadd.f32 %v3855, %v4030
      %v4076 = vadd.f32 %v3856, %v4034
      %v4077 = vadd.f32 %v3857, %v4036
      %v4078 = vadd.f32 %v3858, %v4040
      %v4079 = vadd.f32 %v3859, %v4042
      %v4080 = vadd.f32 %v3860, %v4046
      %v4081 = vadd.f32 %v3861, %v4048
      %v4082 = vadd.f32 %v3862, %v4052
      %v4083 = vadd.f32 %v3863, %v4054
      %v4084 = vadd.f32 %v3864, %v4058
      %v4085 = vadd.f32 %v3865, %v4060
      %v4086 = vadd.f32 %v3866, %v4064
      %v4087 = vadd.f32 %v3867, %v4066
      %v4088 = vadd.f32 %v3868, %v4070
      %v4089 = vadd.f32 %v3869, %v4072
      %v4090 = vld [vmem:[%s5] sm:$0xff]
      %v4091 = vld [vmem:[%s5 + $0x8] sm:$0xff]
      %v4092 = vld [vmem:[%s5 + $0x10] sm:$0xff]
      %v4093 = vld [vmem:[%s5 + $0x18] sm:$0xff]
      %v4094 = vld [vmem:[%s5 + $0x20] sm:$0xff]
      %v4095 = vld [vmem:[%s5 + $0x28] sm:$0xff]
      %v4096 = vld [vmem:[%s5 + $0x30] sm:$0xff]
      %v4097 = vld [vmem:[%s5 + $0x38] sm:$0xf]
      %4099 = vset.pattern.permute.xlu0 0
      %4100 = vperm.xlu0 %4099, %v4090
      %v4101 = vpop.permute.xlu0 %4100
      %4104 = vset.pattern.permute.xlu0 0
      %4105 = vperm.xlu0 %4104, %v4091
      %v4106 = vpop.permute.xlu0 %4105
      %4109 = vset.pattern.permute.xlu0 0
      %4110 = vperm.xlu0 %4109, %v4092
      %v4111 = vpop.permute.xlu0 %4110
      %4114 = vset.pattern.permute.xlu0 0
      %4115 = vperm.xlu0 %4114, %v4093
      %v4116 = vpop.permute.xlu0 %4115
      %4119 = vset.pattern.permute.xlu0 0
      %4120 = vperm.xlu0 %4119, %v4094
      %v4121 = vpop.permute.xlu0 %4120
      %4124 = vset.pattern.permute.xlu0 0
      %4125 = vperm.xlu0 %4124, %v4095
      %v4126 = vpop.permute.xlu0 %4125
      %4129 = vset.pattern.permute.xlu0 0
      %4130 = vperm.xlu0 %4129, %v4096
      %v4131 = vpop.permute.xlu0 %4130
      %4134 = vset.pattern.permute.xlu0 0
      %4135 = vperm.xlu0 %4134, %v4097
      %v4136 = vpop.permute.xlu0 %4135
      %v4138 = vadd.f32 %v4074, %v4101
      %v4139 = vadd.f32 %v4075, %v4101
      %v4140 = vadd.f32 %v4076, %v4106
      %v4141 = vadd.f32 %v4077, %v4106
      %v4142 = vadd.f32 %v4078, %v4111
      %v4143 = vadd.f32 %v4079, %v4111
      %v4144 = vadd.f32 %v4080, %v4116
      %v4145 = vadd.f32 %v4081, %v4116
      %v4146 = vadd.f32 %v4082, %v4121
      %v4147 = vadd.f32 %v4083, %v4121
      %v4148 = vadd.f32 %v4084, %v4126
      %v4149 = vadd.f32 %v4085, %v4126
      %v4150 = vadd.f32 %v4086, %v4131
      %v4151 = vadd.f32 %v4087, %v4131
      %v4152 = vadd.f32 %v4088, %v4136
      %v4153 = vadd.f32 %v4089, %v4136
      %v4154 = vadd.f32 %v4138, %v4139
      %4155 = vadd.xlane.f32.xlu0 %v4154
      %v4156 = vpop.xlane.xlu0 %4155
      %v4157 = vadd.f32 %v4140, %v4141
      %4158 = vadd.xlane.f32.xlu0 %v4157
      %v4159 = vpop.xlane.xlu0 %4158
      %v4160 = vadd.f32 %v4142, %v4143
      %4161 = vadd.xlane.f32.xlu0 %v4160
      %v4162 = vpop.xlane.xlu0 %4161
      %v4163 = vadd.f32 %v4144, %v4145
      %4164 = vadd.xlane.f32.xlu0 %v4163
      %v4165 = vpop.xlane.xlu0 %4164
      %v4166 = vadd.f32 %v4146, %v4147
      %4167 = vadd.xlane.f32.xlu0 %v4166
      %v4168 = vpop.xlane.xlu0 %4167
      %v4169 = vadd.f32 %v4148, %v4149
      %4170 = vadd.xlane.f32.xlu0 %v4169
      %v4171 = vpop.xlane.xlu0 %4170
      %v4172 = vadd.f32 %v4150, %v4151
      %4173 = vadd.xlane.f32.xlu0 %v4172
      %v4174 = vpop.xlane.xlu0 %4173
      %v4175 = vsel %vm557, %v4152, 0.0
      %v4176 = vsel %vm557, %v4153, 0.0
      %v4177 = vadd.f32 %v4175, %v4176
      %4178 = vadd.xlane.f32.xlu0 %v4177
      %v4179 = vpop.xlane.xlu0 %4178
      %v4180 = vmul.f32 %v4156, 0.00390625
      %v4181 = vmul.f32 %v4159, 0.00390625
      %v4182 = vmul.f32 %v4162, 0.00390625
      %v4183 = vmul.f32 %v4165, 0.00390625
      %v4184 = vmul.f32 %v4168, 0.00390625
      %v4185 = vmul.f32 %v4171, 0.00390625
      %v4186 = vmul.f32 %v4174, 0.00390625
      %v4187 = vmul.f32 %v4179, 0.00390625
      %v4188 = vld [vmem:[%s6] sm:$0x3]
      %v4189 = vld [vmem:[%s7] sm:$0x3]
      %4191 = vset.pattern.permute.xlu0 0
      %4192 = vperm.xlu0 %4191, %v4189
      %v4193 = vpop.permute.xlu0 %4192
      %v4196 = vsel %vm547, %v4188, 0
      %v4199 = vsel %vm557, %v4187, 0
      %4201 = vmatprep.subr.mxu0 0.0
      %4202 = vmatpush1.msra.mxu0 0.0
      %4203 = vmatprep.subr.mxu0 0.0
      %4204 = vmatpush1.msra.mxu0 0.0
      %4205 = vmatprep.subr.mxu0 0.0
      %4206 = vmatpush1.msra.mxu0 0.0
      %4207 = vmatprep.subr.mxu0 0.0
      %4208 = vmatpush1.msra.mxu0 0.0
      %4209 = vmatprep.subr.mxu0 0.0
      %4210 = vmatpush1.msra.mxu0 0.0
      %4211 = vmatprep.subr.mxu0 0.0
      %4212 = vmatpush1.msra.mxu0 0.0
      %4213 = vmatprep.subr.mxu0 0.0
      %4214 = vmatpush1.msra.mxu0 0.0
      %4215 = vmatprep.subr.mxu0 0.0
      %4216 = vmatpush1.msra.mxu0 0.0
      %4217 = vmatprep.subr.mxu0 0.0
      %4218 = vmatpush1.msra.mxu0 %v4199
      %4219 = vmatprep.subr.mxu0 0.0
      %4220 = vmatpush1.msra.mxu0 %v4186
      %4221 = vmatprep.subr.mxu0 0.0
      %4222 = vmatpush1.msra.mxu0 %v4185
      %4223 = vmatprep.subr.mxu0 0.0
      %4224 = vmatpush1.msra.mxu0 %v4184
      %4225 = vmatprep.subr.mxu0 0.0
      %4226 = vmatpush1.msra.mxu0 %v4183
      %4227 = vmatprep.subr.mxu0 0.0
      %4228 = vmatpush1.msra.mxu0 %v4182
      %4229 = vmatprep.subr.mxu0 0.0
      %4230 = vmatpush1.msra.mxu0 %v4181
      %4231 = vmatprep.subr.mxu0 0.0
      %4232 = vmatpush1.msra.mxu0 %v4180
      %4233 = vmatprep.subr.mxu0 0.0
      %4234 = vmatpush2.msra.mxu0 0.0
      %4235 = vmatprep.subr.mxu0 0.0
      %4236 = vmatpush2.msra.mxu0 0.0
      %4237 = vmatprep.subr.mxu0 0.0
      %4238 = vmatpush2.msra.mxu0 0.0
      %4239 = vmatprep.subr.mxu0 0.0
      %4240 = vmatpush2.msra.mxu0 0.0
      %4241 = vmatprep.subr.mxu0 0.0
      %4242 = vmatpush2.msra.mxu0 0.0
      %4243 = vmatprep.subr.mxu0 0.0
      %4244 = vmatpush2.msra.mxu0 0.0
      %4245 = vmatprep.subr.mxu0 0.0
      %4246 = vmatpush2.msra.mxu0 0.0
      %4247 = vmatprep.subr.mxu0 0.0
      %4248 = vmatpush2.msra.mxu0 0.0
      %4249 = vmatprep.subr.mxu0 0.0
      %4250 = vmatpush2.msra.mxu0 0.0
      %4251 = vmatprep.subr.mxu0 0.0
      %4252 = vmatpush2.msra.mxu0 0.0
      %4253 = vmatprep.subr.mxu0 0.0
      %4254 = vmatpush2.msra.mxu0 0.0
      %4255 = vmatprep.subr.mxu0 0.0
      %4256 = vmatpush2.msra.mxu0 0.0
      %4257 = vmatprep.subr.mxu0 0.0
      %4258 = vmatpush2.msra.mxu0 0.0
      %4259 = vmatprep.subr.mxu0 0.0
      %4260 = vmatpush2.msra.mxu0 0.0
      %4261 = vmatprep.subr.mxu0 0.0
      %4262 = vmatpush2.msra.mxu0 0.0
      %4263 = vmatprep.subr.mxu0 0.0
      %4264 = vmatpush2.msra.mxu0 0.0
      %4265 = vmatprep.mubr.f32.mxu0 0.0
      %4266 = vmatmul.mubr.f32.gmra.mxu0 %v4196
      %v4267 = vpop.f32.mrf.mxu0
      %v4268 = vadd.f32 %v4193, %v4267
      %v4269 = vpop.f32.mrf.mxu0
      %4270 = vdwg.mxu0
      %v4271 = vmax.f32 %v4268, 0.0
      %v4272 = vld [vmem:[%s8] sm:$0xff]
      %v4273 = vld [vmem:[%s8 + $0x8] sm:$0xff]
      %v4274 = vld [vmem:[%s8 + $0x10] sm:$0xff]
      %v4275 = vld [vmem:[%s8 + $0x18] sm:$0xff]
      %v4276 = vld [vmem:[%s8 + $0x20] sm:$0xff]
      %v4277 = vld [vmem:[%s8 + $0x28] sm:$0xff]
      %v4278 = vld [vmem:[%s8 + $0x30] sm:$0xff]
      %v4279 = vld [vmem:[%s8 + $0x38] sm:$0xf]
      %v4280 = vld [vmem:[%s9] sm:$0xff]
      %v4281 = vld [vmem:[%s9 + $0x8] sm:$0xff]
      %v4282 = vld [vmem:[%s9 + $0x10] sm:$0xff]
      %v4283 = vld [vmem:[%s9 + $0x18] sm:$0xff]
      %v4284 = vld [vmem:[%s9 + $0x20] sm:$0xff]
      %v4285 = vld [vmem:[%s9 + $0x28] sm:$0xff]
      %v4286 = vld [vmem:[%s9 + $0x30] sm:$0xff]
      %v4287 = vld [vmem:[%s9 + $0x38] sm:$0xf]
      %4289 = vset.pattern.permute.xlu0 0
      %4290 = vperm.xlu0 %4289, %v4280
      %v4291 = vpop.permute.xlu0 %4290
      %4294 = vset.pattern.permute.xlu0 0
      %4295 = vperm.xlu0 %4294, %v4281
      %v4296 = vpop.permute.xlu0 %4295
      %4299 = vset.pattern.permute.xlu0 0
      %4300 = vperm.xlu0 %4299, %v4282
      %v4301 = vpop.permute.xlu0 %4300
      %4304 = vset.pattern.permute.xlu0 0
      %4305 = vperm.xlu0 %4304, %v4283
      %v4306 = vpop.permute.xlu0 %4305
      %4309 = vset.pattern.permute.xlu0 0
      %4310 = vperm.xlu0 %4309, %v4284
      %v4311 = vpop.permute.xlu0 %4310
      %4314 = vset.pattern.permute.xlu0 0
      %4315 = vperm.xlu0 %4314, %v4285
      %v4316 = vpop.permute.xlu0 %4315
      %4319 = vset.pattern.permute.xlu0 0
      %4320 = vperm.xlu0 %4319, %v4286
      %v4321 = vpop.permute.xlu0 %4320
      %4324 = vset.pattern.permute.xlu0 0
      %4325 = vperm.xlu0 %4324, %v4287
      %v4326 = vpop.permute.xlu0 %4325
      %vm4328 = vcmask 15360
      %v4330 = vsel %vm4328, %v4272, 0
      %v4333 = vsel %vm4328, %v4273, 0
      %v4336 = vsel %vm4328, %v4274, 0
      %v4339 = vsel %vm4328, %v4275, 0
      %v4342 = vsel %vm4328, %v4276, 0
      %v4345 = vsel %vm4328, %v4277, 0
      %v4348 = vsel %vm4328, %v4278, 0
      %v4351 = vsel %vm4328, %v4279, 0
      %vm4353 = vcmask 1041408
      %v4355 = vsel %vm4353, %v4271, 0
      %4357 = vmatprep.subr.mxu0 0.0
      %4358 = vmatpush1.msra.mxu0 0.0
      %4359 = vmatprep.subr.mxu0 0.0
      %4360 = vmatpush1.msra.mxu0 0.0
      %4361 = vmatprep.subr.mxu0 0.0
      %4362 = vmatpush1.msra.mxu0 0.0
      %4363 = vmatprep.subr.mxu0 0.0
      %4364 = vmatpush1.msra.mxu0 0.0
      %4365 = vmatprep.subr.mxu0 0.0
      %4366 = vmatpush1.msra.mxu0 0.0
      %4367 = vmatprep.subr.mxu0 0.0
      %4368 = vmatpush1.msra.mxu0 0.0
      %4369 = vmatprep.subr.mxu0 0.0
      %4370 = vmatpush1.msra.mxu0 0.0
      %4371 = vmatprep.subr.mxu0 0.0
      %4372 = vmatpush1.msra.mxu0 0.0
      %4373 = vmatprep.subr.mxu0 0.0
      %4374 = vmatpush1.msra.mxu0 0.0
      %4375 = vmatprep.subr.mxu0 0.0
      %4376 = vmatpush1.msra.mxu0 0.0
      %4377 = vmatprep.subr.mxu0 0.0
      %4378 = vmatpush1.msra.mxu0 0.0
      %4379 = vmatprep.subr.mxu0 0.0
      %4380 = vmatpush1.msra.mxu0 0.0
      %4381 = vmatprep.subr.mxu0 0.0
      %4382 = vmatpush1.msra.mxu0 0.0
      %4383 = vmatprep.subr.mxu0 0.0
      %4384 = vmatpush1.msra.mxu0 0.0
      %4385 = vmatprep.subr.mxu0 0.0
      %4386 = vmatpush1.msra.mxu0 0.0
      %4387 = vmatprep.subr.mxu0 0.0
      %4388 = vmatpush1.msra.mxu0 %v4355
      %4389 = vmatprep.subr.mxu0 0.0
      %4390 = vmatpush2.msra.mxu0 0.0
      %4391 = vmatprep.subr.mxu0 0.0
      %4392 = vmatpush2.msra.mxu0 0.0
      %4393 = vmatprep.subr.mxu0 0.0
      %4394 = vmatpush2.msra.mxu0 0.0
      %4395 = vmatprep.subr.mxu0 0.0
      %4396 = vmatpush2.msra.mxu0 0.0
      %4397 = vmatprep.subr.mxu0 0.0
      %4398 = vmatpush2.msra.mxu0 0.0
      %4399 = vmatprep.subr.mxu0 0.0
      %4400 = vmatpush2.msra.mxu0 0.0
      %4401 = vmatprep.subr.mxu0 0.0
      %4402 = vmatpush2.msra.mxu0 0.0
      %4403 = vmatprep.subr.mxu0 0.0
      %4404 = vmatpush2.msra.mxu0 0.0
      %4405 = vmatprep.subr.mxu0 0.0
      %4406 = vmatpush2.msra.mxu0 0.0
      %4407 = vmatprep.subr.mxu0 0.0
      %4408 = vmatpush2.msra.mxu0 0.0
      %4409 = vmatprep.subr.mxu0 0.0
      %4410 = vmatpush2.msra.mxu0 0.0
      %4411 = vmatprep.subr.mxu0 0.0
      %4412 = vmatpush2.msra.mxu0 0.0
      %4413 = vmatprep.subr.mxu0 0.0
      %4414 = vmatpush2.msra.mxu0 0.0
      %4415 = vmatprep.subr.mxu0 0.0
      %4416 = vmatpush2.msra.mxu0 0.0
      %4417 = vmatprep.subr.mxu0 0.0
      %4418 = vmatpush2.msra.mxu0 0.0
      %4419 = vmatprep.subr.mxu0 0.0
      %4420 = vmatpush2.msra.mxu0 0.0
      %4421 = vmatprep.mubr.f32.mxu0 0.0
      %4422 = vmatmul.mubr.f32.gmra.mxu0 %v4330
      %v4423 = vpop.f32.mrf.mxu0
      %v4424 = vadd.f32 %v4291, %v4423
      %v4425 = vpop.f32.mrf.mxu0
      %4426 = vmatprep.mubr.f32.mxu0 0.0
      %4427 = vmatmul.mubr.f32.gmra.mxu0 %v4333
      %v4428 = vpop.f32.mrf.mxu0
      %v4429 = vadd.f32 %v4296, %v4428
      %v4430 = vpop.f32.mrf.mxu0
      %4431 = vmatprep.mubr.f32.mxu0 0.0
      %4432 = vmatmul.mubr.f32.gmra.mxu0 %v4336
      %v4433 = vpop.f32.mrf.mxu0
      %v4434 = vadd.f32 %v4301, %v4433
      %v4435 = vpop.f32.mrf.mxu0
      %4436 = vmatprep.mubr.f32.mxu0 0.0
      %4437 = vmatmul.mubr.f32.gmra.mxu0 %v4339
      %v4438 = vpop.f32.mrf.mxu0
      %v4439 = vadd.f32 %v4306, %v4438
      %v4440 = vpop.f32.mrf.mxu0
      %4441 = vmatprep.mubr.f32.mxu0 0.0
      %4442 = vmatmul.mubr.f32.gmra.mxu0 %v4342
      %v4443 = vpop.f32.mrf.mxu0
      %v4444 = vadd.f32 %v4311, %v4443
      %v4445 = vpop.f32.mrf.mxu0
      %4446 = vmatprep.mubr.f32.mxu0 0.0
      %4447 = vmatmul.mubr.f32.gmra.mxu0 %v4345
      %v4448 = vpop.f32.mrf.mxu0
      %v4449 = vadd.f32 %v4316, %v4448
      %v4450 = vpop.f32.mrf.mxu0
      %4451 = vmatprep.mubr.f32.mxu0 0.0
      %4452 = vmatmul.mubr.f32.gmra.mxu0 %v4348
      %v4453 = vpop.f32.mrf.mxu0
      %v4454 = vadd.f32 %v4321, %v4453
      %v4455 = vpop.f32.mrf.mxu0
      %4456 = vmatprep.mubr.f32.mxu0 0.0
      %4457 = vmatmul.mubr.f32.gmra.mxu0 %v4351
      %v4458 = vpop.f32.mrf.mxu0
      %v4459 = vadd.f32 %v4326, %v4458
      %v4460 = vpop.f32.mrf.mxu0
      %4461 = vdwg.mxu0
      %v4462 = vxor.u32 %v4424, 2147483648
      %v4463 = vxor.u32 %v4429, 2147483648
      %v4464 = vxor.u32 %v4434, 2147483648
      %v4465 = vxor.u32 %v4439, 2147483648
      %v4466 = vxor.u32 %v4444, 2147483648
      %v4467 = vxor.u32 %v4449, 2147483648
      %v4468 = vxor.u32 %v4454, 2147483648
      %v4469 = vxor.u32 %v4459, 2147483648
      %v4470 = vmul.f32 %v4462, 1.442695
      %v4471 = vpow.pop %v4470
      %v4472 = vmul.f32 %v4463, 1.442695
      %v4473 = vpow.pop %v4472
      %v4474 = vmul.f32 %v4464, 1.442695
      %v4475 = vpow.pop %v4474
      %v4476 = vmul.f32 %v4465, 1.442695
      %v4477 = vpow.pop %v4476
      %v4478 = vmul.f32 %v4466, 1.442695
      %v4479 = vpow.pop %v4478
      %v4480 = vmul.f32 %v4467, 1.442695
      %v4481 = vpow.pop %v4480
      %v4482 = vmul.f32 %v4468, 1.442695
      %v4483 = vpow.pop %v4482
      %v4484 = vmul.f32 %v4469, 1.442695
      %v4485 = vpow.pop %v4484
      %v4486 = vadd.f32 %v4471, 1.0
      %v4487 = vadd.f32 %v4473, 1.0
      %v4488 = vadd.f32 %v4475, 1.0
      %v4489 = vadd.f32 %v4477, 1.0
      %v4490 = vadd.f32 %v4479, 1.0
      %v4491 = vadd.f32 %v4481, 1.0
      %v4492 = vadd.f32 %v4483, 1.0
      %v4493 = vadd.f32 %v4485, 1.0
      %v4494 = vrcp.pop %v4486
      %v4495 = vmul.f32 1.0, %v4494
      %v4496 = vrcp.pop %v4487
      %v4497 = vmul.f32 1.0, %v4496
      %v4498 = vrcp.pop %v4488
      %v4499 = vmul.f32 1.0, %v4498
      %v4500 = vrcp.pop %v4489
      %v4501 = vmul.f32 1.0, %v4500
      %v4502 = vrcp.pop %v4490
      %v4503 = vmul.f32 1.0, %v4502
      %v4504 = vrcp.pop %v4491
      %v4505 = vmul.f32 1.0, %v4504
      %v4506 = vrcp.pop %v4492
      %v4507 = vmul.f32 1.0, %v4506
      %v4508 = vrcp.pop %v4493
      %v4509 = vmul.f32 1.0, %v4508
      %4511 = vset.pattern.permute.xlu0 0
      %4512 = vperm.xlu0 %4511, %v4495
      %v4513 = vpop.permute.xlu0 %4512
      %4516 = vset.pattern.permute.xlu0 0
      %4517 = vperm.xlu0 %4516, %v4497
      %v4518 = vpop.permute.xlu0 %4517
      %4521 = vset.pattern.permute.xlu0 0
      %4522 = vperm.xlu0 %4521, %v4499
      %v4523 = vpop.permute.xlu0 %4522
      %4526 = vset.pattern.permute.xlu0 0
      %4527 = vperm.xlu0 %4526, %v4501
      %v4528 = vpop.permute.xlu0 %4527
      %4531 = vset.pattern.permute.xlu0 0
      %4532 = vperm.xlu0 %4531, %v4503
      %v4533 = vpop.permute.xlu0 %4532
      %4536 = vset.pattern.permute.xlu0 0
      %4537 = vperm.xlu0 %4536, %v4505
      %v4538 = vpop.permute.xlu0 %4537
      %4541 = vset.pattern.permute.xlu0 0
      %4542 = vperm.xlu0 %4541, %v4507
      %v4543 = vpop.permute.xlu0 %4542
      %4546 = vset.pattern.permute.xlu0 0
      %4547 = vperm.xlu0 %4546, %v4509
      %v4548 = vpop.permute.xlu0 %4547
      %v4550 = vmul.f32 %v4138, %v4513
      %v4551 = vmul.f32 %v4139, %v4513
      %v4552 = vmul.f32 %v4140, %v4518
      %v4553 = vmul.f32 %v4141, %v4518
      %v4554 = vmul.f32 %v4142, %v4523
      %v4555 = vmul.f32 %v4143, %v4523
      %v4556 = vmul.f32 %v4144, %v4528
      %v4557 = vmul.f32 %v4145, %v4528
      %v4558 = vmul.f32 %v4146, %v4533
      %v4559 = vmul.f32 %v4147, %v4533
      %v4560 = vmul.f32 %v4148, %v4538
      %v4561 = vmul.f32 %v4149, %v4538
      %v4562 = vmul.f32 %v4150, %v4543
      %v4563 = vmul.f32 %v4151, %v4543
      %v4564 = vmul.f32 %v4152, %v4548
      %v4565 = vmul.f32 %v4153, %v4548
      %4566 = vst [vmem:[%s359] sm:$0xff] %v4550
      %4567 = vst [vmem:[%s359 + $0x8] sm:$0xff] %v4551
      %4568 = vst [vmem:[%s359 + $0x10] sm:$0xff] %v4552
      %4569 = vst [vmem:[%s359 + $0x18] sm:$0xff] %v4553
      %4570 = vst [vmem:[%s359 + $0x20] sm:$0xff] %v4554
      %4571 = vst [vmem:[%s359 + $0x28] sm:$0xff] %v4555
      %4572 = vst [vmem:[%s359 + $0x30] sm:$0xff] %v4556
      %4573 = vst [vmem:[%s359 + $0x38] sm:$0xff] %v4557
      %4574 = vst [vmem:[%s359 + $0x40] sm:$0xff] %v4558
      %4575 = vst [vmem:[%s359 + $0x48] sm:$0xff] %v4559
      %4576 = vst [vmem:[%s359 + $0x50] sm:$0xff] %v4560
      %4577 = vst [vmem:[%s359 + $0x58] sm:$0xff] %v4561
      %4578 = vst [vmem:[%s359 + $0x60] sm:$0xff] %v4562
      %4579 = vst [vmem:[%s359 + $0x68] sm:$0xff] %v4563
      %4580 = vst [vmem:[%s359 + $0x70] sm:$0xf] %v4564
      %4581 = vst [vmem:[%s359 + $0x78] sm:$0xf] %v4565
      %p4582 = scmp.lt.s32.totalorder %s21, 1
      %s4583 = scalar_select %p4582, %s21, 1
      %s4584 = smul.addr %s4583, 16
      %s4585 = smul.addr %s4584, 8
      %s4586 = scalar_lea.vmem %s10, %s4585
      // Predicated region
      $region61: #{tpu_custom_call.1} parent=59 // pred_check
        %p4587 = pneg %p254
      $region62: #{tpu_custom_call.1} parent=59 // pred_check_branch
        %4589 = sbr.rel (%p4587) target = $region64
      $region63: #{tpu_custom_call.1} parent=59 // pred_region
        _
      $region64: #{tpu_custom_call.1} parent=59 // pred_fallthru
        _
    $region60: #{tpu_custom_call.1} parent=5 // pred_fallthru
      _
    %p4590 = scmp.le.s32.totalorder 2, %s16
    // Predicated region
    $region65: #{tpu_custom_call.1} parent=5 // pred_check
      %p4591 = pneg %p4590
    $region66: #{tpu_custom_call.1} parent=5 // pred_check_branch
      %4593 = sbr.rel (%p4591) target = $region68
    $region67: #{tpu_custom_call.1} parent=5 // pred_region
      %s4594 = ssub.s32 %s16, 2
      // Predicated region
      $region69: #{tpu_custom_call.1} parent=67 // pred_check
        %p4595 = pneg %p260
      $region70: #{tpu_custom_call.1} parent=67 // pred_check_branch
        %4597 = sbr.rel (%p4595) target = $region72
      $region71: #{tpu_custom_call.1} parent=67 // pred_region
        %p4598 = scmp.lt.s32.totalorder %s22, 1
        %s4599 = scalar_select %p4598, %s22, 1
        %s4600 = smul.addr %s4599, 16
        %s4601 = smul.addr %s4600, 8
        %s4602 = scalar_lea.vmem %s10, %s4601
      $region72: #{tpu_custom_call.1} parent=67 // pred_fallthru
        _
    $region68: #{tpu_custom_call.1} parent=5 // pred_fallthru
      _
  $region6: #{tpu_custom_call.1} parent=0 // loop_footer
    %s20 = sadd.s32 1, %s16
  $region7: #{tpu_custom_call.1} parent=0 // loop_footer_branch
    %15 = sbr.rel target = $region3
  $region8: #{tpu_custom_call.1} parent=0 // loop_exit
    _

</llo_original>
